<compile_context>
chip_gen: v7x
topology: tpu7x:2x2x1
jax: 0.10.0
libtpu: 0.0.40
codegen_flags: <defaults>
</compile_context>

<pallas_src>
import math

import jax
import jax.numpy as jnp
from jax import lax
from jax.experimental import pallas as pl
from jax.experimental.pallas import tpu as pltpu

# Encoder3 channel plan: 3 -> 64 -> 128 -> 256 -> 512 -> 512.
CHANNELS = (3, 64, 128, 256, 512, 512)
BN_EPS = 1e-5
# Per-block row-tile targets (rows = B * H/2 * W/2 pooled pixels).  Kept large
# (multiples of 8, >=64 .. 512) for MXU utilization, but capped per layer so
# the double-buffered (4, tm, 9*Cin) patch tile stays well inside VMEM even on
# v7x (64 MiB).  The grid over row tiles is marked "parallel" so v7x's two
# TensorCores can split it.
ROW_TILES = (512, 512, 256, 128, 64)


def _round_up(x, m):
    return (x + m - 1) // m * m


def conv_block_kernel(p_ref, w_ref, s_ref, b_ref, o_ref):
    """One grid step of conv3x3 + BN + ReLU + 2x2 max-pool.

    p_ref: (4, tm, 9*Cin)  im2col patches, one leading slot per pooling tap
    w_ref: (9*Cin, Cout)   conv weights in (kh, kw, cin) row order
    s_ref: (1, Cout)       folded BN scale  = gamma / sqrt(var + eps)
    b_ref: (1, Cout)       folded bias      = beta + (conv_bias - mean) * scale
    o_ref: (tm, Cout)      max over the 4 taps of relu(patch @ w * s + b)
    """
    w = w_ref[...]
    scale = s_ref[...]
    bias = b_ref[...]
    acc = None
    for t in range(4):  # the four 2x2 max-pool taps
        z = jnp.dot(p_ref[t], w, preferred_element_type=jnp.float32)
        z = jnp.maximum(z * scale + bias, 0.0)  # folded BN + ReLU
        acc = z if acc is None else jnp.maximum(acc, z)
    o_ref[...] = acc.astype(o_ref.dtype)


def conv_bn_relu_pool(x, w_hwio, scale, bias, *, row_tile):
    """x: (B, H, W, Cin) NHWC float32 -> (B, H//2, W//2, Cout)."""
    B, H, W, Cin = x.shape
    assert H % 2 == 0 and W % 2 == 0, "spatial dims must be even for 2x2 pool"
    Cout = w_hwio.shape[-1]
    Ho, Wo = H // 2, W // 2
    K = 9 * Cin

    xp = jnp.pad(x, ((0, 0), (1, 1), (1, 1), (0, 0)))  # conv padding=1

    # im2col for each pooling tap (py, px): row r = (n, i, j) pooled pixel,
    # columns = the 3x3xCin receptive field of conv output (2i+py, 2j+px),
    # in (kh, kw, cin) order to match w_hwio.reshape(9*Cin, Cout).
    taps = []
    for py in (0, 1):
        for px in (0, 1):
            cols = [
                xp[:, py + kh: py + kh + H: 2, px + kw: px + kw + W: 2, :]
                for kh in range(3) for kw in range(3)
            ]
            taps.append(jnp.concatenate(cols, axis=-1).reshape(B * Ho * Wo, K))
    patches = jnp.stack(taps, axis=0)  # (4, rows, K)

    rows = B * Ho * Wo
    if rows >= row_tile:
        tm = row_tile
        rows_p = _round_up(rows, tm)
    else:
        tm = _round_up(rows, 8)
        rows_p = tm
    if rows_p != rows:
        patches = jnp.pad(patches, ((0, 0), (0, rows_p - rows), (0, 0)))

    w_mat = w_hwio.reshape(K, Cout)
    scale2d = scale.reshape(1, Cout)
    bias2d = bias.reshape(1, Cout)

    grid = (rows_p // tm,)
    flops = 2 * 4 * rows_p * K * Cout
    bytes_accessed = 4 * (4 * rows_p * K + K * Cout + 2 * Cout + rows_p * Cout)

    out = pl.pallas_call(
        conv_block_kernel,
        out_shape=jax.ShapeDtypeStruct((rows_p, Cout), x.dtype),
        grid_spec=pltpu.PrefetchScalarGridSpec(
            num_scalar_prefetch=0,
            grid=grid,
            in_specs=[
                pl.BlockSpec((4, tm, K), lambda i: (0, i, 0)),   # patches
                pl.BlockSpec((K, Cout), lambda i: (0, 0)),       # weights
                pl.BlockSpec((1, Cout), lambda i: (0, 0)),       # BN scale
                pl.BlockSpec((1, Cout), lambda i: (0, 0)),       # BN bias
            ],
            out_specs=pl.BlockSpec((tm, Cout), lambda i: (i, 0)),
        ),
        compiler_params=pltpu.CompilerParams(
            dimension_semantics=("parallel",),
            vmem_limit_bytes=40 * 1024 * 1024,
        ),
        cost_estimate=pl.CostEstimate(
            flops=flops, transcendentals=0, bytes_accessed=bytes_accessed),
    )(patches, w_mat, scale2d, bias2d)

    return out[:rows].reshape(B, Ho, Wo, Cout)


def encoder3_forward(x_nchw, params):
    """Pallas forward of Encoder3. x_nchw: (B, 3, H, W) float32."""
    h = jnp.transpose(x_nchw, (0, 2, 3, 1))  # NCHW -> NHWC
    for lp, row_tile in zip(params, ROW_TILES):
        scale = lp["gamma"] * lax.rsqrt(lp["var"] + BN_EPS)
        bias = lp["beta"] + (lp["conv_b"] - lp["mean"]) * scale
        h = conv_bn_relu_pool(h, lp["w"], scale, bias, row_tile=row_tile)
    B = h.shape[0]
    # PyTorch: out.view(B, -1) on NCHW tensors.
    return jnp.transpose(h, (0, 3, 1, 2)).reshape(B, -1)


def init_params(key):
    """PyTorch-like init: Conv2d U(-1/sqrt(fan_in), 1/sqrt(fan_in)); BN stats
    are randomized (instead of identity defaults) to exercise the BN fold."""
    params = []
    for cin, cout in zip(CHANNELS[:-1], CHANNELS[1:]):
        key, *ks = jax.random.split(key, 7)
        bound = 1.0 / math.sqrt(cin * 9)
        params.append({
            "w": jax.random.uniform(ks[0], (3, 3, cin, cout), jnp.float32,
                                    -bound, bound),
            "conv_b": jax.random.uniform(ks[1], (cout,), jnp.float32,
                                         -bound, bound),
            "gamma": jax.random.uniform(ks[2], (cout,), jnp.float32, 0.8, 1.6),
            "beta": jax.random.uniform(ks[3], (cout,), jnp.float32, -0.2, 0.2),
            "mean": jax.random.uniform(ks[4], (cout,), jnp.float32, -0.2, 0.2),
            "var": jax.random.uniform(ks[5], (cout,), jnp.float32, 0.5, 1.5),
        })
    return params


def reference_forward(x_nchw, params):
    """Independent XLA reference: conv -> bias -> BN(eval) -> ReLU -> maxpool."""
    h = jnp.transpose(x_nchw, (0, 2, 3, 1))
    for lp in params:
        h = lax.conv_general_dilated(
            h, lp["w"], window_strides=(1, 1), padding=((1, 1), (1, 1)),
            dimension_numbers=("NHWC", "HWIO", "NHWC"),
            precision=lax.Precision.HIGHEST)
        h = h + lp["conv_b"]
        h = (h - lp["mean"]) * lax.rsqrt(lp["var"] + BN_EPS) * lp["gamma"] \
            + lp["beta"]
        h = jnp.maximum(h, 0.0)
        h = lax.reduce_window(h, -jnp.inf, lax.max,
                              (1, 2, 2, 1), (1, 2, 2, 1), "VALID")
    B = h.shape[0]
    return jnp.transpose(h, (0, 3, 1, 2)).reshape(B, -1)


if __name__ == "__main__":
    key = jax.random.PRNGKey(0)
    k_params, k_x = jax.random.split(key)

    params = init_params(k_params)
    B, H, W = 2, 32, 32  # CIFAR-like; 5 max-pools -> 1x1 spatial, 512 features
    x = jax.random.normal(k_x, (B, CHANNELS[0], H, W), jnp.float32)

    out = jax.block_until_ready(encoder3_forward(x, params))
    ref = jax.block_until_ready(reference_forward(x, params))

    assert out.shape == (B, 512 * (H // 32) * (W // 32))
    assert jnp.allclose(out, ref, atol=3e-3, rtol=3e-3), float(
        jnp.max(jnp.abs(out - ref)))

    print("KERNEL_OK")
</pallas_src>

<mosaic_0001>
module attributes {stable_mosaic.version = 11 : i64} {
  func.func @conv_block_kernel(%arg0: i32, %arg1: memref<4x512x27xf32, #tpu.memory_space<vmem>>, %arg2: memref<27x64xf32, #tpu.memory_space<vmem>>, %arg3: memref<1x64xf32, #tpu.memory_space<vmem>>, %arg4: memref<1x64xf32, #tpu.memory_space<vmem>>, %arg5: memref<512x64xf32, #tpu.memory_space<vmem>>) attributes {dimension_semantics = [#tpu.dimension_semantics<parallel>], iteration_bounds = array<i64: 1>, scalar_prefetch = 0 : i64, scratch_operands = 0 : i64, tpu.core_type = #tpu.core_type<tc>, window_params = [{transform_indices = @transform_0, window_bounds = array<i64: 4, 512, 27>}, {pipeline_mode = #tpu.pipeline_mode<synchronous>, transform_indices = @transform_1, window_bounds = array<i64: 27, 64>}, {pipeline_mode = #tpu.pipeline_mode<synchronous>, transform_indices = @transform_2, window_bounds = array<i64: 1, 64>}, {pipeline_mode = #tpu.pipeline_mode<synchronous>, transform_indices = @transform_3, window_bounds = array<i64: 1, 64>}, {transform_indices = @transform_4, window_bounds = array<i64: 512, 64>}]} {
    %c0 = arith.constant 0 : index
    %c0_0 = arith.constant 0 : index
    %0 = vector.load %arg2[%c0, %c0_0] : memref<27x64xf32, #tpu.memory_space<vmem>>, vector<27x64xf32>
    %c0_1 = arith.constant 0 : index
    %c0_2 = arith.constant 0 : index
    %1 = vector.load %arg3[%c0_1, %c0_2] : memref<1x64xf32, #tpu.memory_space<vmem>>, vector<1x64xf32>
    %c0_3 = arith.constant 0 : index
    %c0_4 = arith.constant 0 : index
    %2 = vector.load %arg4[%c0_3, %c0_4] : memref<1x64xf32, #tpu.memory_space<vmem>>, vector<1x64xf32>
    %c0_5 = arith.constant 0 : index
    %c0_6 = arith.constant 0 : index
    %c0_7 = arith.constant 0 : index
    %3 = vector.load %arg1[%c0_5, %c0_6, %c0_7] : memref<4x512x27xf32, #tpu.memory_space<vmem>>, vector<1x512x27xf32>
    %4 = vector.shape_cast %3 : vector<1x512x27xf32> to vector<512x27xf32>
    %cst = arith.constant dense<0.000000e+00> : vector<512x64xf32>
    %5 = tpu.matmul %4, %0, %cst {dimension_numbers = #tpu.dot_dimension_numbers<[1], [0], [0], [1], [0, 0, 1, 1], [], []>} : vector<512x27xf32>, vector<27x64xf32>, vector<512x64xf32> -> vector<512x64xf32>
    %6 = vector.broadcast %1 : vector<1x64xf32> to vector<512x64xf32>
    %7 = arith.mulf %5, %6 : vector<512x64xf32>
    %8 = vector.broadcast %2 : vector<1x64xf32> to vector<512x64xf32>
    %9 = arith.addf %7, %8 : vector<512x64xf32>
    %cst_8 = arith.constant 0.000000e+00 : f32
    %10 = vector.broadcast %cst_8 : f32 to vector<512x64xf32>
    %11 = arith.maximumf %9, %10 : vector<512x64xf32>
    %c1 = arith.constant 1 : index
    %c0_9 = arith.constant 0 : index
    %c0_10 = arith.constant 0 : index
    %12 = vector.load %arg1[%c1, %c0_9, %c0_10] : memref<4x512x27xf32, #tpu.memory_space<vmem>>, vector<1x512x27xf32>
    %13 = vector.shape_cast %12 : vector<1x512x27xf32> to vector<512x27xf32>
    %cst_11 = arith.constant dense<0.000000e+00> : vector<512x64xf32>
    %14 = tpu.matmul %13, %0, %cst_11 {dimension_numbers = #tpu.dot_dimension_numbers<[1], [0], [0], [1], [0, 0, 1, 1], [], []>} : vector<512x27xf32>, vector<27x64xf32>, vector<512x64xf32> -> vector<512x64xf32>
    %15 = vector.broadcast %1 : vector<1x64xf32> to vector<512x64xf32>
    %16 = arith.mulf %14, %15 : vector<512x64xf32>
    %17 = vector.broadcast %2 : vector<1x64xf32> to vector<512x64xf32>
    %18 = arith.addf %16, %17 : vector<512x64xf32>
    %cst_12 = arith.constant 0.000000e+00 : f32
    %19 = vector.broadcast %cst_12 : f32 to vector<512x64xf32>
    %20 = arith.maximumf %18, %19 : vector<512x64xf32>
    %21 = arith.maximumf %11, %20 : vector<512x64xf32>
    %c2 = arith.constant 2 : index
    %c0_13 = arith.constant 0 : index
    %c0_14 = arith.constant 0 : index
    %22 = vector.load %arg1[%c2, %c0_13, %c0_14] : memref<4x512x27xf32, #tpu.memory_space<vmem>>, vector<1x512x27xf32>
    %23 = vector.shape_cast %22 : vector<1x512x27xf32> to vector<512x27xf32>
    %cst_15 = arith.constant dense<0.000000e+00> : vector<512x64xf32>
    %24 = tpu.matmul %23, %0, %cst_15 {dimension_numbers = #tpu.dot_dimension_numbers<[1], [0], [0], [1], [0, 0, 1, 1], [], []>} : vector<512x27xf32>, vector<27x64xf32>, vector<512x64xf32> -> vector<512x64xf32>
    %25 = vector.broadcast %1 : vector<1x64xf32> to vector<512x64xf32>
    %26 = arith.mulf %24, %25 : vector<512x64xf32>
    %27 = vector.broadcast %2 : vector<1x64xf32> to vector<512x64xf32>
    %28 = arith.addf %26, %27 : vector<512x64xf32>
    %cst_16 = arith.constant 0.000000e+00 : f32
    %29 = vector.broadcast %cst_16 : f32 to vector<512x64xf32>
    %30 = arith.maximumf %28, %29 : vector<512x64xf32>
    %31 = arith.maximumf %21, %30 : vector<512x64xf32>
    %c3 = arith.constant 3 : index
    %c0_17 = arith.constant 0 : index
    %c0_18 = arith.constant 0 : index
    %32 = vector.load %arg1[%c3, %c0_17, %c0_18] : memref<4x512x27xf32, #tpu.memory_space<vmem>>, vector<1x512x27xf32>
    %33 = vector.shape_cast %32 : vector<1x512x27xf32> to vector<512x27xf32>
    %cst_19 = arith.constant dense<0.000000e+00> : vector<512x64xf32>
    %34 = tpu.matmul %33, %0, %cst_19 {dimension_numbers = #tpu.dot_dimension_numbers<[1], [0], [0], [1], [0, 0, 1, 1], [], []>} : vector<512x27xf32>, vector<27x64xf32>, vector<512x64xf32> -> vector<512x64xf32>
    %35 = vector.broadcast %1 : vector<1x64xf32> to vector<512x64xf32>
    %36 = arith.mulf %34, %35 : vector<512x64xf32>
    %37 = vector.broadcast %2 : vector<1x64xf32> to vector<512x64xf32>
    %38 = arith.addf %36, %37 : vector<512x64xf32>
    %cst_20 = arith.constant 0.000000e+00 : f32
    %39 = vector.broadcast %cst_20 : f32 to vector<512x64xf32>
    %40 = arith.maximumf %38, %39 : vector<512x64xf32>
    %41 = arith.maximumf %31, %40 : vector<512x64xf32>
    %c0_21 = arith.constant 0 : index
    %c0_22 = arith.constant 0 : index
    %42 = vector.load %arg5[%c0_21, %c0_22] : memref<512x64xf32, #tpu.memory_space<vmem>>, vector<512x64xf32>
    tpu.vector_store %arg5[%c0_21, %c0_22], %41 {strides = array<i32>} : memref<512x64xf32, #tpu.memory_space<vmem>>, vector<512x64xf32>,
    return
  }
  func.func @transform_0(%arg0: i32) -> (i32, i32, i32) {
    %c0_i32 = arith.constant 0 : i32
    %c0_i32_0 = arith.constant 0 : i32
    %c0_i32_1 = arith.constant 0 : i32
    return %c0_i32, %arg0, %c0_i32_0 : i32, i32, i32
  }
  func.func @transform_1(%arg0: i32) -> (i32, i32) {
    %c0_i32 = arith.constant 0 : i32
    %c0_i32_0 = arith.constant 0 : i32
    %c0_i32_1 = arith.constant 0 : i32
    return %c0_i32, %c0_i32_0 : i32, i32
  }
  func.func @transform_2(%arg0: i32) -> (i32, i32) {
    %c0_i32 = arith.constant 0 : i32
    %c0_i32_0 = arith.constant 0 : i32
    %c0_i32_1 = arith.constant 0 : i32
    return %c0_i32, %c0_i32_0 : i32, i32
  }
  func.func @transform_3(%arg0: i32) -> (i32, i32) {
    %c0_i32 = arith.constant 0 : i32
    %c0_i32_0 = arith.constant 0 : i32
    %c0_i32_1 = arith.constant 0 : i32
    return %c0_i32, %c0_i32_0 : i32, i32
  }
  func.func @transform_4(%arg0: i32) -> (i32, i32) {
    %c0_i32 = arith.constant 0 : i32
    %c0_i32_0 = arith.constant 0 : i32
    return %arg0, %c0_i32 : i32, i32
  }
}

</mosaic_0001>

<llo_original>
// kernel: tpu_custom_call.1
$region0: #{tpu_custom_call.1}
  #allocation0 [shape = 'u32[]', space=smem, size = 0x4, offset = 0x4, fixed_abs, tag = 'smem constant byte address 0x4 - core index']
  #allocation1 [shape = 'u32[144,128]{1,0:T(1,128)}', space=vmem, size = 0x12000, scoped, tag = 'internal scratch']
  %s0 = inlined_call_operand.vmem [shape: f32[4,512,27], index: 0, kind: input, shape index: {}]
  %s1 = inlined_call_operand.vmem [shape: f32[27,64], index: 1, kind: input, shape index: {}]
  %s2 = inlined_call_operand.vmem [shape: f32[1,64], index: 2, kind: input, shape index: {}]
  %s3 = inlined_call_operand.vmem [shape: f32[1,64], index: 3, kind: input, shape index: {}]
  %s4 = inlined_call_operand.vmem [shape: f32[512,64], index: 4, kind: output, shape index: {}]
  %s5 = sld [smem:[#allocation0]]
  $region26: #{tpu_custom_call.1} parent=0
    _
  %s7 = ssub.s32 1, %s5
  %s8 = scalar_select 0, %s7, %s5
  // Predicated region
  $region2: #{tpu_custom_call.1} parent=0 // pred_check
    _
  $region3: #{tpu_custom_call.1} parent=0 // pred_check_branch
    %10 = sbr.rel (0) target = $region5
  $region4: #{tpu_custom_call.1} parent=0 // pred_region
    _
  $region5: #{tpu_custom_call.1} parent=0 // pred_fallthru
    _
  // Predicated region
  $region6: #{tpu_custom_call.1} parent=0 // pred_check
    _
  $region7: #{tpu_custom_call.1} parent=0 // pred_check_branch
    %12 = sbr.rel (0) target = $region9
  $region8: #{tpu_custom_call.1} parent=0 // pred_region
    _
  $region9: #{tpu_custom_call.1} parent=0 // pred_fallthru
    _
  // Predicated region
  $region10: #{tpu_custom_call.1} parent=0 // pred_check
    _
  $region11: #{tpu_custom_call.1} parent=0 // pred_check_branch
    %14 = sbr.rel (0) target = $region13
  $region12: #{tpu_custom_call.1} parent=0 // pred_region
    _
  $region13: #{tpu_custom_call.1} parent=0 // pred_fallthru
    _
  // Predicated region
  $region14: #{tpu_custom_call.1} parent=0 // pred_check
    _
  $region15: #{tpu_custom_call.1} parent=0 // pred_check_branch
    %16 = sbr.rel (0) target = $region17
  $region16: #{tpu_custom_call.1} parent=0 // pred_region
    _
  $region17: #{tpu_custom_call.1} parent=0 // pred_fallthru
    _
  %v17 = vld [vmem:[%s1] sm:$0xff]
  %v18 = vld [vmem:[%s1 + $0x8] sm:$0xff]
  %v19 = vld [vmem:[%s1 + $0x10] sm:$0xff]
  %v20 = vld [vmem:[%s1 + $0x18] sm:$0x7]
  %v21 = vld [vmem:[%s2] sm:$0x1]
  %v22 = vld [vmem:[%s3] sm:$0x1]
  %v23 = vld [vmem:[%s0] sm:$0xff]
  %v24 = vld [vmem:[%s0 + $0x8] sm:$0xff]
  %v25 = vld [vmem:[%s0 + $0x10] sm:$0xff]
  %v26 = vld [vmem:[%s0 + $0x18] sm:$0xff]
  %v27 = vld [vmem:[%s0 + $0x20] sm:$0xff]
  %v28 = vld [vmem:[%s0 + $0x28] sm:$0xff]
  %v29 = vld [vmem:[%s0 + $0x30] sm:$0xff]
  %v30 = vld [vmem:[%s0 + $0x38] sm:$0xff]
  %v31 = vld [vmem:[%s0 + $0x40] sm:$0xff]
  %v32 = vld [vmem:[%s0 + $0x48] sm:$0xff]
  %v33 = vld [vmem:[%s0 + $0x50] sm:$0xff]
  %v34 = vld [vmem:[%s0 + $0x58] sm:$0xff]
  %v35 = vld [vmem:[%s0 + $0x60] sm:$0xff]
  %v36 = vld [vmem:[%s0 + $0x68] sm:$0xff]
  %v37 = vld [vmem:[%s0 + $0x70] sm:$0xff]
  %v38 = vld [vmem:[%s0 + $0x78] sm:$0xff]
  %v39 = vld [vmem:[%s0 + $0x80] sm:$0xff]
  %v40 = vld [vmem:[%s0 + $0x88] sm:$0xff]
  %v41 = vld [vmem:[%s0 + $0x90] sm:$0xff]
  %v42 = vld [vmem:[%s0 + $0x98] sm:$0xff]
  %v43 = vld [vmem:[%s0 + $0xa0] sm:$0xff]
  %v44 = vld [vmem:[%s0 + $0xa8] sm:$0xff]
  %v45 = vld [vmem:[%s0 + $0xb0] sm:$0xff]
  %v46 = vld [vmem:[%s0 + $0xb8] sm:$0xff]
  %v47 = vld [vmem:[%s0 + $0xc0] sm:$0xff]
  %v48 = vld [vmem:[%s0 + $0xc8] sm:$0xff]
  %v49 = vld [vmem:[%s0 + $0xd0] sm:$0xff]
  %v50 = vld [vmem:[%s0 + $0xd8] sm:$0xff]
  %v51 = vld [vmem:[%s0 + $0xe0] sm:$0xff]
  %v52 = vld [vmem:[%s0 + $0xe8] sm:$0xff]
  %v53 = vld [vmem:[%s0 + $0xf0] sm:$0xff]
  %v54 = vld [vmem:[%s0 + $0xf8] sm:$0xff]
  %v55 = vld [vmem:[%s0 + $0x100] sm:$0xff]
  %v56 = vld [vmem:[%s0 + $0x108] sm:$0xff]
  %v57 = vld [vmem:[%s0 + $0x110] sm:$0xff]
  %v58 = vld [vmem:[%s0 + $0x118] sm:$0xff]
  %v59 = vld [vmem:[%s0 + $0x120] sm:$0xff]
  %v60 = vld [vmem:[%s0 + $0x128] sm:$0xff]
  %v61 = vld [vmem:[%s0 + $0x130] sm:$0xff]
  %v62 = vld [vmem:[%s0 + $0x138] sm:$0xff]
  %v63 = vld [vmem:[%s0 + $0x140] sm:$0xff]
  %v64 = vld [vmem:[%s0 + $0x148] sm:$0xff]
  %v65 = vld [vmem:[%s0 + $0x150] sm:$0xff]
  %v66 = vld [vmem:[%s0 + $0x158] sm:$0xff]
  %v67 = vld [vmem:[%s0 + $0x160] sm:$0xff]
  %v68 = vld [vmem:[%s0 + $0x168] sm:$0xff]
  %v69 = vld [vmem:[%s0 + $0x170] sm:$0xff]
  %v70 = vld [vmem:[%s0 + $0x178] sm:$0xff]
  %v71 = vld [vmem:[%s0 + $0x180] sm:$0xff]
  %v72 = vld [vmem:[%s0 + $0x188] sm:$0xff]
  %v73 = vld [vmem:[%s0 + $0x190] sm:$0xff]
  %v74 = vld [vmem:[%s0 + $0x198] sm:$0xff]
  %v75 = vld [vmem:[%s0 + $0x1a0] sm:$0xff]
  %v76 = vld [vmem:[%s0 + $0x1a8] sm:$0xff]
  %v77 = vld [vmem:[%s0 + $0x1b0] sm:$0xff]
  %v78 = vld [vmem:[%s0 + $0x1b8] sm:$0xff]
  %v79 = vld [vmem:[%s0 + $0x1c0] sm:$0xff]
  %v80 = vld [vmem:[%s0 + $0x1c8] sm:$0xff]
  %v81 = vld [vmem:[%s0 + $0x1d0] sm:$0xff]
  %v82 = vld [vmem:[%s0 + $0x1d8] sm:$0xff]
  %v83 = vld [vmem:[%s0 + $0x1e0] sm:$0xff]
  %v84 = vld [vmem:[%s0 + $0x1e8] sm:$0xff]
  %v85 = vld [vmem:[%s0 + $0x1f0] sm:$0xff]
  %v86 = vld [vmem:[%s0 + $0x1f8] sm:$0xff]
  %vm87 = vcmask 220160
  %v89 = vsel %vm87, %v23, 0
  %v92 = vsel %vm87, %v24, 0
  %v95 = vsel %vm87, %v25, 0
  %v98 = vsel %vm87, %v26, 0
  %v101 = vsel %vm87, %v27, 0
  %v104 = vsel %vm87, %v28, 0
  %v107 = vsel %vm87, %v29, 0
  %v110 = vsel %vm87, %v30, 0
  %v113 = vsel %vm87, %v31, 0
  %v116 = vsel %vm87, %v32, 0
  %v119 = vsel %vm87, %v33, 0
  %v122 = vsel %vm87, %v34, 0
  %v125 = vsel %vm87, %v35, 0
  %v128 = vsel %vm87, %v36, 0
  %v131 = vsel %vm87, %v37, 0
  %v134 = vsel %vm87, %v38, 0
  %v137 = vsel %vm87, %v39, 0
  %v140 = vsel %vm87, %v40, 0
  %v143 = vsel %vm87, %v41, 0
  %v146 = vsel %vm87, %v42, 0
  %v149 = vsel %vm87, %v43, 0
  %v152 = vsel %vm87, %v44, 0
  %v155 = vsel %vm87, %v45, 0
  %v158 = vsel %vm87, %v46, 0
  %v161 = vsel %vm87, %v47, 0
  %v164 = vsel %vm87, %v48, 0
  %v167 = vsel %vm87, %v49, 0
  %v170 = vsel %vm87, %v50, 0
  %v173 = vsel %vm87, %v51, 0
  %v176 = vsel %vm87, %v52, 0
  %v179 = vsel %vm87, %v53, 0
  %v182 = vsel %vm87, %v54, 0
  %v185 = vsel %vm87, %v55, 0
  %v188 = vsel %vm87, %v56, 0
  %v191 = vsel %vm87, %v57, 0
  %v194 = vsel %vm87, %v58, 0
  %v197 = vsel %vm87, %v59, 0
  %v200 = vsel %vm87, %v60, 0
  %v203 = vsel %vm87, %v61, 0
  %v206 = vsel %vm87, %v62, 0
  %v209 = vsel %vm87, %v63, 0
  %v212 = vsel %vm87, %v64, 0
  %v215 = vsel %vm87, %v65, 0
  %v218 = vsel %vm87, %v66, 0
  %v221 = vsel %vm87, %v67, 0
  %v224 = vsel %vm87, %v68, 0
  %v227 = vsel %vm87, %v69, 0
  %v230 = vsel %vm87, %v70, 0
  %v233 = vsel %vm87, %v71, 0
  %v236 = vsel %vm87, %v72, 0
  %v239 = vsel %vm87, %v73, 0
  %v242 = vsel %vm87, %v74, 0
  %v245 = vsel %vm87, %v75, 0
  %v248 = vsel %vm87, %v76, 0
  %v251 = vsel %vm87, %v77, 0
  %v254 = vsel %vm87, %v78, 0
  %v257 = vsel %vm87, %v79, 0
  %v260 = vsel %vm87, %v80, 0
  %v263 = vsel %vm87, %v81, 0
  %v266 = vsel %vm87, %v82, 0
  %v269 = vsel %vm87, %v83, 0
  %v272 = vsel %vm87, %v84, 0
  %v275 = vsel %vm87, %v85, 0
  %v278 = vsel %vm87, %v86, 0
  %vm280 = vcmask 1042432
  %v282 = vsel %vm280, %v20, 0
  %284 = vmatprep.subr.mxu0 0.0
  %285 = vmatpush1.msra.mxu0 %v17
  %286 = vmatprep.subr.mxu0 0.0
  %287 = vmatpush1.msra.mxu0 %v18
  %288 = vmatprep.subr.mxu0 0.0
  %289 = vmatpush1.msra.mxu0 %v19
  %290 = vmatprep.subr.mxu0 0.0
  %291 = vmatpush1.msra.mxu0 %v282
  %292 = vmatprep.subr.mxu0 0.0
  %293 = vmatpush1.msra.mxu0 0.0
  %294 = vmatprep.subr.mxu0 0.0
  %295 = vmatpush1.msra.mxu0 0.0
  %296 = vmatprep.subr.mxu0 0.0
  %297 = vmatpush1.msra.mxu0 0.0
  %298 = vmatprep.subr.mxu0 0.0
  %299 = vmatpush1.msra.mxu0 0.0
  %300 = vmatprep.subr.mxu0 0.0
  %301 = vmatpush1.msra.mxu0 0.0
  %302 = vmatprep.subr.mxu0 0.0
  %303 = vmatpush1.msra.mxu0 0.0
  %304 = vmatprep.subr.mxu0 0.0
  %305 = vmatpush1.msra.mxu0 0.0
  %306 = vmatprep.subr.mxu0 0.0
  %307 = vmatpush1.msra.mxu0 0.0
  %308 = vmatprep.subr.mxu0 0.0
  %309 = vmatpush1.msra.mxu0 0.0
  %310 = vmatprep.subr.mxu0 0.0
  %311 = vmatpush1.msra.mxu0 0.0
  %312 = vmatprep.subr.mxu0 0.0
  %313 = vmatpush1.msra.mxu0 0.0
  %314 = vmatprep.subr.mxu0 0.0
  %315 = vmatpush1.msra.mxu0 0.0
  %316 = vmatprep.subr.mxu0 0.0
  %317 = vmatpush1.msra.mxu0 0.0
  %318 = vmatprep.subr.mxu0 0.0
  %319 = vmatpush1.msra.mxu0 0.0
  %320 = vmatprep.subr.mxu0 0.0
  %321 = vmatpush1.msra.mxu0 0.0
  %322 = vmatprep.subr.mxu0 0.0
  %323 = vmatpush1.msra.mxu0 0.0
  %324 = vmatprep.subr.mxu0 0.0
  %325 = vmatpush1.msra.mxu0 0.0
  %326 = vmatprep.subr.mxu0 0.0
  %327 = vmatpush1.msra.mxu0 0.0
  %328 = vmatprep.subr.mxu0 0.0
  %329 = vmatpush1.msra.mxu0 0.0
  %330 = vmatprep.subr.mxu0 0.0
  %331 = vmatpush1.msra.mxu0 0.0
  %332 = vmatprep.subr.mxu0 0.0
  %333 = vmatpush1.msra.mxu0 0.0
  %334 = vmatprep.subr.mxu0 0.0
  %335 = vmatpush1.msra.mxu0 0.0
  %336 = vmatprep.subr.mxu0 0.0
  %337 = vmatpush1.msra.mxu0 0.0
  %338 = vmatprep.subr.mxu0 0.0
  %339 = vmatpush1.msra.mxu0 0.0
  %340 = vmatprep.subr.mxu0 0.0
  %341 = vmatpush1.msra.mxu0 0.0
  %342 = vmatprep.subr.mxu0 0.0
  %343 = vmatpush1.msra.mxu0 0.0
  %344 = vmatprep.subr.mxu0 0.0
  %345 = vmatpush1.msra.mxu0 0.0
  %346 = vmatprep.subr.mxu0 0.0
  %347 = vmatpush1.msra.mxu0 0.0
  %348 = vmatprep.mubr.f32.mxu0 0.0
  %349 = vmatmul.mubr.f32.gmra.mrb[0].mxu0 %v89
  %v350 = vpop.f32.mrb[0].mxu0
  %v351 = vadd.f32 0.0, %v350
  %v352 = vpop.f32.mrb[0].mxu0
  %353 = vmatprep.mubr.f32.mxu0 0.0
  %354 = vmatmul.mubr.f32.gmra.mrb[0].mxu0 %v92
  %v355 = vpop.f32.mrb[0].mxu0
  %v356 = vadd.f32 0.0, %v355
  %v357 = vpop.f32.mrb[0].mxu0
  %358 = vmatprep.mubr.f32.mxu0 0.0
  %359 = vmatmul.mubr.f32.gmra.mrb[0].mxu0 %v95
  %v360 = vpop.f32.mrb[0].mxu0
  %v361 = vadd.f32 0.0, %v360
  %v362 = vpop.f32.mrb[0].mxu0
  %363 = vmatprep.mubr.f32.mxu0 0.0
  %364 = vmatmul.mubr.f32.gmra.mrb[0].mxu0 %v98
  %v365 = vpop.f32.mrb[0].mxu0
  %v366 = vadd.f32 0.0, %v365
  %v367 = vpop.f32.mrb[0].mxu0
  %368 = vmatprep.mubr.f32.mxu0 0.0
  %369 = vmatmul.mubr.f32.gmra.mrb[0].mxu0 %v101
  %v370 = vpop.f32.mrb[0].mxu0
  %v371 = vadd.f32 0.0, %v370
  %v372 = vpop.f32.mrb[0].mxu0
  %373 = vmatprep.mubr.f32.mxu0 0.0
  %374 = vmatmul.mubr.f32.gmra.mrb[0].mxu0 %v104
  %v375 = vpop.f32.mrb[0].mxu0
  %v376 = vadd.f32 0.0, %v375
  %v377 = vpop.f32.mrb[0].mxu0
  %378 = vmatprep.mubr.f32.mxu0 0.0
  %379 = vmatmul.mubr.f32.gmra.mrb[0].mxu0 %v107
  %v380 = vpop.f32.mrb[0].mxu0
  %v381 = vadd.f32 0.0, %v380
  %v382 = vpop.f32.mrb[0].mxu0
  %383 = vmatprep.mubr.f32.mxu0 0.0
  %384 = vmatmul.mubr.f32.gmra.mrb[0].mxu0 %v110
  %v385 = vpop.f32.mrb[0].mxu0
  %v386 = vadd.f32 0.0, %v385
  %v387 = vpop.f32.mrb[0].mxu0
  %388 = vmatprep.mubr.f32.mxu0 0.0
  %389 = vmatmul.mubr.f32.gmra.mrb[0].mxu0 %v113
  %v390 = vpop.f32.mrb[0].mxu0
  %v391 = vadd.f32 0.0, %v390
  %v392 = vpop.f32.mrb[0].mxu0
  %393 = vmatprep.mubr.f32.mxu0 0.0
  %394 = vmatmul.mubr.f32.gmra.mrb[0].mxu0 %v116
  %v395 = vpop.f32.mrb[0].mxu0
  %v396 = vadd.f32 0.0, %v395
  %v397 = vpop.f32.mrb[0].mxu0
  %398 = vmatprep.mubr.f32.mxu0 0.0
  %399 = vmatmul.mubr.f32.gmra.mrb[0].mxu0 %v119
  %v400 = vpop.f32.mrb[0].mxu0
  %v401 = vadd.f32 0.0, %v400
  %v402 = vpop.f32.mrb[0].mxu0
  %403 = vmatprep.mubr.f32.mxu0 0.0
  %404 = vmatmul.mubr.f32.gmra.mrb[0].mxu0 %v122
  %v405 = vpop.f32.mrb[0].mxu0
  %v406 = vadd.f32 0.0, %v405
  %v407 = vpop.f32.mrb[0].mxu0
  %408 = vmatprep.mubr.f32.mxu0 0.0
  %409 = vmatmul.mubr.f32.gmra.mrb[0].mxu0 %v125
  %v410 = vpop.f32.mrb[0].mxu0
  %v411 = vadd.f32 0.0, %v410
  %v412 = vpop.f32.mrb[0].mxu0
  %413 = vmatprep.mubr.f32.mxu0 0.0
  %414 = vmatmul.mubr.f32.gmra.mrb[0].mxu0 %v128
  %v415 = vpop.f32.mrb[0].mxu0
  %v416 = vadd.f32 0.0, %v415
  %v417 = vpop.f32.mrb[0].mxu0
  %418 = vmatprep.mubr.f32.mxu0 0.0
  %419 = vmatmul.mubr.f32.gmra.mrb[0].mxu0 %v131
  %v420 = vpop.f32.mrb[0].mxu0
  %v421 = vadd.f32 0.0, %v420
  %v422 = vpop.f32.mrb[0].mxu0
  %423 = vmatprep.mubr.f32.mxu0 0.0
  %424 = vmatmul.mubr.f32.gmra.mrb[0].mxu0 %v134
  %v425 = vpop.f32.mrb[0].mxu0
  %v426 = vadd.f32 0.0, %v425
  %v427 = vpop.f32.mrb[0].mxu0
  %428 = vmatprep.mubr.f32.mxu0 0.0
  %429 = vmatmul.mubr.f32.gmra.mrb[0].mxu0 %v137
  %v430 = vpop.f32.mrb[0].mxu0
  %v431 = vadd.f32 0.0, %v430
  %v432 = vpop.f32.mrb[0].mxu0
  %433 = vmatprep.mubr.f32.mxu0 0.0
  %434 = vmatmul.mubr.f32.gmra.mrb[0].mxu0 %v140
  %v435 = vpop.f32.mrb[0].mxu0
  %v436 = vadd.f32 0.0, %v435
  %v437 = vpop.f32.mrb[0].mxu0
  %438 = vmatprep.mubr.f32.mxu0 0.0
  %439 = vmatmul.mubr.f32.gmra.mrb[0].mxu0 %v143
  %v440 = vpop.f32.mrb[0].mxu0
  %v441 = vadd.f32 0.0, %v440
  %v442 = vpop.f32.mrb[0].mxu0
  %443 = vmatprep.mubr.f32.mxu0 0.0
  %444 = vmatmul.mubr.f32.gmra.mrb[0].mxu0 %v146
  %v445 = vpop.f32.mrb[0].mxu0
  %v446 = vadd.f32 0.0, %v445
  %v447 = vpop.f32.mrb[0].mxu0
  %448 = vmatprep.mubr.f32.mxu0 0.0
  %449 = vmatmul.mubr.f32.gmra.mrb[0].mxu0 %v149
  %v450 = vpop.f32.mrb[0].mxu0
  %v451 = vadd.f32 0.0, %v450
  %v452 = vpop.f32.mrb[0].mxu0
  %453 = vmatprep.mubr.f32.mxu0 0.0
  %454 = vmatmul.mubr.f32.gmra.mrb[0].mxu0 %v152
  %v455 = vpop.f32.mrb[0].mxu0
  %v456 = vadd.f32 0.0, %v455
  %v457 = vpop.f32.mrb[0].mxu0
  %458 = vmatprep.mubr.f32.mxu0 0.0
  %459 = vmatmul.mubr.f32.gmra.mrb[0].mxu0 %v155
  %v460 = vpop.f32.mrb[0].mxu0
  %v461 = vadd.f32 0.0, %v460
  %v462 = vpop.f32.mrb[0].mxu0
  %463 = vmatprep.mubr.f32.mxu0 0.0
  %464 = vmatmul.mubr.f32.gmra.mrb[0].mxu0 %v158
  %v465 = vpop.f32.mrb[0].mxu0
  %v466 = vadd.f32 0.0, %v465
  %v467 = vpop.f32.mrb[0].mxu0
  %468 = vmatprep.mubr.f32.mxu0 0.0
  %469 = vmatmul.mubr.f32.gmra.mrb[0].mxu0 %v161
  %v470 = vpop.f32.mrb[0].mxu0
  %v471 = vadd.f32 0.0, %v470
  %v472 = vpop.f32.mrb[0].mxu0
  %473 = vmatprep.mubr.f32.mxu0 0.0
  %474 = vmatmul.mubr.f32.gmra.mrb[0].mxu0 %v164
  %v475 = vpop.f32.mrb[0].mxu0
  %v476 = vadd.f32 0.0, %v475
  %v477 = vpop.f32.mrb[0].mxu0
  %478 = vmatprep.mubr.f32.mxu0 0.0
  %479 = vmatmul.mubr.f32.gmra.mrb[0].mxu0 %v167
  %v480 = vpop.f32.mrb[0].mxu0
  %v481 = vadd.f32 0.0, %v480
  %v482 = vpop.f32.mrb[0].mxu0
  %483 = vmatprep.mubr.f32.mxu0 0.0
  %484 = vmatmul.mubr.f32.gmra.mrb[0].mxu0 %v170
  %v485 = vpop.f32.mrb[0].mxu0
  %v486 = vadd.f32 0.0, %v485
  %v487 = vpop.f32.mrb[0].mxu0
  %488 = vmatprep.mubr.f32.mxu0 0.0
  %489 = vmatmul.mubr.f32.gmra.mrb[0].mxu0 %v173
  %v490 = vpop.f32.mrb[0].mxu0
  %v491 = vadd.f32 0.0, %v490
  %v492 = vpop.f32.mrb[0].mxu0
  %493 = vmatprep.mubr.f32.mxu0 0.0
  %494 = vmatmul.mubr.f32.gmra.mrb[0].mxu0 %v176
  %v495 = vpop.f32.mrb[0].mxu0
  %v496 = vadd.f32 0.0, %v495
  %v497 = vpop.f32.mrb[0].mxu0
  %498 = vmatprep.mubr.f32.mxu0 0.0
  %499 = vmatmul.mubr.f32.gmra.mrb[0].mxu0 %v179
  %v500 = vpop.f32.mrb[0].mxu0
  %v501 = vadd.f32 0.0, %v500
  %v502 = vpop.f32.mrb[0].mxu0
  %503 = vmatprep.mubr.f32.mxu0 0.0
  %504 = vmatmul.mubr.f32.gmra.mrb[0].mxu0 %v182
  %v505 = vpop.f32.mrb[0].mxu0
  %v506 = vadd.f32 0.0, %v505
  %v507 = vpop.f32.mrb[0].mxu0
  %508 = vmatprep.mubr.f32.mxu0 0.0
  %509 = vmatmul.mubr.f32.gmra.mrb[0].mxu0 %v185
  %v510 = vpop.f32.mrb[0].mxu0
  %v511 = vadd.f32 0.0, %v510
  %v512 = vpop.f32.mrb[0].mxu0
  %513 = vmatprep.mubr.f32.mxu0 0.0
  %514 = vmatmul.mubr.f32.gmra.mrb[0].mxu0 %v188
  %v515 = vpop.f32.mrb[0].mxu0
  %v516 = vadd.f32 0.0, %v515
  %v517 = vpop.f32.mrb[0].mxu0
  %518 = vmatprep.mubr.f32.mxu0 0.0
  %519 = vmatmul.mubr.f32.gmra.mrb[0].mxu0 %v191
  %v520 = vpop.f32.mrb[0].mxu0
  %v521 = vadd.f32 0.0, %v520
  %v522 = vpop.f32.mrb[0].mxu0
  %523 = vmatprep.mubr.f32.mxu0 0.0
  %524 = vmatmul.mubr.f32.gmra.mrb[0].mxu0 %v194
  %v525 = vpop.f32.mrb[0].mxu0
  %v526 = vadd.f32 0.0, %v525
  %v527 = vpop.f32.mrb[0].mxu0
  %528 = vmatprep.mubr.f32.mxu0 0.0
  %529 = vmatmul.mubr.f32.gmra.mrb[0].mxu0 %v197
  %v530 = vpop.f32.mrb[0].mxu0
  %v531 = vadd.f32 0.0, %v530
  %v532 = vpop.f32.mrb[0].mxu0
  %533 = vmatprep.mubr.f32.mxu0 0.0
  %534 = vmatmul.mubr.f32.gmra.mrb[0].mxu0 %v200
  %v535 = vpop.f32.mrb[0].mxu0
  %v536 = vadd.f32 0.0, %v535
  %v537 = vpop.f32.mrb[0].mxu0
  %538 = vmatprep.mubr.f32.mxu0 0.0
  %539 = vmatmul.mubr.f32.gmra.mrb[0].mxu0 %v203
  %v540 = vpop.f32.mrb[0].mxu0
  %v541 = vadd.f32 0.0, %v540
  %v542 = vpop.f32.mrb[0].mxu0
  %543 = vmatprep.mubr.f32.mxu0 0.0
  %544 = vmatmul.mubr.f32.gmra.mrb[0].mxu0 %v206
  %v545 = vpop.f32.mrb[0].mxu0
  %v546 = vadd.f32 0.0, %v545
  %v547 = vpop.f32.mrb[0].mxu0
  %548 = vmatprep.mubr.f32.mxu0 0.0
  %549 = vmatmul.mubr.f32.gmra.mrb[0].mxu0 %v209
  %v550 = vpop.f32.mrb[0].mxu0
  %v551 = vadd.f32 0.0, %v550
  %v552 = vpop.f32.mrb[0].mxu0
  %553 = vmatprep.mubr.f32.mxu0 0.0
  %554 = vmatmul.mubr.f32.gmra.mrb[0].mxu0 %v212
  %v555 = vpop.f32.mrb[0].mxu0
  %v556 = vadd.f32 0.0, %v555
  %v557 = vpop.f32.mrb[0].mxu0
  %558 = vmatprep.mubr.f32.mxu0 0.0
  %559 = vmatmul.mubr.f32.gmra.mrb[0].mxu0 %v215
  %v560 = vpop.f32.mrb[0].mxu0
  %v561 = vadd.f32 0.0, %v560
  %v562 = vpop.f32.mrb[0].mxu0
  %563 = vmatprep.mubr.f32.mxu0 0.0
  %564 = vmatmul.mubr.f32.gmra.mrb[0].mxu0 %v218
  %v565 = vpop.f32.mrb[0].mxu0
  %v566 = vadd.f32 0.0, %v565
  %v567 = vpop.f32.mrb[0].mxu0
  %568 = vmatprep.mubr.f32.mxu0 0.0
  %569 = vmatmul.mubr.f32.gmra.mrb[0].mxu0 %v221
  %v570 = vpop.f32.mrb[0].mxu0
  %v571 = vadd.f32 0.0, %v570
  %v572 = vpop.f32.mrb[0].mxu0
  %573 = vmatprep.mubr.f32.mxu0 0.0
  %574 = vmatmul.mubr.f32.gmra.mrb[0].mxu0 %v224
  %v575 = vpop.f32.mrb[0].mxu0
  %v576 = vadd.f32 0.0, %v575
  %v577 = vpop.f32.mrb[0].mxu0
  %578 = vmatprep.mubr.f32.mxu0 0.0
  %579 = vmatmul.mubr.f32.gmra.mrb[0].mxu0 %v227
  %v580 = vpop.f32.mrb[0].mxu0
  %v581 = vadd.f32 0.0, %v580
  %v582 = vpop.f32.mrb[0].mxu0
  %583 = vmatprep.mubr.f32.mxu0 0.0
  %584 = vmatmul.mubr.f32.gmra.mrb[0].mxu0 %v230
  %v585 = vpop.f32.mrb[0].mxu0
  %v586 = vadd.f32 0.0, %v585
  %v587 = vpop.f32.mrb[0].mxu0
  %588 = vmatprep.mubr.f32.mxu0 0.0
  %589 = vmatmul.mubr.f32.gmra.mrb[0].mxu0 %v233
  %v590 = vpop.f32.mrb[0].mxu0
  %v591 = vadd.f32 0.0, %v590
  %v592 = vpop.f32.mrb[0].mxu0
  %593 = vmatprep.mubr.f32.mxu0 0.0
  %594 = vmatmul.mubr.f32.gmra.mrb[0].mxu0 %v236
  %v595 = vpop.f32.mrb[0].mxu0
  %v596 = vadd.f32 0.0, %v595
  %v597 = vpop.f32.mrb[0].mxu0
  %598 = vmatprep.mubr.f32.mxu0 0.0
  %599 = vmatmul.mubr.f32.gmra.mrb[0].mxu0 %v239
  %v600 = vpop.f32.mrb[0].mxu0
  %v601 = vadd.f32 0.0, %v600
  %v602 = vpop.f32.mrb[0].mxu0
  %603 = vmatprep.mubr.f32.mxu0 0.0
  %604 = vmatmul.mubr.f32.gmra.mrb[0].mxu0 %v242
  %v605 = vpop.f32.mrb[0].mxu0
  %v606 = vadd.f32 0.0, %v605
  %v607 = vpop.f32.mrb[0].mxu0
  %608 = vmatprep.mubr.f32.mxu0 0.0
  %609 = vmatmul.mubr.f32.gmra.mrb[0].mxu0 %v245
  %v610 = vpop.f32.mrb[0].mxu0
  %v611 = vadd.f32 0.0, %v610
  %v612 = vpop.f32.mrb[0].mxu0
  %613 = vmatprep.mubr.f32.mxu0 0.0
  %614 = vmatmul.mubr.f32.gmra.mrb[0].mxu0 %v248
  %v615 = vpop.f32.mrb[0].mxu0
  %v616 = vadd.f32 0.0, %v615
  %v617 = vpop.f32.mrb[0].mxu0
  %618 = vmatprep.mubr.f32.mxu0 0.0
  %619 = vmatmul.mubr.f32.gmra.mrb[0].mxu0 %v251
  %v620 = vpop.f32.mrb[0].mxu0
  %v621 = vadd.f32 0.0, %v620
  %v622 = vpop.f32.mrb[0].mxu0
  %623 = vmatprep.mubr.f32.mxu0 0.0
  %624 = vmatmul.mubr.f32.gmra.mrb[0].mxu0 %v254
  %v625 = vpop.f32.mrb[0].mxu0
  %v626 = vadd.f32 0.0, %v625
  %v627 = vpop.f32.mrb[0].mxu0
  %628 = vmatprep.mubr.f32.mxu0 0.0
  %629 = vmatmul.mubr.f32.gmra.mrb[0].mxu0 %v257
  %v630 = vpop.f32.mrb[0].mxu0
  %v631 = vadd.f32 0.0, %v630
  %v632 = vpop.f32.mrb[0].mxu0
  %633 = vmatprep.mubr.f32.mxu0 0.0
  %634 = vmatmul.mubr.f32.gmra.mrb[0].mxu0 %v260
  %v635 = vpop.f32.mrb[0].mxu0
  %v636 = vadd.f32 0.0, %v635
  %v637 = vpop.f32.mrb[0].mxu0
  %638 = vmatprep.mubr.f32.mxu0 0.0
  %639 = vmatmul.mubr.f32.gmra.mrb[0].mxu0 %v263
  %v640 = vpop.f32.mrb[0].mxu0
  %v641 = vadd.f32 0.0, %v640
  %v642 = vpop.f32.mrb[0].mxu0
  %643 = vmatprep.mubr.f32.mxu0 0.0
  %644 = vmatmul.mubr.f32.gmra.mrb[0].mxu0 %v266
  %v645 = vpop.f32.mrb[0].mxu0
  %v646 = vadd.f32 0.0, %v645
  %v647 = vpop.f32.mrb[0].mxu0
  %648 = vmatprep.mubr.f32.mxu0 0.0
  %649 = vmatmul.mubr.f32.gmra.mrb[0].mxu0 %v269
  %v650 = vpop.f32.mrb[0].mxu0
  %v651 = vadd.f32 0.0, %v650
  %v652 = vpop.f32.mrb[0].mxu0
  %653 = vmatprep.mubr.f32.mxu0 0.0
  %654 = vmatmul.mubr.f32.gmra.mrb[0].mxu0 %v272
  %v655 = vpop.f32.mrb[0].mxu0
  %v656 = vadd.f32 0.0, %v655
  %v657 = vpop.f32.mrb[0].mxu0
  %658 = vmatprep.mubr.f32.mxu0 0.0
  %659 = vmatmul.mubr.f32.gmra.mrb[0].mxu0 %v275
  %v660 = vpop.f32.mrb[0].mxu0
  %v661 = vadd.f32 0.0, %v660
  %v662 = vpop.f32.mrb[0].mxu0
  %663 = vmatprep.mubr.f32.mxu0 0.0
  %664 = vmatmul.mubr.f32.gmra.mrb[0].mxu0 %v278
  %v665 = vpop.f32.mrb[0].mxu0
  %v666 = vadd.f32 0.0, %v665
  %v667 = vpop.f32.mrb[0].mxu0
  %668 = vdwg.mxu0
  %v670 = vlaneseq
  %v671 = vshrl.u32 %v670, 7
  %v672 = vsub.s32 0, %v671
  %v673 = vrot.slane %v21, %v672
  %v675 = vmul.f32 %v351, %v673
  %v676 = vmul.f32 %v356, %v673
  %v677 = vmul.f32 %v361, %v673
  %v678 = vmul.f32 %v366, %v673
  %v679 = vmul.f32 %v371, %v673
  %v680 = vmul.f32 %v376, %v673
  %v681 = vmul.f32 %v381, %v673
  %v682 = vmul.f32 %v386, %v673
  %v683 = vmul.f32 %v391, %v673
  %v684 = vmul.f32 %v396, %v673
  %v685 = vmul.f32 %v401, %v673
  %v686 = vmul.f32 %v406, %v673
  %v687 = vmul.f32 %v411, %v673
  %v688 = vmul.f32 %v416, %v673
  %v689 = vmul.f32 %v421, %v673
  %v690 = vmul.f32 %v426, %v673
  %v691 = vmul.f32 %v431, %v673
  %v692 = vmul.f32 %v436, %v673
  %v693 = vmul.f32 %v441, %v673
  %v694 = vmul.f32 %v446, %v673
  %v695 = vmul.f32 %v451, %v673
  %v696 = vmul.f32 %v456, %v673
  %v697 = vmul.f32 %v461, %v673
  %v698 = vmul.f32 %v466, %v673
  %v699 = vmul.f32 %v471, %v673
  %v700 = vmul.f32 %v476, %v673
  %v701 = vmul.f32 %v481, %v673
  %v702 = vmul.f32 %v486, %v673
  %v703 = vmul.f32 %v491, %v673
  %v704 = vmul.f32 %v496, %v673
  %v705 = vmul.f32 %v501, %v673
  %v706 = vmul.f32 %v506, %v673
  %v707 = vmul.f32 %v511, %v673
  %v708 = vmul.f32 %v516, %v673
  %v709 = vmul.f32 %v521, %v673
  %v710 = vmul.f32 %v526, %v673
  %v711 = vmul.f32 %v531, %v673
  %v712 = vmul.f32 %v536, %v673
  %v713 = vmul.f32 %v541, %v673
  %v714 = vmul.f32 %v546, %v673
  %v715 = vmul.f32 %v551, %v673
  %v716 = vmul.f32 %v556, %v673
  %v717 = vmul.f32 %v561, %v673
  %v718 = vmul.f32 %v566, %v673
  %v719 = vmul.f32 %v571, %v673
  %v720 = vmul.f32 %v576, %v673
  %v721 = vmul.f32 %v581, %v673
  %v722 = vmul.f32 %v586, %v673
  %v723 = vmul.f32 %v591, %v673
  %v724 = vmul.f32 %v596, %v673
  %v725 = vmul.f32 %v601, %v673
  %v726 = vmul.f32 %v606, %v673
  %v727 = vmul.f32 %v611, %v673
  %v728 = vmul.f32 %v616, %v673
  %v729 = vmul.f32 %v621, %v673
  %v730 = vmul.f32 %v626, %v673
  %v731 = vmul.f32 %v631, %v673
  %v732 = vmul.f32 %v636, %v673
  %v733 = vmul.f32 %v641, %v673
  %v734 = vmul.f32 %v646, %v673
  %v735 = vmul.f32 %v651, %v673
  %v736 = vmul.f32 %v656, %v673
  %v737 = vmul.f32 %v661, %v673
  %v738 = vmul.f32 %v666, %v673
  %v740 = vlaneseq
  %v741 = vshrl.u32 %v740, 7
  %v742 = vsub.s32 0, %v741
  %v743 = vrot.slane %v22, %v742
  %v745 = vadd.f32 %v675, %v743
  %v746 = vadd.f32 %v676, %v743
  %v747 = vadd.f32 %v677, %v743
  %v748 = vadd.f32 %v678, %v743
  %v749 = vadd.f32 %v679, %v743
  %v750 = vadd.f32 %v680, %v743
  %v751 = vadd.f32 %v681, %v743
  %v752 = vadd.f32 %v682, %v743
  %v753 = vadd.f32 %v683, %v743
  %v754 = vadd.f32 %v684, %v743
  %v755 = vadd.f32 %v685, %v743
  %v756 = vadd.f32 %v686, %v743
  %v757 = vadd.f32 %v687, %v743
  %v758 = vadd.f32 %v688, %v743
  %v759 = vadd.f32 %v689, %v743
  %v760 = vadd.f32 %v690, %v743
  %v761 = vadd.f32 %v691, %v743
  %v762 = vadd.f32 %v692, %v743
  %v763 = vadd.f32 %v693, %v743
  %v764 = vadd.f32 %v694, %v743
  %v765 = vadd.f32 %v695, %v743
  %v766 = vadd.f32 %v696, %v743
  %v767 = vadd.f32 %v697, %v743
  %v768 = vadd.f32 %v698, %v743
  %v769 = vadd.f32 %v699, %v743
  %v770 = vadd.f32 %v700, %v743
  %v771 = vadd.f32 %v701, %v743
  %v772 = vadd.f32 %v702, %v743
  %v773 = vadd.f32 %v703, %v743
  %v774 = vadd.f32 %v704, %v743
  %v775 = vadd.f32 %v705, %v743
  %v776 = vadd.f32 %v706, %v743
  %v777 = vadd.f32 %v707, %v743
  %v778 = vadd.f32 %v708, %v743
  %v779 = vadd.f32 %v709, %v743
  %v780 = vadd.f32 %v710, %v743
  %v781 = vadd.f32 %v711, %v743
  %v782 = vadd.f32 %v712, %v743
  %v783 = vadd.f32 %v713, %v743
  %v784 = vadd.f32 %v714, %v743
  %v785 = vadd.f32 %v715, %v743
  %v786 = vadd.f32 %v716, %v743
  %v787 = vadd.f32 %v717, %v743
  %v788 = vadd.f32 %v718, %v743
  %v789 = vadd.f32 %v719, %v743
  %v790 = vadd.f32 %v720, %v743
  %v791 = vadd.f32 %v721, %v743
  %v792 = vadd.f32 %v722, %v743
  %v793 = vadd.f32 %v723, %v743
  %v794 = vadd.f32 %v724, %v743
  %v795 = vadd.f32 %v725, %v743
  %v796 = vadd.f32 %v726, %v743
  %v797 = vadd.f32 %v727, %v743
  %v798 = vadd.f32 %v728, %v743
  %v799 = vadd.f32 %v729, %v743
  %v800 = vadd.f32 %v730, %v743
  %v801 = vadd.f32 %v731, %v743
  %v802 = vadd.f32 %v732, %v743
  %v803 = vadd.f32 %v733, %v743
  %v804 = vadd.f32 %v734, %v743
  %v805 = vadd.f32 %v735, %v743
  %v806 = vadd.f32 %v736, %v743
  %v807 = vadd.f32 %v737, %v743
  %v808 = vadd.f32 %v738, %v743
  %v809 = vmax.f32 %v745, 0.0
  %v810 = vmax.f32 %v746, 0.0
  %v811 = vmax.f32 %v747, 0.0
  %v812 = vmax.f32 %v748, 0.0
  %v813 = vmax.f32 %v749, 0.0
  %v814 = vmax.f32 %v750, 0.0
  %v815 = vmax.f32 %v751, 0.0
  %v816 = vmax.f32 %v752, 0.0
  %v817 = vmax.f32 %v753, 0.0
  %v818 = vmax.f32 %v754, 0.0
  %v819 = vmax.f32 %v755, 0.0
  %v820 = vmax.f32 %v756, 0.0
  %v821 = vmax.f32 %v757, 0.0
  %v822 = vmax.f32 %v758, 0.0
  %v823 = vmax.f32 %v759, 0.0
  %v824 = vmax.f32 %v760, 0.0
  %v825 = vmax.f32 %v761, 0.0
  %v826 = vmax.f32 %v762, 0.0
  %v827 = vmax.f32 %v763, 0.0
  %v828 = vmax.f32 %v764, 0.0
  %v829 = vmax.f32 %v765, 0.0
  %v830 = vmax.f32 %v766, 0.0
  %v831 = vmax.f32 %v767, 0.0
  %v832 = vmax.f32 %v768, 0.0
  %v833 = vmax.f32 %v769, 0.0
  %v834 = vmax.f32 %v770, 0.0
  %v835 = vmax.f32 %v771, 0.0
  %v836 = vmax.f32 %v772, 0.0
  %v837 = vmax.f32 %v773, 0.0
  %v838 = vmax.f32 %v774, 0.0
  %v839 = vmax.f32 %v775, 0.0
  %v840 = vmax.f32 %v776, 0.0
  %v841 = vmax.f32 %v777, 0.0
  %v842 = vmax.f32 %v778, 0.0
  %v843 = vmax.f32 %v779, 0.0
  %v844 = vmax.f32 %v780, 0.0
  %v845 = vmax.f32 %v781, 0.0
  %v846 = vmax.f32 %v782, 0.0
  %v847 = vmax.f32 %v783, 0.0
  %v848 = vmax.f32 %v784, 0.0
  %v849 = vmax.f32 %v785, 0.0
  %v850 = vmax.f32 %v786, 0.0
  %v851 = vmax.f32 %v787, 0.0
  %v852 = vmax.f32 %v788, 0.0
  %v853 = vmax.f32 %v789, 0.0
  %v854 = vmax.f32 %v790, 0.0
  %v855 = vmax.f32 %v791, 0.0
  %v856 = vmax.f32 %v792, 0.0
  %v857 = vmax.f32 %v793, 0.0
  %v858 = vmax.f32 %v794, 0.0
  %v859 = vmax.f32 %v795, 0.0
  %v860 = vmax.f32 %v796, 0.0
  %v861 = vmax.f32 %v797, 0.0
  %v862 = vmax.f32 %v798, 0.0
  %v863 = vmax.f32 %v799, 0.0
  %v864 = vmax.f32 %v800, 0.0
  %v865 = vmax.f32 %v801, 0.0
  %v866 = vmax.f32 %v802, 0.0
  %v867 = vmax.f32 %v803, 0.0
  %v868 = vmax.f32 %v804, 0.0
  %v869 = vmax.f32 %v805, 0.0
  %v870 = vmax.f32 %v806, 0.0
  %v871 = vmax.f32 %v807, 0.0
  %v872 = vmax.f32 %v808, 0.0
  %s873 = scalar_lea.vmem %s0, 512
  %v874 = vld [vmem:[%s873] sm:$0xff]
  %v875 = vld [vmem:[%s873 + $0x8] sm:$0xff]
  %v876 = vld [vmem:[%s873 + $0x10] sm:$0xff]
  %v877 = vld [vmem:[%s873 + $0x18] sm:$0xff]
  %v878 = vld [vmem:[%s873 + $0x20] sm:$0xff]
  %v879 = vld [vmem:[%s873 + $0x28] sm:$0xff]
  %v880 = vld [vmem:[%s873 + $0x30] sm:$0xff]
  %v881 = vld [vmem:[%s873 + $0x38] sm:$0xff]
  %v882 = vld [vmem:[%s873 + $0x40] sm:$0xff]
  %v883 = vld [vmem:[%s873 + $0x48] sm:$0xff]
  %v884 = vld [vmem:[%s873 + $0x50] sm:$0xff]
  %v885 = vld [vmem:[%s873 + $0x58] sm:$0xff]
  %v886 = vld [vmem:[%s873 + $0x60] sm:$0xff]
  %v887 = vld [vmem:[%s873 + $0x68] sm:$0xff]
  %v888 = vld [vmem:[%s873 + $0x70] sm:$0xff]
  %v889 = vld [vmem:[%s873 + $0x78] sm:$0xff]
  %v890 = vld [vmem:[%s873 + $0x80] sm:$0xff]
  %v891 = vld [vmem:[%s873 + $0x88] sm:$0xff]
  %v892 = vld [vmem:[%s873 + $0x90] sm:$0xff]
  %v893 = vld [vmem:[%s873 + $0x98] sm:$0xff]
  %v894 = vld [vmem:[%s873 + $0xa0] sm:$0xff]
  %v895 = vld [vmem:[%s873 + $0xa8] sm:$0xff]
  %v896 = vld [vmem:[%s873 + $0xb0] sm:$0xff]
  %v897 = vld [vmem:[%s873 + $0xb8] sm:$0xff]
  %v898 = vld [vmem:[%s873 + $0xc0] sm:$0xff]
  %v899 = vld [vmem:[%s873 + $0xc8] sm:$0xff]
  %v900 = vld [vmem:[%s873 + $0xd0] sm:$0xff]
  %v901 = vld [vmem:[%s873 + $0xd8] sm:$0xff]
  %v902 = vld [vmem:[%s873 + $0xe0] sm:$0xff]
  %v903 = vld [vmem:[%s873 + $0xe8] sm:$0xff]
  %v904 = vld [vmem:[%s873 + $0xf0] sm:$0xff]
  %v905 = vld [vmem:[%s873 + $0xf8] sm:$0xff]
  %v906 = vld [vmem:[%s873 + $0x100] sm:$0xff]
  %v907 = vld [vmem:[%s873 + $0x108] sm:$0xff]
  %v908 = vld [vmem:[%s873 + $0x110] sm:$0xff]
  %v909 = vld [vmem:[%s873 + $0x118] sm:$0xff]
  %v910 = vld [vmem:[%s873 + $0x120] sm:$0xff]
  %v911 = vld [vmem:[%s873 + $0x128] sm:$0xff]
  %v912 = vld [vmem:[%s873 + $0x130] sm:$0xff]
  %v913 = vld [vmem:[%s873 + $0x138] sm:$0xff]
  %v914 = vld [vmem:[%s873 + $0x140] sm:$0xff]
  %v915 = vld [vmem:[%s873 + $0x148] sm:$0xff]
  %v916 = vld [vmem:[%s873 + $0x150] sm:$0xff]
  %v917 = vld [vmem:[%s873 + $0x158] sm:$0xff]
  %v918 = vld [vmem:[%s873 + $0x160] sm:$0xff]
  %v919 = vld [vmem:[%s873 + $0x168] sm:$0xff]
  %v920 = vld [vmem:[%s873 + $0x170] sm:$0xff]
  %v921 = vld [vmem:[%s873 + $0x178] sm:$0xff]
  %v922 = vld [vmem:[%s873 + $0x180] sm:$0xff]
  %v923 = vld [vmem:[%s873 + $0x188] sm:$0xff]
  %v924 = vld [vmem:[%s873 + $0x190] sm:$0xff]
  %v925 = vld [vmem:[%s873 + $0x198] sm:$0xff]
  %v926 = vld [vmem:[%s873 + $0x1a0] sm:$0xff]
  %v927 = vld [vmem:[%s873 + $0x1a8] sm:$0xff]
  %v928 = vld [vmem:[%s873 + $0x1b0] sm:$0xff]
  %v929 = vld [vmem:[%s873 + $0x1b8] sm:$0xff]
  %v930 = vld [vmem:[%s873 + $0x1c0] sm:$0xff]
  %v931 = vld [vmem:[%s873 + $0x1c8] sm:$0xff]
  %v932 = vld [vmem:[%s873 + $0x1d0] sm:$0xff]
  %v933 = vld [vmem:[%s873 + $0x1d8] sm:$0xff]
  %v934 = vld [vmem:[%s873 + $0x1e0] sm:$0xff]
  %v935 = vld [vmem:[%s873 + $0x1e8] sm:$0xff]
  %v936 = vld [vmem:[%s873 + $0x1f0] sm:$0xff]
  %v937 = vld [vmem:[%s873 + $0x1f8] sm:$0xff]
  %v939 = vsel %vm87, %v874, 0
  %v942 = vsel %vm87, %v875, 0
  %v945 = vsel %vm87, %v876, 0
  %v948 = vsel %vm87, %v877, 0
  %v951 = vsel %vm87, %v878, 0
  %v954 = vsel %vm87, %v879, 0
  %v957 = vsel %vm87, %v880, 0
  %v960 = vsel %vm87, %v881, 0
  %v963 = vsel %vm87, %v882, 0
  %v966 = vsel %vm87, %v883, 0
  %v969 = vsel %vm87, %v884, 0
  %v972 = vsel %vm87, %v885, 0
  %v975 = vsel %vm87, %v886, 0
  %v978 = vsel %vm87, %v887, 0
  %v981 = vsel %vm87, %v888, 0
  %v984 = vsel %vm87, %v889, 0
  %v987 = vsel %vm87, %v890, 0
  %v990 = vsel %vm87, %v891, 0
  %v993 = vsel %vm87, %v892, 0
  %v996 = vsel %vm87, %v893, 0
  %v999 = vsel %vm87, %v894, 0
  %v1002 = vsel %vm87, %v895, 0
  %v1005 = vsel %vm87, %v896, 0
  %v1008 = vsel %vm87, %v897, 0
  %v1011 = vsel %vm87, %v898, 0
  %v1014 = vsel %vm87, %v899, 0
  %v1017 = vsel %vm87, %v900, 0
  %v1020 = vsel %vm87, %v901, 0
  %v1023 = vsel %vm87, %v902, 0
  %v1026 = vsel %vm87, %v903, 0
  %v1029 = vsel %vm87, %v904, 0
  %v1032 = vsel %vm87, %v905, 0
  %v1035 = vsel %vm87, %v906, 0
  %v1038 = vsel %vm87, %v907, 0
  %v1041 = vsel %vm87, %v908, 0
  %v1044 = vsel %vm87, %v909, 0
  %v1047 = vsel %vm87, %v910, 0
  %v1050 = vsel %vm87, %v911, 0
  %v1053 = vsel %vm87, %v912, 0
  %v1056 = vsel %vm87, %v913, 0
  %v1059 = vsel %vm87, %v914, 0
  %v1062 = vsel %vm87, %v915, 0
  %v1065 = vsel %vm87, %v916, 0
  %v1068 = vsel %vm87, %v917, 0
  %v1071 = vsel %vm87, %v918, 0
  %v1074 = vsel %vm87, %v919, 0
  %v1077 = vsel %vm87, %v920, 0
  %v1080 = vsel %vm87, %v921, 0
  %v1083 = vsel %vm87, %v922, 0
  %v1086 = vsel %vm87, %v923, 0
  %v1089 = vsel %vm87, %v924, 0
  %v1092 = vsel %vm87, %v925, 0
  %v1095 = vsel %vm87, %v926, 0
  %v1098 = vsel %vm87, %v927, 0
  %v1101 = vsel %vm87, %v928, 0
  %v1104 = vsel %vm87, %v929, 0
  %v1107 = vsel %vm87, %v930, 0
  %v1110 = vsel %vm87, %v931, 0
  %v1113 = vsel %vm87, %v932, 0
  %v1116 = vsel %vm87, %v933, 0
  %v1119 = vsel %vm87, %v934, 0
  %v1122 = vsel %vm87, %v935, 0
  %v1125 = vsel %vm87, %v936, 0
  %v1128 = vsel %vm87, %v937, 0
  %1130 = vmatprep.subr.mxu0 0.0
  %1131 = vmatpush1.msra.mxu0 %v17
  %1132 = vmatprep.subr.mxu0 0.0
  %1133 = vmatpush1.msra.mxu0 %v18
  %1134 = vmatprep.subr.mxu0 0.0
  %1135 = vmatpush1.msra.mxu0 %v19
  %1136 = vmatprep.subr.mxu0 0.0
  %1137 = vmatpush1.msra.mxu0 %v282
  %1138 = vmatprep.subr.mxu0 0.0
  %1139 = vmatpush1.msra.mxu0 0.0
  %1140 = vmatprep.subr.mxu0 0.0
  %1141 = vmatpush1.msra.mxu0 0.0
  %1142 = vmatprep.subr.mxu0 0.0
  %1143 = vmatpush1.msra.mxu0 0.0
  %1144 = vmatprep.subr.mxu0 0.0
  %1145 = vmatpush1.msra.mxu0 0.0
  %1146 = vmatprep.subr.mxu0 0.0
  %1147 = vmatpush1.msra.mxu0 0.0
  %1148 = vmatprep.subr.mxu0 0.0
  %1149 = vmatpush1.msra.mxu0 0.0
  %1150 = vmatprep.subr.mxu0 0.0
  %1151 = vmatpush1.msra.mxu0 0.0
  %1152 = vmatprep.subr.mxu0 0.0
  %1153 = vmatpush1.msra.mxu0 0.0
  %1154 = vmatprep.subr.mxu0 0.0
  %1155 = vmatpush1.msra.mxu0 0.0
  %1156 = vmatprep.subr.mxu0 0.0
  %1157 = vmatpush1.msra.mxu0 0.0
  %1158 = vmatprep.subr.mxu0 0.0
  %1159 = vmatpush1.msra.mxu0 0.0
  %1160 = vmatprep.subr.mxu0 0.0
  %1161 = vmatpush1.msra.mxu0 0.0
  %1162 = vmatprep.subr.mxu0 0.0
  %1163 = vmatpush1.msra.mxu0 0.0
  %1164 = vmatprep.subr.mxu0 0.0
  %1165 = vmatpush1.msra.mxu0 0.0
  %1166 = vmatprep.subr.mxu0 0.0
  %1167 = vmatpush1.msra.mxu0 0.0
  %1168 = vmatprep.subr.mxu0 0.0
  %1169 = vmatpush1.msra.mxu0 0.0
  %1170 = vmatprep.subr.mxu0 0.0
  %1171 = vmatpush1.msra.mxu0 0.0
  %1172 = vmatprep.subr.mxu0 0.0
  %1173 = vmatpush1.msra.mxu0 0.0
  %1174 = vmatprep.subr.mxu0 0.0
  %1175 = vmatpush1.msra.mxu0 0.0
  %1176 = vmatprep.subr.mxu0 0.0
  %1177 = vmatpush1.msra.mxu0 0.0
  %1178 = vmatprep.subr.mxu0 0.0
  %1179 = vmatpush1.msra.mxu0 0.0
  %1180 = vmatprep.subr.mxu0 0.0
  %1181 = vmatpush1.msra.mxu0 0.0
  %1182 = vmatprep.subr.mxu0 0.0
  %1183 = vmatpush1.msra.mxu0 0.0
  %1184 = vmatprep.subr.mxu0 0.0
  %1185 = vmatpush1.msra.mxu0 0.0
  %1186 = vmatprep.subr.mxu0 0.0
  %1187 = vmatpush1.msra.mxu0 0.0
  %1188 = vmatprep.subr.mxu0 0.0
  %1189 = vmatpush1.msra.mxu0 0.0
  %1190 = vmatprep.subr.mxu0 0.0
  %1191 = vmatpush1.msra.mxu0 0.0
  %1192 = vmatprep.subr.mxu0 0.0
  %1193 = vmatpush1.msra.mxu0 0.0
  %1194 = vmatprep.mubr.f32.mxu0 0.0
  %1195 = vmatmul.mubr.f32.gmra.mrb[0].mxu0 %v939
  %v1196 = vpop.f32.mrb[0].mxu0
  %v1197 = vadd.f32 0.0, %v1196
  %v1198 = vpop.f32.mrb[0].mxu0
  %1199 = vmatprep.mubr.f32.mxu0 0.0
  %1200 = vmatmul.mubr.f32.gmra.mrb[0].mxu0 %v942
  %v1201 = vpop.f32.mrb[0].mxu0
  %v1202 = vadd.f32 0.0, %v1201
  %v1203 = vpop.f32.mrb[0].mxu0
  %1204 = vmatprep.mubr.f32.mxu0 0.0
  %1205 = vmatmul.mubr.f32.gmra.mrb[0].mxu0 %v945
  %v1206 = vpop.f32.mrb[0].mxu0
  %v1207 = vadd.f32 0.0, %v1206
  %v1208 = vpop.f32.mrb[0].mxu0
  %1209 = vmatprep.mubr.f32.mxu0 0.0
  %1210 = vmatmul.mubr.f32.gmra.mrb[0].mxu0 %v948
  %v1211 = vpop.f32.mrb[0].mxu0
  %v1212 = vadd.f32 0.0, %v1211
  %v1213 = vpop.f32.mrb[0].mxu0
  %1214 = vmatprep.mubr.f32.mxu0 0.0
  %1215 = vmatmul.mubr.f32.gmra.mrb[0].mxu0 %v951
  %v1216 = vpop.f32.mrb[0].mxu0
  %v1217 = vadd.f32 0.0, %v1216
  %v1218 = vpop.f32.mrb[0].mxu0
  %1219 = vmatprep.mubr.f32.mxu0 0.0
  %1220 = vmatmul.mubr.f32.gmra.mrb[0].mxu0 %v954
  %v1221 = vpop.f32.mrb[0].mxu0
  %v1222 = vadd.f32 0.0, %v1221
  %v1223 = vpop.f32.mrb[0].mxu0
  %1224 = vmatprep.mubr.f32.mxu0 0.0
  %1225 = vmatmul.mubr.f32.gmra.mrb[0].mxu0 %v957
  %v1226 = vpop.f32.mrb[0].mxu0
  %v1227 = vadd.f32 0.0, %v1226
  %v1228 = vpop.f32.mrb[0].mxu0
  %1229 = vmatprep.mubr.f32.mxu0 0.0
  %1230 = vmatmul.mubr.f32.gmra.mrb[0].mxu0 %v960
  %v1231 = vpop.f32.mrb[0].mxu0
  %v1232 = vadd.f32 0.0, %v1231
  %v1233 = vpop.f32.mrb[0].mxu0
  %1234 = vmatprep.mubr.f32.mxu0 0.0
  %1235 = vmatmul.mubr.f32.gmra.mrb[0].mxu0 %v963
  %v1236 = vpop.f32.mrb[0].mxu0
  %v1237 = vadd.f32 0.0, %v1236
  %v1238 = vpop.f32.mrb[0].mxu0
  %1239 = vmatprep.mubr.f32.mxu0 0.0
  %1240 = vmatmul.mubr.f32.gmra.mrb[0].mxu0 %v966
  %v1241 = vpop.f32.mrb[0].mxu0
  %v1242 = vadd.f32 0.0, %v1241
  %v1243 = vpop.f32.mrb[0].mxu0
  %1244 = vmatprep.mubr.f32.mxu0 0.0
  %1245 = vmatmul.mubr.f32.gmra.mrb[0].mxu0 %v969
  %v1246 = vpop.f32.mrb[0].mxu0
  %v1247 = vadd.f32 0.0, %v1246
  %v1248 = vpop.f32.mrb[0].mxu0
  %1249 = vmatprep.mubr.f32.mxu0 0.0
  %1250 = vmatmul.mubr.f32.gmra.mrb[0].mxu0 %v972
  %v1251 = vpop.f32.mrb[0].mxu0
  %v1252 = vadd.f32 0.0, %v1251
  %v1253 = vpop.f32.mrb[0].mxu0
  %1254 = vmatprep.mubr.f32.mxu0 0.0
  %1255 = vmatmul.mubr.f32.gmra.mrb[0].mxu0 %v975
  %v1256 = vpop.f32.mrb[0].mxu0
  %v1257 = vadd.f32 0.0, %v1256
  %v1258 = vpop.f32.mrb[0].mxu0
  %1259 = vmatprep.mubr.f32.mxu0 0.0
  %1260 = vmatmul.mubr.f32.gmra.mrb[0].mxu0 %v978
  %v1261 = vpop.f32.mrb[0].mxu0
  %v1262 = vadd.f32 0.0, %v1261
  %v1263 = vpop.f32.mrb[0].mxu0
  %1264 = vmatprep.mubr.f32.mxu0 0.0
  %1265 = vmatmul.mubr.f32.gmra.mrb[0].mxu0 %v981
  %v1266 = vpop.f32.mrb[0].mxu0
  %v1267 = vadd.f32 0.0, %v1266
  %v1268 = vpop.f32.mrb[0].mxu0
  %1269 = vmatprep.mubr.f32.mxu0 0.0
  %1270 = vmatmul.mubr.f32.gmra.mrb[0].mxu0 %v984
  %v1271 = vpop.f32.mrb[0].mxu0
  %v1272 = vadd.f32 0.0, %v1271
  %v1273 = vpop.f32.mrb[0].mxu0
  %1274 = vmatprep.mubr.f32.mxu0 0.0
  %1275 = vmatmul.mubr.f32.gmra.mrb[0].mxu0 %v987
  %v1276 = vpop.f32.mrb[0].mxu0
  %v1277 = vadd.f32 0.0, %v1276
  %v1278 = vpop.f32.mrb[0].mxu0
  %1279 = vmatprep.mubr.f32.mxu0 0.0
  %1280 = vmatmul.mubr.f32.gmra.mrb[0].mxu0 %v990
  %v1281 = vpop.f32.mrb[0].mxu0
  %v1282 = vadd.f32 0.0, %v1281
  %v1283 = vpop.f32.mrb[0].mxu0
  %1284 = vmatprep.mubr.f32.mxu0 0.0
  %1285 = vmatmul.mubr.f32.gmra.mrb[0].mxu0 %v993
  %v1286 = vpop.f32.mrb[0].mxu0
  %v1287 = vadd.f32 0.0, %v1286
  %v1288 = vpop.f32.mrb[0].mxu0
  %1289 = vmatprep.mubr.f32.mxu0 0.0
  %1290 = vmatmul.mubr.f32.gmra.mrb[0].mxu0 %v996
  %v1291 = vpop.f32.mrb[0].mxu0
  %v1292 = vadd.f32 0.0, %v1291
  %v1293 = vpop.f32.mrb[0].mxu0
  %1294 = vmatprep.mubr.f32.mxu0 0.0
  %1295 = vmatmul.mubr.f32.gmra.mrb[0].mxu0 %v999
  %v1296 = vpop.f32.mrb[0].mxu0
  %v1297 = vadd.f32 0.0, %v1296
  %v1298 = vpop.f32.mrb[0].mxu0
  %1299 = vmatprep.mubr.f32.mxu0 0.0
  %1300 = vmatmul.mubr.f32.gmra.mrb[0].mxu0 %v1002
  %v1301 = vpop.f32.mrb[0].mxu0
  %v1302 = vadd.f32 0.0, %v1301
  %v1303 = vpop.f32.mrb[0].mxu0
  %1304 = vmatprep.mubr.f32.mxu0 0.0
  %1305 = vmatmul.mubr.f32.gmra.mrb[0].mxu0 %v1005
  %v1306 = vpop.f32.mrb[0].mxu0
  %v1307 = vadd.f32 0.0, %v1306
  %v1308 = vpop.f32.mrb[0].mxu0
  %1309 = vmatprep.mubr.f32.mxu0 0.0
  %1310 = vmatmul.mubr.f32.gmra.mrb[0].mxu0 %v1008
  %v1311 = vpop.f32.mrb[0].mxu0
  %v1312 = vadd.f32 0.0, %v1311
  %v1313 = vpop.f32.mrb[0].mxu0
  %1314 = vmatprep.mubr.f32.mxu0 0.0
  %1315 = vmatmul.mubr.f32.gmra.mrb[0].mxu0 %v1011
  %v1316 = vpop.f32.mrb[0].mxu0
  %v1317 = vadd.f32 0.0, %v1316
  %v1318 = vpop.f32.mrb[0].mxu0
  %1319 = vmatprep.mubr.f32.mxu0 0.0
  %1320 = vmatmul.mubr.f32.gmra.mrb[0].mxu0 %v1014
  %v1321 = vpop.f32.mrb[0].mxu0
  %v1322 = vadd.f32 0.0, %v1321
  %v1323 = vpop.f32.mrb[0].mxu0
  %1324 = vmatprep.mubr.f32.mxu0 0.0
  %1325 = vmatmul.mubr.f32.gmra.mrb[0].mxu0 %v1017
  %v1326 = vpop.f32.mrb[0].mxu0
  %v1327 = vadd.f32 0.0, %v1326
  %v1328 = vpop.f32.mrb[0].mxu0
  %1329 = vmatprep.mubr.f32.mxu0 0.0
  %1330 = vmatmul.mubr.f32.gmra.mrb[0].mxu0 %v1020
  %v1331 = vpop.f32.mrb[0].mxu0
  %v1332 = vadd.f32 0.0, %v1331
  %v1333 = vpop.f32.mrb[0].mxu0
  %1334 = vmatprep.mubr.f32.mxu0 0.0
  %1335 = vmatmul.mubr.f32.gmra.mrb[0].mxu0 %v1023
  %v1336 = vpop.f32.mrb[0].mxu0
  %v1337 = vadd.f32 0.0, %v1336
  %v1338 = vpop.f32.mrb[0].mxu0
  %1339 = vmatprep.mubr.f32.mxu0 0.0
  %1340 = vmatmul.mubr.f32.gmra.mrb[0].mxu0 %v1026
  %v1341 = vpop.f32.mrb[0].mxu0
  %v1342 = vadd.f32 0.0, %v1341
  %v1343 = vpop.f32.mrb[0].mxu0
  %1344 = vmatprep.mubr.f32.mxu0 0.0
  %1345 = vmatmul.mubr.f32.gmra.mrb[0].mxu0 %v1029
  %v1346 = vpop.f32.mrb[0].mxu0
  %v1347 = vadd.f32 0.0, %v1346
  %v1348 = vpop.f32.mrb[0].mxu0
  %1349 = vmatprep.mubr.f32.mxu0 0.0
  %1350 = vmatmul.mubr.f32.gmra.mrb[0].mxu0 %v1032
  %v1351 = vpop.f32.mrb[0].mxu0
  %v1352 = vadd.f32 0.0, %v1351
  %v1353 = vpop.f32.mrb[0].mxu0
  %1354 = vmatprep.mubr.f32.mxu0 0.0
  %1355 = vmatmul.mubr.f32.gmra.mrb[0].mxu0 %v1035
  %v1356 = vpop.f32.mrb[0].mxu0
  %v1357 = vadd.f32 0.0, %v1356
  %v1358 = vpop.f32.mrb[0].mxu0
  %1359 = vmatprep.mubr.f32.mxu0 0.0
  %1360 = vmatmul.mubr.f32.gmra.mrb[0].mxu0 %v1038
  %v1361 = vpop.f32.mrb[0].mxu0
  %v1362 = vadd.f32 0.0, %v1361
  %v1363 = vpop.f32.mrb[0].mxu0
  %1364 = vmatprep.mubr.f32.mxu0 0.0
  %1365 = vmatmul.mubr.f32.gmra.mrb[0].mxu0 %v1041
  %v1366 = vpop.f32.mrb[0].mxu0
  %v1367 = vadd.f32 0.0, %v1366
  %v1368 = vpop.f32.mrb[0].mxu0
  %1369 = vmatprep.mubr.f32.mxu0 0.0
  %1370 = vmatmul.mubr.f32.gmra.mrb[0].mxu0 %v1044
  %v1371 = vpop.f32.mrb[0].mxu0
  %v1372 = vadd.f32 0.0, %v1371
  %v1373 = vpop.f32.mrb[0].mxu0
  %1374 = vmatprep.mubr.f32.mxu0 0.0
  %1375 = vmatmul.mubr.f32.gmra.mrb[0].mxu0 %v1047
  %v1376 = vpop.f32.mrb[0].mxu0
  %v1377 = vadd.f32 0.0, %v1376
  %v1378 = vpop.f32.mrb[0].mxu0
  %1379 = vmatprep.mubr.f32.mxu0 0.0
  %1380 = vmatmul.mubr.f32.gmra.mrb[0].mxu0 %v1050
  %v1381 = vpop.f32.mrb[0].mxu0
  %v1382 = vadd.f32 0.0, %v1381
  %v1383 = vpop.f32.mrb[0].mxu0
  %1384 = vmatprep.mubr.f32.mxu0 0.0
  %1385 = vmatmul.mubr.f32.gmra.mrb[0].mxu0 %v1053
  %v1386 = vpop.f32.mrb[0].mxu0
  %v1387 = vadd.f32 0.0, %v1386
  %v1388 = vpop.f32.mrb[0].mxu0
  %1389 = vmatprep.mubr.f32.mxu0 0.0
  %1390 = vmatmul.mubr.f32.gmra.mrb[0].mxu0 %v1056
  %v1391 = vpop.f32.mrb[0].mxu0
  %v1392 = vadd.f32 0.0, %v1391
  %v1393 = vpop.f32.mrb[0].mxu0
  %1394 = vmatprep.mubr.f32.mxu0 0.0
  %1395 = vmatmul.mubr.f32.gmra.mrb[0].mxu0 %v1059
  %v1396 = vpop.f32.mrb[0].mxu0
  %v1397 = vadd.f32 0.0, %v1396
  %v1398 = vpop.f32.mrb[0].mxu0
  %1399 = vmatprep.mubr.f32.mxu0 0.0
  %1400 = vmatmul.mubr.f32.gmra.mrb[0].mxu0 %v1062
  %v1401 = vpop.f32.mrb[0].mxu0
  %v1402 = vadd.f32 0.0, %v1401
  %v1403 = vpop.f32.mrb[0].mxu0
  %1404 = vmatprep.mubr.f32.mxu0 0.0
  %1405 = vmatmul.mubr.f32.gmra.mrb[0].mxu0 %v1065
  %v1406 = vpop.f32.mrb[0].mxu0
  %v1407 = vadd.f32 0.0, %v1406
  %v1408 = vpop.f32.mrb[0].mxu0
  %1409 = vmatprep.mubr.f32.mxu0 0.0
  %1410 = vmatmul.mubr.f32.gmra.mrb[0].mxu0 %v1068
  %v1411 = vpop.f32.mrb[0].mxu0
  %v1412 = vadd.f32 0.0, %v1411
  %v1413 = vpop.f32.mrb[0].mxu0
  %1414 = vmatprep.mubr.f32.mxu0 0.0
  %1415 = vmatmul.mubr.f32.gmra.mrb[0].mxu0 %v1071
  %v1416 = vpop.f32.mrb[0].mxu0
  %v1417 = vadd.f32 0.0, %v1416
  %v1418 = vpop.f32.mrb[0].mxu0
  %1419 = vmatprep.mubr.f32.mxu0 0.0
  %1420 = vmatmul.mubr.f32.gmra.mrb[0].mxu0 %v1074
  %v1421 = vpop.f32.mrb[0].mxu0
  %v1422 = vadd.f32 0.0, %v1421
  %v1423 = vpop.f32.mrb[0].mxu0
  %1424 = vmatprep.mubr.f32.mxu0 0.0
  %1425 = vmatmul.mubr.f32.gmra.mrb[0].mxu0 %v1077
  %v1426 = vpop.f32.mrb[0].mxu0
  %v1427 = vadd.f32 0.0, %v1426
  %v1428 = vpop.f32.mrb[0].mxu0
  %1429 = vmatprep.mubr.f32.mxu0 0.0
  %1430 = vmatmul.mubr.f32.gmra.mrb[0].mxu0 %v1080
  %v1431 = vpop.f32.mrb[0].mxu0
  %v1432 = vadd.f32 0.0, %v1431
  %v1433 = vpop.f32.mrb[0].mxu0
  %1434 = vmatprep.mubr.f32.mxu0 0.0
  %1435 = vmatmul.mubr.f32.gmra.mrb[0].mxu0 %v1083
  %v1436 = vpop.f32.mrb[0].mxu0
  %v1437 = vadd.f32 0.0, %v1436
  %v1438 = vpop.f32.mrb[0].mxu0
  %1439 = vmatprep.mubr.f32.mxu0 0.0
  %1440 = vmatmul.mubr.f32.gmra.mrb[0].mxu0 %v1086
  %v1441 = vpop.f32.mrb[0].mxu0
  %v1442 = vadd.f32 0.0, %v1441
  %v1443 = vpop.f32.mrb[0].mxu0
  %1444 = vmatprep.mubr.f32.mxu0 0.0
  %1445 = vmatmul.mubr.f32.gmra.mrb[0].mxu0 %v1089
  %v1446 = vpop.f32.mrb[0].mxu0
  %v1447 = vadd.f32 0.0, %v1446
  %v1448 = vpop.f32.mrb[0].mxu0
  %1449 = vmatprep.mubr.f32.mxu0 0.0
  %1450 = vmatmul.mubr.f32.gmra.mrb[0].mxu0 %v1092
  %v1451 = vpop.f32.mrb[0].mxu0
  %v1452 = vadd.f32 0.0, %v1451
  %v1453 = vpop.f32.mrb[0].mxu0
  %1454 = vmatprep.mubr.f32.mxu0 0.0
  %1455 = vmatmul.mubr.f32.gmra.mrb[0].mxu0 %v1095
  %v1456 = vpop.f32.mrb[0].mxu0
  %v1457 = vadd.f32 0.0, %v1456
  %v1458 = vpop.f32.mrb[0].mxu0
  %1459 = vmatprep.mubr.f32.mxu0 0.0
  %1460 = vmatmul.mubr.f32.gmra.mrb[0].mxu0 %v1098
  %v1461 = vpop.f32.mrb[0].mxu0
  %v1462 = vadd.f32 0.0, %v1461
  %v1463 = vpop.f32.mrb[0].mxu0
  %1464 = vmatprep.mubr.f32.mxu0 0.0
  %1465 = vmatmul.mubr.f32.gmra.mrb[0].mxu0 %v1101
  %v1466 = vpop.f32.mrb[0].mxu0
  %v1467 = vadd.f32 0.0, %v1466
  %v1468 = vpop.f32.mrb[0].mxu0
  %1469 = vmatprep.mubr.f32.mxu0 0.0
  %1470 = vmatmul.mubr.f32.gmra.mrb[0].mxu0 %v1104
  %v1471 = vpop.f32.mrb[0].mxu0
  %v1472 = vadd.f32 0.0, %v1471
  %v1473 = vpop.f32.mrb[0].mxu0
  %1474 = vmatprep.mubr.f32.mxu0 0.0
  %1475 = vmatmul.mubr.f32.gmra.mrb[0].mxu0 %v1107
  %v1476 = vpop.f32.mrb[0].mxu0
  %v1477 = vadd.f32 0.0, %v1476
  %v1478 = vpop.f32.mrb[0].mxu0
  %1479 = vmatprep.mubr.f32.mxu0 0.0
  %1480 = vmatmul.mubr.f32.gmra.mrb[0].mxu0 %v1110
  %v1481 = vpop.f32.mrb[0].mxu0
  %v1482 = vadd.f32 0.0, %v1481
  %v1483 = vpop.f32.mrb[0].mxu0
  %1484 = vmatprep.mubr.f32.mxu0 0.0
  %1485 = vmatmul.mubr.f32.gmra.mrb[0].mxu0 %v1113
  %v1486 = vpop.f32.mrb[0].mxu0
  %v1487 = vadd.f32 0.0, %v1486
  %v1488 = vpop.f32.mrb[0].mxu0
  %1489 = vmatprep.mubr.f32.mxu0 0.0
  %1490 = vmatmul.mubr.f32.gmra.mrb[0].mxu0 %v1116
  %v1491 = vpop.f32.mrb[0].mxu0
  %v1492 = vadd.f32 0.0, %v1491
  %v1493 = vpop.f32.mrb[0].mxu0
  %1494 = vmatprep.mubr.f32.mxu0 0.0
  %1495 = vmatmul.mubr.f32.gmra.mrb[0].mxu0 %v1119
  %v1496 = vpop.f32.mrb[0].mxu0
  %v1497 = vadd.f32 0.0, %v1496
  %v1498 = vpop.f32.mrb[0].mxu0
  %1499 = vmatprep.mubr.f32.mxu0 0.0
  %1500 = vmatmul.mubr.f32.gmra.mrb[0].mxu0 %v1122
  %v1501 = vpop.f32.mrb[0].mxu0
  %v1502 = vadd.f32 0.0, %v1501
  %v1503 = vpop.f32.mrb[0].mxu0
  %1504 = vmatprep.mubr.f32.mxu0 0.0
  %1505 = vmatmul.mubr.f32.gmra.mrb[0].mxu0 %v1125
  %v1506 = vpop.f32.mrb[0].mxu0
  %v1507 = vadd.f32 0.0, %v1506
  %v1508 = vpop.f32.mrb[0].mxu0
  %1509 = vmatprep.mubr.f32.mxu0 0.0
  %1510 = vmatmul.mubr.f32.gmra.mrb[0].mxu0 %v1128
  %v1511 = vpop.f32.mrb[0].mxu0
  %v1512 = vadd.f32 0.0, %v1511
  %v1513 = vpop.f32.mrb[0].mxu0
  %1514 = vdwg.mxu0
  %v1515 = vmul.f32 %v1197, %v673
  %v1516 = vmul.f32 %v1202, %v673
  %v1517 = vmul.f32 %v1207, %v673
  %v1518 = vmul.f32 %v1212, %v673
  %v1519 = vmul.f32 %v1217, %v673
  %v1520 = vmul.f32 %v1222, %v673
  %v1521 = vmul.f32 %v1227, %v673
  %v1522 = vmul.f32 %v1232, %v673
  %v1523 = vmul.f32 %v1237, %v673
  %v1524 = vmul.f32 %v1242, %v673
  %v1525 = vmul.f32 %v1247, %v673
  %v1526 = vmul.f32 %v1252, %v673
  %v1527 = vmul.f32 %v1257, %v673
  %v1528 = vmul.f32 %v1262, %v673
  %v1529 = vmul.f32 %v1267, %v673
  %v1530 = vmul.f32 %v1272, %v673
  %v1531 = vmul.f32 %v1277, %v673
  %v1532 = vmul.f32 %v1282, %v673
  %v1533 = vmul.f32 %v1287, %v673
  %v1534 = vmul.f32 %v1292, %v673
  %v1535 = vmul.f32 %v1297, %v673
  %v1536 = vmul.f32 %v1302, %v673
  %v1537 = vmul.f32 %v1307, %v673
  %v1538 = vmul.f32 %v1312, %v673
  %v1539 = vmul.f32 %v1317, %v673
  %v1540 = vmul.f32 %v1322, %v673
  %v1541 = vmul.f32 %v1327, %v673
  %v1542 = vmul.f32 %v1332, %v673
  %v1543 = vmul.f32 %v1337, %v673
  %v1544 = vmul.f32 %v1342, %v673
  %v1545 = vmul.f32 %v1347, %v673
  %v1546 = vmul.f32 %v1352, %v673
  %v1547 = vmul.f32 %v1357, %v673
  %v1548 = vmul.f32 %v1362, %v673
  %v1549 = vmul.f32 %v1367, %v673
  %v1550 = vmul.f32 %v1372, %v673
  %v1551 = vmul.f32 %v1377, %v673
  %v1552 = vmul.f32 %v1382, %v673
  %v1553 = vmul.f32 %v1387, %v673
  %v1554 = vmul.f32 %v1392, %v673
  %v1555 = vmul.f32 %v1397, %v673
  %v1556 = vmul.f32 %v1402, %v673
  %v1557 = vmul.f32 %v1407, %v673
  %v1558 = vmul.f32 %v1412, %v673
  %v1559 = vmul.f32 %v1417, %v673
  %v1560 = vmul.f32 %v1422, %v673
  %v1561 = vmul.f32 %v1427, %v673
  %v1562 = vmul.f32 %v1432, %v673
  %v1563 = vmul.f32 %v1437, %v673
  %v1564 = vmul.f32 %v1442, %v673
  %v1565 = vmul.f32 %v1447, %v673
  %v1566 = vmul.f32 %v1452, %v673
  %v1567 = vmul.f32 %v1457, %v673
  %v1568 = vmul.f32 %v1462, %v673
  %v1569 = vmul.f32 %v1467, %v673
  %v1570 = vmul.f32 %v1472, %v673
  %v1571 = vmul.f32 %v1477, %v673
  %v1572 = vmul.f32 %v1482, %v673
  %v1573 = vmul.f32 %v1487, %v673
  %v1574 = vmul.f32 %v1492, %v673
  %v1575 = vmul.f32 %v1497, %v673
  %v1576 = vmul.f32 %v1502, %v673
  %v1577 = vmul.f32 %v1507, %v673
  %v1578 = vmul.f32 %v1512, %v673
  %v1579 = vadd.f32 %v1515, %v743
  %v1580 = vadd.f32 %v1516, %v743
  %v1581 = vadd.f32 %v1517, %v743
  %v1582 = vadd.f32 %v1518, %v743
  %v1583 = vadd.f32 %v1519, %v743
  %v1584 = vadd.f32 %v1520, %v743
  %v1585 = vadd.f32 %v1521, %v743
  %v1586 = vadd.f32 %v1522, %v743
  %v1587 = vadd.f32 %v1523, %v743
  %v1588 = vadd.f32 %v1524, %v743
  %v1589 = vadd.f32 %v1525, %v743
  %v1590 = vadd.f32 %v1526, %v743
  %v1591 = vadd.f32 %v1527, %v743
  %v1592 = vadd.f32 %v1528, %v743
  %v1593 = vadd.f32 %v1529, %v743
  %v1594 = vadd.f32 %v1530, %v743
  %v1595 = vadd.f32 %v1531, %v743
  %v1596 = vadd.f32 %v1532, %v743
  %v1597 = vadd.f32 %v1533, %v743
  %v1598 = vadd.f32 %v1534, %v743
  %v1599 = vadd.f32 %v1535, %v743
  %v1600 = vadd.f32 %v1536, %v743
  %v1601 = vadd.f32 %v1537, %v743
  %v1602 = vadd.f32 %v1538, %v743
  %v1603 = vadd.f32 %v1539, %v743
  %v1604 = vadd.f32 %v1540, %v743
  %v1605 = vadd.f32 %v1541, %v743
  %v1606 = vadd.f32 %v1542, %v743
  %v1607 = vadd.f32 %v1543, %v743
  %v1608 = vadd.f32 %v1544, %v743
  %v1609 = vadd.f32 %v1545, %v743
  %v1610 = vadd.f32 %v1546, %v743
  %v1611 = vadd.f32 %v1547, %v743
  %v1612 = vadd.f32 %v1548, %v743
  %v1613 = vadd.f32 %v1549, %v743
  %v1614 = vadd.f32 %v1550, %v743
  %v1615 = vadd.f32 %v1551, %v743
  %v1616 = vadd.f32 %v1552, %v743
  %v1617 = vadd.f32 %v1553, %v743
  %v1618 = vadd.f32 %v1554, %v743
  %v1619 = vadd.f32 %v1555, %v743
  %v1620 = vadd.f32 %v1556, %v743
  %v1621 = vadd.f32 %v1557, %v743
  %v1622 = vadd.f32 %v1558, %v743
  %v1623 = vadd.f32 %v1559, %v743
  %v1624 = vadd.f32 %v1560, %v743
  %v1625 = vadd.f32 %v1561, %v743
  %v1626 = vadd.f32 %v1562, %v743
  %v1627 = vadd.f32 %v1563, %v743
  %v1628 = vadd.f32 %v1564, %v743
  %v1629 = vadd.f32 %v1565, %v743
  %v1630 = vadd.f32 %v1566, %v743
  %v1631 = vadd.f32 %v1567, %v743
  %v1632 = vadd.f32 %v1568, %v743
  %v1633 = vadd.f32 %v1569, %v743
  %v1634 = vadd.f32 %v1570, %v743
  %v1635 = vadd.f32 %v1571, %v743
  %v1636 = vadd.f32 %v1572, %v743
  %v1637 = vadd.f32 %v1573, %v743
  %v1638 = vadd.f32 %v1574, %v743
  %v1639 = vadd.f32 %v1575, %v743
  %v1640 = vadd.f32 %v1576, %v743
  %v1641 = vadd.f32 %v1577, %v743
  %v1642 = vadd.f32 %v1578, %v743
  %v1643 = vmax.f32 %v1579, 0.0
  %v1644 = vmax.f32 %v1580, 0.0
  %v1645 = vmax.f32 %v1581, 0.0
  %v1646 = vmax.f32 %v1582, 0.0
  %v1647 = vmax.f32 %v1583, 0.0
  %v1648 = vmax.f32 %v1584, 0.0
  %v1649 = vmax.f32 %v1585, 0.0
  %v1650 = vmax.f32 %v1586, 0.0
  %v1651 = vmax.f32 %v1587, 0.0
  %v1652 = vmax.f32 %v1588, 0.0
  %v1653 = vmax.f32 %v1589, 0.0
  %v1654 = vmax.f32 %v1590, 0.0
  %v1655 = vmax.f32 %v1591, 0.0
  %v1656 = vmax.f32 %v1592, 0.0
  %v1657 = vmax.f32 %v1593, 0.0
  %v1658 = vmax.f32 %v1594, 0.0
  %v1659 = vmax.f32 %v1595, 0.0
  %v1660 = vmax.f32 %v1596, 0.0
  %v1661 = vmax.f32 %v1597, 0.0
  %v1662 = vmax.f32 %v1598, 0.0
  %v1663 = vmax.f32 %v1599, 0.0
  %v1664 = vmax.f32 %v1600, 0.0
  %v1665 = vmax.f32 %v1601, 0.0
  %v1666 = vmax.f32 %v1602, 0.0
  %v1667 = vmax.f32 %v1603, 0.0
  %v1668 = vmax.f32 %v1604, 0.0
  %v1669 = vmax.f32 %v1605, 0.0
  %v1670 = vmax.f32 %v1606, 0.0
  %v1671 = vmax.f32 %v1607, 0.0
  %v1672 = vmax.f32 %v1608, 0.0
  %v1673 = vmax.f32 %v1609, 0.0
  %v1674 = vmax.f32 %v1610, 0.0
  %v1675 = vmax.f32 %v1611, 0.0
  %v1676 = vmax.f32 %v1612, 0.0
  %v1677 = vmax.f32 %v1613, 0.0
  %v1678 = vmax.f32 %v1614, 0.0
  %v1679 = vmax.f32 %v1615, 0.0
  %v1680 = vmax.f32 %v1616, 0.0
  %v1681 = vmax.f32 %v1617, 0.0
  %v1682 = vmax.f32 %v1618, 0.0
  %v1683 = vmax.f32 %v1619, 0.0
  %v1684 = vmax.f32 %v1620, 0.0
  %v1685 = vmax.f32 %v1621, 0.0
  %v1686 = vmax.f32 %v1622, 0.0
  %v1687 = vmax.f32 %v1623, 0.0
  %v1688 = vmax.f32 %v1624, 0.0
  %v1689 = vmax.f32 %v1625, 0.0
  %v1690 = vmax.f32 %v1626, 0.0
  %v1691 = vmax.f32 %v1627, 0.0
  %v1692 = vmax.f32 %v1628, 0.0
  %v1693 = vmax.f32 %v1629, 0.0
  %v1694 = vmax.f32 %v1630, 0.0
  %v1695 = vmax.f32 %v1631, 0.0
  %v1696 = vmax.f32 %v1632, 0.0
  %v1697 = vmax.f32 %v1633, 0.0
  %v1698 = vmax.f32 %v1634, 0.0
  %v1699 = vmax.f32 %v1635, 0.0
  %v1700 = vmax.f32 %v1636, 0.0
  %v1701 = vmax.f32 %v1637, 0.0
  %v1702 = vmax.f32 %v1638, 0.0
  %v1703 = vmax.f32 %v1639, 0.0
  %v1704 = vmax.f32 %v1640, 0.0
  %v1705 = vmax.f32 %v1641, 0.0
  %v1706 = vmax.f32 %v1642, 0.0
  %v1707 = vmax.f32 %v809, %v1643
  %v1708 = vmax.f32 %v810, %v1644
  %v1709 = vmax.f32 %v811, %v1645
  %v1710 = vmax.f32 %v812, %v1646
  %v1711 = vmax.f32 %v813, %v1647
  %v1712 = vmax.f32 %v814, %v1648
  %v1713 = vmax.f32 %v815, %v1649
  %v1714 = vmax.f32 %v816, %v1650
  %v1715 = vmax.f32 %v817, %v1651
  %v1716 = vmax.f32 %v818, %v1652
  %v1717 = vmax.f32 %v819, %v1653
  %v1718 = vmax.f32 %v820, %v1654
  %v1719 = vmax.f32 %v821, %v1655
  %v1720 = vmax.f32 %v822, %v1656
  %v1721 = vmax.f32 %v823, %v1657
  %v1722 = vmax.f32 %v824, %v1658
  %v1723 = vmax.f32 %v825, %v1659
  %v1724 = vmax.f32 %v826, %v1660
  %v1725 = vmax.f32 %v827, %v1661
  %v1726 = vmax.f32 %v828, %v1662
  %v1727 = vmax.f32 %v829, %v1663
  %v1728 = vmax.f32 %v830, %v1664
  %v1729 = vmax.f32 %v831, %v1665
  %v1730 = vmax.f32 %v832, %v1666
  %v1731 = vmax.f32 %v833, %v1667
  %v1732 = vmax.f32 %v834, %v1668
  %v1733 = vmax.f32 %v835, %v1669
  %v1734 = vmax.f32 %v836, %v1670
  %v1735 = vmax.f32 %v837, %v1671
  %v1736 = vmax.f32 %v838, %v1672
  %v1737 = vmax.f32 %v839, %v1673
  %v1738 = vmax.f32 %v840, %v1674
  %v1739 = vmax.f32 %v841, %v1675
  %v1740 = vmax.f32 %v842, %v1676
  %v1741 = vmax.f32 %v843, %v1677
  %v1742 = vmax.f32 %v844, %v1678
  %v1743 = vmax.f32 %v845, %v1679
  %v1744 = vmax.f32 %v846, %v1680
  %v1745 = vmax.f32 %v847, %v1681
  %v1746 = vmax.f32 %v848, %v1682
  %v1747 = vmax.f32 %v849, %v1683
  %v1748 = vmax.f32 %v850, %v1684
  %v1749 = vmax.f32 %v851, %v1685
  %v1750 = vmax.f32 %v852, %v1686
  %v1751 = vmax.f32 %v853, %v1687
  %v1752 = vmax.f32 %v854, %v1688
  %v1753 = vmax.f32 %v855, %v1689
  %v1754 = vmax.f32 %v856, %v1690
  %v1755 = vmax.f32 %v857, %v1691
  %v1756 = vmax.f32 %v858, %v1692
  %v1757 = vmax.f32 %v859, %v1693
  %v1758 = vmax.f32 %v860, %v1694
  %v1759 = vmax.f32 %v861, %v1695
  %v1760 = vmax.f32 %v862, %v1696
  %v1761 = vmax.f32 %v863, %v1697
  %v1762 = vmax.f32 %v864, %v1698
  %v1763 = vmax.f32 %v865, %v1699
  %v1764 = vmax.f32 %v866, %v1700
  %v1765 = vmax.f32 %v867, %v1701
  %v1766 = vmax.f32 %v868, %v1702
  %v1767 = vmax.f32 %v869, %v1703
  %v1768 = vmax.f32 %v870, %v1704
  %v1769 = vmax.f32 %v871, %v1705
  %v1770 = vmax.f32 %v872, %v1706
  %s1771 = scalar_lea.vmem %s0, 1024
  %v1772 = vld [vmem:[%s1771] sm:$0xff]
  %v1773 = vld [vmem:[%s1771 + $0x8] sm:$0xff]
  %v1774 = vld [vmem:[%s1771 + $0x10] sm:$0xff]
  %v1775 = vld [vmem:[%s1771 + $0x18] sm:$0xff]
  %v1776 = vld [vmem:[%s1771 + $0x20] sm:$0xff]
  %v1777 = vld [vmem:[%s1771 + $0x28] sm:$0xff]
  %v1778 = vld [vmem:[%s1771 + $0x30] sm:$0xff]
  %v1779 = vld [vmem:[%s1771 + $0x38] sm:$0xff]
  %v1780 = vld [vmem:[%s1771 + $0x40] sm:$0xff]
  %v1781 = vld [vmem:[%s1771 + $0x48] sm:$0xff]
  %v1782 = vld [vmem:[%s1771 + $0x50] sm:$0xff]
  %v1783 = vld [vmem:[%s1771 + $0x58] sm:$0xff]
  %v1784 = vld [vmem:[%s1771 + $0x60] sm:$0xff]
  %v1785 = vld [vmem:[%s1771 + $0x68] sm:$0xff]
  %v1786 = vld [vmem:[%s1771 + $0x70] sm:$0xff]
  %v1787 = vld [vmem:[%s1771 + $0x78] sm:$0xff]
  %v1788 = vld [vmem:[%s1771 + $0x80] sm:$0xff]
  %v1789 = vld [vmem:[%s1771 + $0x88] sm:$0xff]
  %v1790 = vld [vmem:[%s1771 + $0x90] sm:$0xff]
  %v1791 = vld [vmem:[%s1771 + $0x98] sm:$0xff]
  %v1792 = vld [vmem:[%s1771 + $0xa0] sm:$0xff]
  %v1793 = vld [vmem:[%s1771 + $0xa8] sm:$0xff]
  %v1794 = vld [vmem:[%s1771 + $0xb0] sm:$0xff]
  %v1795 = vld [vmem:[%s1771 + $0xb8] sm:$0xff]
  %v1796 = vld [vmem:[%s1771 + $0xc0] sm:$0xff]
  %v1797 = vld [vmem:[%s1771 + $0xc8] sm:$0xff]
  %v1798 = vld [vmem:[%s1771 + $0xd0] sm:$0xff]
  %v1799 = vld [vmem:[%s1771 + $0xd8] sm:$0xff]
  %v1800 = vld [vmem:[%s1771 + $0xe0] sm:$0xff]
  %v1801 = vld [vmem:[%s1771 + $0xe8] sm:$0xff]
  %v1802 = vld [vmem:[%s1771 + $0xf0] sm:$0xff]
  %v1803 = vld [vmem:[%s1771 + $0xf8] sm:$0xff]
  %v1804 = vld [vmem:[%s1771 + $0x100] sm:$0xff]
  %v1805 = vld [vmem:[%s1771 + $0x108] sm:$0xff]
  %v1806 = vld [vmem:[%s1771 + $0x110] sm:$0xff]
  %v1807 = vld [vmem:[%s1771 + $0x118] sm:$0xff]
  %v1808 = vld [vmem:[%s1771 + $0x120] sm:$0xff]
  %v1809 = vld [vmem:[%s1771 + $0x128] sm:$0xff]
  %v1810 = vld [vmem:[%s1771 + $0x130] sm:$0xff]
  %v1811 = vld [vmem:[%s1771 + $0x138] sm:$0xff]
  %v1812 = vld [vmem:[%s1771 + $0x140] sm:$0xff]
  %v1813 = vld [vmem:[%s1771 + $0x148] sm:$0xff]
  %v1814 = vld [vmem:[%s1771 + $0x150] sm:$0xff]
  %v1815 = vld [vmem:[%s1771 + $0x158] sm:$0xff]
  %v1816 = vld [vmem:[%s1771 + $0x160] sm:$0xff]
  %v1817 = vld [vmem:[%s1771 + $0x168] sm:$0xff]
  %v1818 = vld [vmem:[%s1771 + $0x170] sm:$0xff]
  %v1819 = vld [vmem:[%s1771 + $0x178] sm:$0xff]
  %v1820 = vld [vmem:[%s1771 + $0x180] sm:$0xff]
  %v1821 = vld [vmem:[%s1771 + $0x188] sm:$0xff]
  %v1822 = vld [vmem:[%s1771 + $0x190] sm:$0xff]
  %v1823 = vld [vmem:[%s1771 + $0x198] sm:$0xff]
  %v1824 = vld [vmem:[%s1771 + $0x1a0] sm:$0xff]
  %v1825 = vld [vmem:[%s1771 + $0x1a8] sm:$0xff]
  %v1826 = vld [vmem:[%s1771 + $0x1b0] sm:$0xff]
  %v1827 = vld [vmem:[%s1771 + $0x1b8] sm:$0xff]
  %v1828 = vld [vmem:[%s1771 + $0x1c0] sm:$0xff]
  %v1829 = vld [vmem:[%s1771 + $0x1c8] sm:$0xff]
  %v1830 = vld [vmem:[%s1771 + $0x1d0] sm:$0xff]
  %v1831 = vld [vmem:[%s1771 + $0x1d8] sm:$0xff]
  %v1832 = vld [vmem:[%s1771 + $0x1e0] sm:$0xff]
  %v1833 = vld [vmem:[%s1771 + $0x1e8] sm:$0xff]
  %v1834 = vld [vmem:[%s1771 + $0x1f0] sm:$0xff]
  %v1835 = vld [vmem:[%s1771 + $0x1f8] sm:$0xff]
  %v1837 = vsel %vm87, %v1772, 0
  %v1840 = vsel %vm87, %v1773, 0
  %v1843 = vsel %vm87, %v1774, 0
  %v1846 = vsel %vm87, %v1775, 0
  %v1849 = vsel %vm87, %v1776, 0
  %v1852 = vsel %vm87, %v1777, 0
  %v1855 = vsel %vm87, %v1778, 0
  %v1858 = vsel %vm87, %v1779, 0
  %v1861 = vsel %vm87, %v1780, 0
  %v1864 = vsel %vm87, %v1781, 0
  %v1867 = vsel %vm87, %v1782, 0
  %v1870 = vsel %vm87, %v1783, 0
  %v1873 = vsel %vm87, %v1784, 0
  %v1876 = vsel %vm87, %v1785, 0
  %v1879 = vsel %vm87, %v1786, 0
  %v1882 = vsel %vm87, %v1787, 0
  %v1885 = vsel %vm87, %v1788, 0
  %v1888 = vsel %vm87, %v1789, 0
  %v1891 = vsel %vm87, %v1790, 0
  %v1894 = vsel %vm87, %v1791, 0
  %v1897 = vsel %vm87, %v1792, 0
  %v1900 = vsel %vm87, %v1793, 0
  %v1903 = vsel %vm87, %v1794, 0
  %v1906 = vsel %vm87, %v1795, 0
  %v1909 = vsel %vm87, %v1796, 0
  %v1912 = vsel %vm87, %v1797, 0
  %v1915 = vsel %vm87, %v1798, 0
  %v1918 = vsel %vm87, %v1799, 0
  %v1921 = vsel %vm87, %v1800, 0
  %v1924 = vsel %vm87, %v1801, 0
  %v1927 = vsel %vm87, %v1802, 0
  %v1930 = vsel %vm87, %v1803, 0
  %v1933 = vsel %vm87, %v1804, 0
  %v1936 = vsel %vm87, %v1805, 0
  %v1939 = vsel %vm87, %v1806, 0
  %v1942 = vsel %vm87, %v1807, 0
  %v1945 = vsel %vm87, %v1808, 0
  %v1948 = vsel %vm87, %v1809, 0
  %v1951 = vsel %vm87, %v1810, 0
  %v1954 = vsel %vm87, %v1811, 0
  %v1957 = vsel %vm87, %v1812, 0
  %v1960 = vsel %vm87, %v1813, 0
  %v1963 = vsel %vm87, %v1814, 0
  %v1966 = vsel %vm87, %v1815, 0
  %v1969 = vsel %vm87, %v1816, 0
  %v1972 = vsel %vm87, %v1817, 0
  %v1975 = vsel %vm87, %v1818, 0
  %v1978 = vsel %vm87, %v1819, 0
  %v1981 = vsel %vm87, %v1820, 0
  %v1984 = vsel %vm87, %v1821, 0
  %v1987 = vsel %vm87, %v1822, 0
  %v1990 = vsel %vm87, %v1823, 0
  %v1993 = vsel %vm87, %v1824, 0
  %v1996 = vsel %vm87, %v1825, 0
  %v1999 = vsel %vm87, %v1826, 0
  %v2002 = vsel %vm87, %v1827, 0
  %v2005 = vsel %vm87, %v1828, 0
  %v2008 = vsel %vm87, %v1829, 0
  %v2011 = vsel %vm87, %v1830, 0
  %v2014 = vsel %vm87, %v1831, 0
  %v2017 = vsel %vm87, %v1832, 0
  %v2020 = vsel %vm87, %v1833, 0
  %v2023 = vsel %vm87, %v1834, 0
  %v2026 = vsel %vm87, %v1835, 0
  %2028 = vmatprep.subr.mxu0 0.0
  %2029 = vmatpush1.msra.mxu0 %v17
  %2030 = vmatprep.subr.mxu0 0.0
  %2031 = vmatpush1.msra.mxu0 %v18
  %2032 = vmatprep.subr.mxu0 0.0
  %2033 = vmatpush1.msra.mxu0 %v19
  %2034 = vmatprep.subr.mxu0 0.0
  %2035 = vmatpush1.msra.mxu0 %v282
  %2036 = vmatprep.subr.mxu0 0.0
  %2037 = vmatpush1.msra.mxu0 0.0
  %2038 = vmatprep.subr.mxu0 0.0
  %2039 = vmatpush1.msra.mxu0 0.0
  %2040 = vmatprep.subr.mxu0 0.0
  %2041 = vmatpush1.msra.mxu0 0.0
  %2042 = vmatprep.subr.mxu0 0.0
  %2043 = vmatpush1.msra.mxu0 0.0
  %2044 = vmatprep.subr.mxu0 0.0
  %2045 = vmatpush1.msra.mxu0 0.0
  %2046 = vmatprep.subr.mxu0 0.0
  %2047 = vmatpush1.msra.mxu0 0.0
  %2048 = vmatprep.subr.mxu0 0.0
  %2049 = vmatpush1.msra.mxu0 0.0
  %2050 = vmatprep.subr.mxu0 0.0
  %2051 = vmatpush1.msra.mxu0 0.0
  %2052 = vmatprep.subr.mxu0 0.0
  %2053 = vmatpush1.msra.mxu0 0.0
  %2054 = vmatprep.subr.mxu0 0.0
  %2055 = vmatpush1.msra.mxu0 0.0
  %2056 = vmatprep.subr.mxu0 0.0
  %2057 = vmatpush1.msra.mxu0 0.0
  %2058 = vmatprep.subr.mxu0 0.0
  %2059 = vmatpush1.msra.mxu0 0.0
  %2060 = vmatprep.subr.mxu0 0.0
  %2061 = vmatpush1.msra.mxu0 0.0
  %2062 = vmatprep.subr.mxu0 0.0
  %2063 = vmatpush1.msra.mxu0 0.0
  %2064 = vmatprep.subr.mxu0 0.0
  %2065 = vmatpush1.msra.mxu0 0.0
  %2066 = vmatprep.subr.mxu0 0.0
  %2067 = vmatpush1.msra.mxu0 0.0
  %2068 = vmatprep.subr.mxu0 0.0
  %2069 = vmatpush1.msra.mxu0 0.0
  %2070 = vmatprep.subr.mxu0 0.0
  %2071 = vmatpush1.msra.mxu0 0.0
  %2072 = vmatprep.subr.mxu0 0.0
  %2073 = vmatpush1.msra.mxu0 0.0
  %2074 = vmatprep.subr.mxu0 0.0
  %2075 = vmatpush1.msra.mxu0 0.0
  %2076 = vmatprep.subr.mxu0 0.0
  %2077 = vmatpush1.msra.mxu0 0.0
  %2078 = vmatprep.subr.mxu0 0.0
  %2079 = vmatpush1.msra.mxu0 0.0
  %2080 = vmatprep.subr.mxu0 0.0
  %2081 = vmatpush1.msra.mxu0 0.0
  %2082 = vmatprep.subr.mxu0 0.0
  %2083 = vmatpush1.msra.mxu0 0.0
  %2084 = vmatprep.subr.mxu0 0.0
  %2085 = vmatpush1.msra.mxu0 0.0
  %2086 = vmatprep.subr.mxu0 0.0
  %2087 = vmatpush1.msra.mxu0 0.0
  %2088 = vmatprep.subr.mxu0 0.0
  %2089 = vmatpush1.msra.mxu0 0.0
  %2090 = vmatprep.subr.mxu0 0.0
  %2091 = vmatpush1.msra.mxu0 0.0
  %2092 = vmatprep.mubr.f32.mxu0 0.0
  %2093 = vmatmul.mubr.f32.gmra.mrb[0].mxu0 %v1837
  %v2094 = vpop.f32.mrb[0].mxu0
  %v2095 = vadd.f32 0.0, %v2094
  %v2096 = vpop.f32.mrb[0].mxu0
  %2097 = vmatprep.mubr.f32.mxu0 0.0
  %2098 = vmatmul.mubr.f32.gmra.mrb[0].mxu0 %v1840
  %v2099 = vpop.f32.mrb[0].mxu0
  %v2100 = vadd.f32 0.0, %v2099
  %v2101 = vpop.f32.mrb[0].mxu0
  %2102 = vmatprep.mubr.f32.mxu0 0.0
  %2103 = vmatmul.mubr.f32.gmra.mrb[0].mxu0 %v1843
  %v2104 = vpop.f32.mrb[0].mxu0
  %v2105 = vadd.f32 0.0, %v2104
  %v2106 = vpop.f32.mrb[0].mxu0
  %2107 = vmatprep.mubr.f32.mxu0 0.0
  %2108 = vmatmul.mubr.f32.gmra.mrb[0].mxu0 %v1846
  %v2109 = vpop.f32.mrb[0].mxu0
  %v2110 = vadd.f32 0.0, %v2109
  %v2111 = vpop.f32.mrb[0].mxu0
  %2112 = vmatprep.mubr.f32.mxu0 0.0
  %2113 = vmatmul.mubr.f32.gmra.mrb[0].mxu0 %v1849
  %v2114 = vpop.f32.mrb[0].mxu0
  %v2115 = vadd.f32 0.0, %v2114
  %v2116 = vpop.f32.mrb[0].mxu0
  %2117 = vmatprep.mubr.f32.mxu0 0.0
  %2118 = vmatmul.mubr.f32.gmra.mrb[0].mxu0 %v1852
  %v2119 = vpop.f32.mrb[0].mxu0
  %v2120 = vadd.f32 0.0, %v2119
  %v2121 = vpop.f32.mrb[0].mxu0
  %2122 = vmatprep.mubr.f32.mxu0 0.0
  %2123 = vmatmul.mubr.f32.gmra.mrb[0].mxu0 %v1855
  %v2124 = vpop.f32.mrb[0].mxu0
  %v2125 = vadd.f32 0.0, %v2124
  %v2126 = vpop.f32.mrb[0].mxu0
  %2127 = vmatprep.mubr.f32.mxu0 0.0
  %2128 = vmatmul.mubr.f32.gmra.mrb[0].mxu0 %v1858
  %v2129 = vpop.f32.mrb[0].mxu0
  %v2130 = vadd.f32 0.0, %v2129
  %v2131 = vpop.f32.mrb[0].mxu0
  %2132 = vmatprep.mubr.f32.mxu0 0.0
  %2133 = vmatmul.mubr.f32.gmra.mrb[0].mxu0 %v1861
  %v2134 = vpop.f32.mrb[0].mxu0
  %v2135 = vadd.f32 0.0, %v2134
  %v2136 = vpop.f32.mrb[0].mxu0
  %2137 = vmatprep.mubr.f32.mxu0 0.0
  %2138 = vmatmul.mubr.f32.gmra.mrb[0].mxu0 %v1864
  %v2139 = vpop.f32.mrb[0].mxu0
  %v2140 = vadd.f32 0.0, %v2139
  %v2141 = vpop.f32.mrb[0].mxu0
  %2142 = vmatprep.mubr.f32.mxu0 0.0
  %2143 = vmatmul.mubr.f32.gmra.mrb[0].mxu0 %v1867
  %v2144 = vpop.f32.mrb[0].mxu0
  %v2145 = vadd.f32 0.0, %v2144
  %v2146 = vpop.f32.mrb[0].mxu0
  %2147 = vmatprep.mubr.f32.mxu0 0.0
  %2148 = vmatmul.mubr.f32.gmra.mrb[0].mxu0 %v1870
  %v2149 = vpop.f32.mrb[0].mxu0
  %v2150 = vadd.f32 0.0, %v2149
  %v2151 = vpop.f32.mrb[0].mxu0
  %2152 = vmatprep.mubr.f32.mxu0 0.0
  %2153 = vmatmul.mubr.f32.gmra.mrb[0].mxu0 %v1873
  %v2154 = vpop.f32.mrb[0].mxu0
  %v2155 = vadd.f32 0.0, %v2154
  %v2156 = vpop.f32.mrb[0].mxu0
  %2157 = vmatprep.mubr.f32.mxu0 0.0
  %2158 = vmatmul.mubr.f32.gmra.mrb[0].mxu0 %v1876
  %v2159 = vpop.f32.mrb[0].mxu0
  %v2160 = vadd.f32 0.0, %v2159
  %v2161 = vpop.f32.mrb[0].mxu0
  %2162 = vmatprep.mubr.f32.mxu0 0.0
  %2163 = vmatmul.mubr.f32.gmra.mrb[0].mxu0 %v1879
  %v2164 = vpop.f32.mrb[0].mxu0
  %v2165 = vadd.f32 0.0, %v2164
  %v2166 = vpop.f32.mrb[0].mxu0
  %2167 = vmatprep.mubr.f32.mxu0 0.0
  %2168 = vmatmul.mubr.f32.gmra.mrb[0].mxu0 %v1882
  %v2169 = vpop.f32.mrb[0].mxu0
  %v2170 = vadd.f32 0.0, %v2169
  %v2171 = vpop.f32.mrb[0].mxu0
  %2172 = vmatprep.mubr.f32.mxu0 0.0
  %2173 = vmatmul.mubr.f32.gmra.mrb[0].mxu0 %v1885
  %v2174 = vpop.f32.mrb[0].mxu0
  %v2175 = vadd.f32 0.0, %v2174
  %v2176 = vpop.f32.mrb[0].mxu0
  %2177 = vmatprep.mubr.f32.mxu0 0.0
  %2178 = vmatmul.mubr.f32.gmra.mrb[0].mxu0 %v1888
  %v2179 = vpop.f32.mrb[0].mxu0
  %v2180 = vadd.f32 0.0, %v2179
  %v2181 = vpop.f32.mrb[0].mxu0
  %2182 = vmatprep.mubr.f32.mxu0 0.0
  %2183 = vmatmul.mubr.f32.gmra.mrb[0].mxu0 %v1891
  %v2184 = vpop.f32.mrb[0].mxu0
  %v2185 = vadd.f32 0.0, %v2184
  %v2186 = vpop.f32.mrb[0].mxu0
  %2187 = vmatprep.mubr.f32.mxu0 0.0
  %2188 = vmatmul.mubr.f32.gmra.mrb[0].mxu0 %v1894
  %v2189 = vpop.f32.mrb[0].mxu0
  %v2190 = vadd.f32 0.0, %v2189
  %v2191 = vpop.f32.mrb[0].mxu0
  %2192 = vmatprep.mubr.f32.mxu0 0.0
  %2193 = vmatmul.mubr.f32.gmra.mrb[0].mxu0 %v1897
  %v2194 = vpop.f32.mrb[0].mxu0
  %v2195 = vadd.f32 0.0, %v2194
  %v2196 = vpop.f32.mrb[0].mxu0
  %2197 = vmatprep.mubr.f32.mxu0 0.0
  %2198 = vmatmul.mubr.f32.gmra.mrb[0].mxu0 %v1900
  %v2199 = vpop.f32.mrb[0].mxu0
  %v2200 = vadd.f32 0.0, %v2199
  %v2201 = vpop.f32.mrb[0].mxu0
  %2202 = vmatprep.mubr.f32.mxu0 0.0
  %2203 = vmatmul.mubr.f32.gmra.mrb[0].mxu0 %v1903
  %v2204 = vpop.f32.mrb[0].mxu0
  %v2205 = vadd.f32 0.0, %v2204
  %v2206 = vpop.f32.mrb[0].mxu0
  %2207 = vmatprep.mubr.f32.mxu0 0.0
  %2208 = vmatmul.mubr.f32.gmra.mrb[0].mxu0 %v1906
  %v2209 = vpop.f32.mrb[0].mxu0
  %v2210 = vadd.f32 0.0, %v2209
  %v2211 = vpop.f32.mrb[0].mxu0
  %2212 = vmatprep.mubr.f32.mxu0 0.0
  %2213 = vmatmul.mubr.f32.gmra.mrb[0].mxu0 %v1909
  %v2214 = vpop.f32.mrb[0].mxu0
  %v2215 = vadd.f32 0.0, %v2214
  %v2216 = vpop.f32.mrb[0].mxu0
  %2217 = vmatprep.mubr.f32.mxu0 0.0
  %2218 = vmatmul.mubr.f32.gmra.mrb[0].mxu0 %v1912
  %v2219 = vpop.f32.mrb[0].mxu0
  %v2220 = vadd.f32 0.0, %v2219
  %v2221 = vpop.f32.mrb[0].mxu0
  %2222 = vmatprep.mubr.f32.mxu0 0.0
  %2223 = vmatmul.mubr.f32.gmra.mrb[0].mxu0 %v1915
  %v2224 = vpop.f32.mrb[0].mxu0
  %v2225 = vadd.f32 0.0, %v2224
  %v2226 = vpop.f32.mrb[0].mxu0
  %2227 = vmatprep.mubr.f32.mxu0 0.0
  %2228 = vmatmul.mubr.f32.gmra.mrb[0].mxu0 %v1918
  %v2229 = vpop.f32.mrb[0].mxu0
  %v2230 = vadd.f32 0.0, %v2229
  %v2231 = vpop.f32.mrb[0].mxu0
  %2232 = vmatprep.mubr.f32.mxu0 0.0
  %2233 = vmatmul.mubr.f32.gmra.mrb[0].mxu0 %v1921
  %v2234 = vpop.f32.mrb[0].mxu0
  %v2235 = vadd.f32 0.0, %v2234
  %v2236 = vpop.f32.mrb[0].mxu0
  %2237 = vmatprep.mubr.f32.mxu0 0.0
  %2238 = vmatmul.mubr.f32.gmra.mrb[0].mxu0 %v1924
  %v2239 = vpop.f32.mrb[0].mxu0
  %v2240 = vadd.f32 0.0, %v2239
  %v2241 = vpop.f32.mrb[0].mxu0
  %2242 = vmatprep.mubr.f32.mxu0 0.0
  %2243 = vmatmul.mubr.f32.gmra.mrb[0].mxu0 %v1927
  %v2244 = vpop.f32.mrb[0].mxu0
  %v2245 = vadd.f32 0.0, %v2244
  %v2246 = vpop.f32.mrb[0].mxu0
  %2247 = vmatprep.mubr.f32.mxu0 0.0
  %2248 = vmatmul.mubr.f32.gmra.mrb[0].mxu0 %v1930
  %v2249 = vpop.f32.mrb[0].mxu0
  %v2250 = vadd.f32 0.0, %v2249
  %v2251 = vpop.f32.mrb[0].mxu0
  %2252 = vmatprep.mubr.f32.mxu0 0.0
  %2253 = vmatmul.mubr.f32.gmra.mrb[0].mxu0 %v1933
  %v2254 = vpop.f32.mrb[0].mxu0
  %v2255 = vadd.f32 0.0, %v2254
  %v2256 = vpop.f32.mrb[0].mxu0
  %2257 = vmatprep.mubr.f32.mxu0 0.0
  %2258 = vmatmul.mubr.f32.gmra.mrb[0].mxu0 %v1936
  %v2259 = vpop.f32.mrb[0].mxu0
  %v2260 = vadd.f32 0.0, %v2259
  %v2261 = vpop.f32.mrb[0].mxu0
  %2262 = vmatprep.mubr.f32.mxu0 0.0
  %2263 = vmatmul.mubr.f32.gmra.mrb[0].mxu0 %v1939
  %v2264 = vpop.f32.mrb[0].mxu0
  %v2265 = vadd.f32 0.0, %v2264
  %v2266 = vpop.f32.mrb[0].mxu0
  %2267 = vmatprep.mubr.f32.mxu0 0.0
  %2268 = vmatmul.mubr.f32.gmra.mrb[0].mxu0 %v1942
  %v2269 = vpop.f32.mrb[0].mxu0
  %v2270 = vadd.f32 0.0, %v2269
  %v2271 = vpop.f32.mrb[0].mxu0
  %2272 = vmatprep.mubr.f32.mxu0 0.0
  %2273 = vmatmul.mubr.f32.gmra.mrb[0].mxu0 %v1945
  %v2274 = vpop.f32.mrb[0].mxu0
  %v2275 = vadd.f32 0.0, %v2274
  %v2276 = vpop.f32.mrb[0].mxu0
  %2277 = vmatprep.mubr.f32.mxu0 0.0
  %2278 = vmatmul.mubr.f32.gmra.mrb[0].mxu0 %v1948
  %v2279 = vpop.f32.mrb[0].mxu0
  %v2280 = vadd.f32 0.0, %v2279
  %v2281 = vpop.f32.mrb[0].mxu0
  %2282 = vmatprep.mubr.f32.mxu0 0.0
  %2283 = vmatmul.mubr.f32.gmra.mrb[0].mxu0 %v1951
  %v2284 = vpop.f32.mrb[0].mxu0
  %v2285 = vadd.f32 0.0, %v2284
  %v2286 = vpop.f32.mrb[0].mxu0
  %2287 = vmatprep.mubr.f32.mxu0 0.0
  %2288 = vmatmul.mubr.f32.gmra.mrb[0].mxu0 %v1954
  %v2289 = vpop.f32.mrb[0].mxu0
  %v2290 = vadd.f32 0.0, %v2289
  %v2291 = vpop.f32.mrb[0].mxu0
  %2292 = vmatprep.mubr.f32.mxu0 0.0
  %2293 = vmatmul.mubr.f32.gmra.mrb[0].mxu0 %v1957
  %v2294 = vpop.f32.mrb[0].mxu0
  %v2295 = vadd.f32 0.0, %v2294
  %v2296 = vpop.f32.mrb[0].mxu0
  %2297 = vmatprep.mubr.f32.mxu0 0.0
  %2298 = vmatmul.mubr.f32.gmra.mrb[0].mxu0 %v1960
  %v2299 = vpop.f32.mrb[0].mxu0
  %v2300 = vadd.f32 0.0, %v2299
  %v2301 = vpop.f32.mrb[0].mxu0
  %2302 = vmatprep.mubr.f32.mxu0 0.0
  %2303 = vmatmul.mubr.f32.gmra.mrb[0].mxu0 %v1963
  %v2304 = vpop.f32.mrb[0].mxu0
  %v2305 = vadd.f32 0.0, %v2304
  %v2306 = vpop.f32.mrb[0].mxu0
  %2307 = vmatprep.mubr.f32.mxu0 0.0
  %2308 = vmatmul.mubr.f32.gmra.mrb[0].mxu0 %v1966
  %v2309 = vpop.f32.mrb[0].mxu0
  %v2310 = vadd.f32 0.0, %v2309
  %v2311 = vpop.f32.mrb[0].mxu0
  %2312 = vmatprep.mubr.f32.mxu0 0.0
  %2313 = vmatmul.mubr.f32.gmra.mrb[0].mxu0 %v1969
  %v2314 = vpop.f32.mrb[0].mxu0
  %v2315 = vadd.f32 0.0, %v2314
  %v2316 = vpop.f32.mrb[0].mxu0
  %2317 = vmatprep.mubr.f32.mxu0 0.0
  %2318 = vmatmul.mubr.f32.gmra.mrb[0].mxu0 %v1972
  %v2319 = vpop.f32.mrb[0].mxu0
  %v2320 = vadd.f32 0.0, %v2319
  %v2321 = vpop.f32.mrb[0].mxu0
  %2322 = vmatprep.mubr.f32.mxu0 0.0
  %2323 = vmatmul.mubr.f32.gmra.mrb[0].mxu0 %v1975
  %v2324 = vpop.f32.mrb[0].mxu0
  %v2325 = vadd.f32 0.0, %v2324
  %v2326 = vpop.f32.mrb[0].mxu0
  %2327 = vmatprep.mubr.f32.mxu0 0.0
  %2328 = vmatmul.mubr.f32.gmra.mrb[0].mxu0 %v1978
  %v2329 = vpop.f32.mrb[0].mxu0
  %v2330 = vadd.f32 0.0, %v2329
  %v2331 = vpop.f32.mrb[0].mxu0
  %2332 = vmatprep.mubr.f32.mxu0 0.0
  %2333 = vmatmul.mubr.f32.gmra.mrb[0].mxu0 %v1981
  %v2334 = vpop.f32.mrb[0].mxu0
  %v2335 = vadd.f32 0.0, %v2334
  %v2336 = vpop.f32.mrb[0].mxu0
  %2337 = vmatprep.mubr.f32.mxu0 0.0
  %2338 = vmatmul.mubr.f32.gmra.mrb[0].mxu0 %v1984
  %v2339 = vpop.f32.mrb[0].mxu0
  %v2340 = vadd.f32 0.0, %v2339
  %v2341 = vpop.f32.mrb[0].mxu0
  %2342 = vmatprep.mubr.f32.mxu0 0.0
  %2343 = vmatmul.mubr.f32.gmra.mrb[0].mxu0 %v1987
  %v2344 = vpop.f32.mrb[0].mxu0
  %v2345 = vadd.f32 0.0, %v2344
  %v2346 = vpop.f32.mrb[0].mxu0
  %2347 = vmatprep.mubr.f32.mxu0 0.0
  %2348 = vmatmul.mubr.f32.gmra.mrb[0].mxu0 %v1990
  %v2349 = vpop.f32.mrb[0].mxu0
  %v2350 = vadd.f32 0.0, %v2349
  %v2351 = vpop.f32.mrb[0].mxu0
  %2352 = vmatprep.mubr.f32.mxu0 0.0
  %2353 = vmatmul.mubr.f32.gmra.mrb[0].mxu0 %v1993
  %v2354 = vpop.f32.mrb[0].mxu0
  %v2355 = vadd.f32 0.0, %v2354
  %v2356 = vpop.f32.mrb[0].mxu0
  %2357 = vmatprep.mubr.f32.mxu0 0.0
  %2358 = vmatmul.mubr.f32.gmra.mrb[0].mxu0 %v1996
  %v2359 = vpop.f32.mrb[0].mxu0
  %v2360 = vadd.f32 0.0, %v2359
  %v2361 = vpop.f32.mrb[0].mxu0
  %2362 = vmatprep.mubr.f32.mxu0 0.0
  %2363 = vmatmul.mubr.f32.gmra.mrb[0].mxu0 %v1999
  %v2364 = vpop.f32.mrb[0].mxu0
  %v2365 = vadd.f32 0.0, %v2364
  %v2366 = vpop.f32.mrb[0].mxu0
  %2367 = vmatprep.mubr.f32.mxu0 0.0
  %2368 = vmatmul.mubr.f32.gmra.mrb[0].mxu0 %v2002
  %v2369 = vpop.f32.mrb[0].mxu0
  %v2370 = vadd.f32 0.0, %v2369
  %v2371 = vpop.f32.mrb[0].mxu0
  %2372 = vmatprep.mubr.f32.mxu0 0.0
  %2373 = vmatmul.mubr.f32.gmra.mrb[0].mxu0 %v2005
  %v2374 = vpop.f32.mrb[0].mxu0
  %v2375 = vadd.f32 0.0, %v2374
  %v2376 = vpop.f32.mrb[0].mxu0
  %2377 = vmatprep.mubr.f32.mxu0 0.0
  %2378 = vmatmul.mubr.f32.gmra.mrb[0].mxu0 %v2008
  %v2379 = vpop.f32.mrb[0].mxu0
  %v2380 = vadd.f32 0.0, %v2379
  %v2381 = vpop.f32.mrb[0].mxu0
  %2382 = vmatprep.mubr.f32.mxu0 0.0
  %2383 = vmatmul.mubr.f32.gmra.mrb[0].mxu0 %v2011
  %v2384 = vpop.f32.mrb[0].mxu0
  %v2385 = vadd.f32 0.0, %v2384
  %v2386 = vpop.f32.mrb[0].mxu0
  %2387 = vmatprep.mubr.f32.mxu0 0.0
  %2388 = vmatmul.mubr.f32.gmra.mrb[0].mxu0 %v2014
  %v2389 = vpop.f32.mrb[0].mxu0
  %v2390 = vadd.f32 0.0, %v2389
  %v2391 = vpop.f32.mrb[0].mxu0
  %2392 = vmatprep.mubr.f32.mxu0 0.0
  %2393 = vmatmul.mubr.f32.gmra.mrb[0].mxu0 %v2017
  %v2394 = vpop.f32.mrb[0].mxu0
  %v2395 = vadd.f32 0.0, %v2394
  %v2396 = vpop.f32.mrb[0].mxu0
  %2397 = vmatprep.mubr.f32.mxu0 0.0
  %2398 = vmatmul.mubr.f32.gmra.mrb[0].mxu0 %v2020
  %v2399 = vpop.f32.mrb[0].mxu0
  %v2400 = vadd.f32 0.0, %v2399
  %v2401 = vpop.f32.mrb[0].mxu0
  %2402 = vmatprep.mubr.f32.mxu0 0.0
  %2403 = vmatmul.mubr.f32.gmra.mrb[0].mxu0 %v2023
  %v2404 = vpop.f32.mrb[0].mxu0
  %v2405 = vadd.f32 0.0, %v2404
  %v2406 = vpop.f32.mrb[0].mxu0
  %2407 = vmatprep.mubr.f32.mxu0 0.0
  %2408 = vmatmul.mubr.f32.gmra.mrb[0].mxu0 %v2026
  %v2409 = vpop.f32.mrb[0].mxu0
  %v2410 = vadd.f32 0.0, %v2409
  %v2411 = vpop.f32.mrb[0].mxu0
  %2412 = vdwg.mxu0
  %v2413 = vmul.f32 %v2095, %v673
  %v2414 = vmul.f32 %v2100, %v673
  %v2415 = vmul.f32 %v2105, %v673
  %v2416 = vmul.f32 %v2110, %v673
  %v2417 = vmul.f32 %v2115, %v673
  %v2418 = vmul.f32 %v2120, %v673
  %v2419 = vmul.f32 %v2125, %v673
  %v2420 = vmul.f32 %v2130, %v673
  %v2421 = vmul.f32 %v2135, %v673
  %v2422 = vmul.f32 %v2140, %v673
  %v2423 = vmul.f32 %v2145, %v673
  %v2424 = vmul.f32 %v2150, %v673
  %v2425 = vmul.f32 %v2155, %v673
  %v2426 = vmul.f32 %v2160, %v673
  %v2427 = vmul.f32 %v2165, %v673
  %v2428 = vmul.f32 %v2170, %v673
  %v2429 = vmul.f32 %v2175, %v673
  %v2430 = vmul.f32 %v2180, %v673
  %v2431 = vmul.f32 %v2185, %v673
  %v2432 = vmul.f32 %v2190, %v673
  %v2433 = vmul.f32 %v2195, %v673
  %v2434 = vmul.f32 %v2200, %v673
  %v2435 = vmul.f32 %v2205, %v673
  %v2436 = vmul.f32 %v2210, %v673
  %v2437 = vmul.f32 %v2215, %v673
  %v2438 = vmul.f32 %v2220, %v673
  %v2439 = vmul.f32 %v2225, %v673
  %v2440 = vmul.f32 %v2230, %v673
  %v2441 = vmul.f32 %v2235, %v673
  %v2442 = vmul.f32 %v2240, %v673
  %v2443 = vmul.f32 %v2245, %v673
  %v2444 = vmul.f32 %v2250, %v673
  %v2445 = vmul.f32 %v2255, %v673
  %v2446 = vmul.f32 %v2260, %v673
  %v2447 = vmul.f32 %v2265, %v673
  %v2448 = vmul.f32 %v2270, %v673
  %v2449 = vmul.f32 %v2275, %v673
  %v2450 = vmul.f32 %v2280, %v673
  %v2451 = vmul.f32 %v2285, %v673
  %v2452 = vmul.f32 %v2290, %v673
  %v2453 = vmul.f32 %v2295, %v673
  %v2454 = vmul.f32 %v2300, %v673
  %v2455 = vmul.f32 %v2305, %v673
  %v2456 = vmul.f32 %v2310, %v673
  %v2457 = vmul.f32 %v2315, %v673
  %v2458 = vmul.f32 %v2320, %v673
  %v2459 = vmul.f32 %v2325, %v673
  %v2460 = vmul.f32 %v2330, %v673
  %v2461 = vmul.f32 %v2335, %v673
  %v2462 = vmul.f32 %v2340, %v673
  %v2463 = vmul.f32 %v2345, %v673
  %v2464 = vmul.f32 %v2350, %v673
  %v2465 = vmul.f32 %v2355, %v673
  %v2466 = vmul.f32 %v2360, %v673
  %v2467 = vmul.f32 %v2365, %v673
  %v2468 = vmul.f32 %v2370, %v673
  %v2469 = vmul.f32 %v2375, %v673
  %v2470 = vmul.f32 %v2380, %v673
  %v2471 = vmul.f32 %v2385, %v673
  %v2472 = vmul.f32 %v2390, %v673
  %v2473 = vmul.f32 %v2395, %v673
  %v2474 = vmul.f32 %v2400, %v673
  %v2475 = vmul.f32 %v2405, %v673
  %v2476 = vmul.f32 %v2410, %v673
  %v2477 = vadd.f32 %v2413, %v743
  %v2478 = vadd.f32 %v2414, %v743
  %v2479 = vadd.f32 %v2415, %v743
  %v2480 = vadd.f32 %v2416, %v743
  %v2481 = vadd.f32 %v2417, %v743
  %v2482 = vadd.f32 %v2418, %v743
  %v2483 = vadd.f32 %v2419, %v743
  %v2484 = vadd.f32 %v2420, %v743
  %v2485 = vadd.f32 %v2421, %v743
  %v2486 = vadd.f32 %v2422, %v743
  %v2487 = vadd.f32 %v2423, %v743
  %v2488 = vadd.f32 %v2424, %v743
  %v2489 = vadd.f32 %v2425, %v743
  %v2490 = vadd.f32 %v2426, %v743
  %v2491 = vadd.f32 %v2427, %v743
  %v2492 = vadd.f32 %v2428, %v743
  %v2493 = vadd.f32 %v2429, %v743
  %v2494 = vadd.f32 %v2430, %v743
  %v2495 = vadd.f32 %v2431, %v743
  %v2496 = vadd.f32 %v2432, %v743
  %v2497 = vadd.f32 %v2433, %v743
  %v2498 = vadd.f32 %v2434, %v743
  %v2499 = vadd.f32 %v2435, %v743
  %v2500 = vadd.f32 %v2436, %v743
  %v2501 = vadd.f32 %v2437, %v743
  %v2502 = vadd.f32 %v2438, %v743
  %v2503 = vadd.f32 %v2439, %v743
  %v2504 = vadd.f32 %v2440, %v743
  %v2505 = vadd.f32 %v2441, %v743
  %v2506 = vadd.f32 %v2442, %v743
  %v2507 = vadd.f32 %v2443, %v743
  %v2508 = vadd.f32 %v2444, %v743
  %v2509 = vadd.f32 %v2445, %v743
  %v2510 = vadd.f32 %v2446, %v743
  %v2511 = vadd.f32 %v2447, %v743
  %v2512 = vadd.f32 %v2448, %v743
  %v2513 = vadd.f32 %v2449, %v743
  %v2514 = vadd.f32 %v2450, %v743
  %v2515 = vadd.f32 %v2451, %v743
  %v2516 = vadd.f32 %v2452, %v743
  %v2517 = vadd.f32 %v2453, %v743
  %v2518 = vadd.f32 %v2454, %v743
  %v2519 = vadd.f32 %v2455, %v743
  %v2520 = vadd.f32 %v2456, %v743
  %v2521 = vadd.f32 %v2457, %v743
  %v2522 = vadd.f32 %v2458, %v743
  %v2523 = vadd.f32 %v2459, %v743
  %v2524 = vadd.f32 %v2460, %v743
  %v2525 = vadd.f32 %v2461, %v743
  %v2526 = vadd.f32 %v2462, %v743
  %v2527 = vadd.f32 %v2463, %v743
  %v2528 = vadd.f32 %v2464, %v743
  %v2529 = vadd.f32 %v2465, %v743
  %v2530 = vadd.f32 %v2466, %v743
  %v2531 = vadd.f32 %v2467, %v743
  %v2532 = vadd.f32 %v2468, %v743
  %v2533 = vadd.f32 %v2469, %v743
  %v2534 = vadd.f32 %v2470, %v743
  %v2535 = vadd.f32 %v2471, %v743
  %v2536 = vadd.f32 %v2472, %v743
  %v2537 = vadd.f32 %v2473, %v743
  %v2538 = vadd.f32 %v2474, %v743
  %v2539 = vadd.f32 %v2475, %v743
  %v2540 = vadd.f32 %v2476, %v743
  %v2541 = vmax.f32 %v2477, 0.0
  %v2542 = vmax.f32 %v2478, 0.0
  %v2543 = vmax.f32 %v2479, 0.0
  %v2544 = vmax.f32 %v2480, 0.0
  %v2545 = vmax.f32 %v2481, 0.0
  %v2546 = vmax.f32 %v2482, 0.0
  %v2547 = vmax.f32 %v2483, 0.0
  %v2548 = vmax.f32 %v2484, 0.0
  %v2549 = vmax.f32 %v2485, 0.0
  %v2550 = vmax.f32 %v2486, 0.0
  %v2551 = vmax.f32 %v2487, 0.0
  %v2552 = vmax.f32 %v2488, 0.0
  %v2553 = vmax.f32 %v2489, 0.0
  %v2554 = vmax.f32 %v2490, 0.0
  %v2555 = vmax.f32 %v2491, 0.0
  %v2556 = vmax.f32 %v2492, 0.0
  %v2557 = vmax.f32 %v2493, 0.0
  %v2558 = vmax.f32 %v2494, 0.0
  %v2559 = vmax.f32 %v2495, 0.0
  %v2560 = vmax.f32 %v2496, 0.0
  %v2561 = vmax.f32 %v2497, 0.0
  %v2562 = vmax.f32 %v2498, 0.0
  %v2563 = vmax.f32 %v2499, 0.0
  %v2564 = vmax.f32 %v2500, 0.0
  %v2565 = vmax.f32 %v2501, 0.0
  %v2566 = vmax.f32 %v2502, 0.0
  %v2567 = vmax.f32 %v2503, 0.0
  %v2568 = vmax.f32 %v2504, 0.0
  %v2569 = vmax.f32 %v2505, 0.0
  %v2570 = vmax.f32 %v2506, 0.0
  %v2571 = vmax.f32 %v2507, 0.0
  %v2572 = vmax.f32 %v2508, 0.0
  %v2573 = vmax.f32 %v2509, 0.0
  %v2574 = vmax.f32 %v2510, 0.0
  %v2575 = vmax.f32 %v2511, 0.0
  %v2576 = vmax.f32 %v2512, 0.0
  %v2577 = vmax.f32 %v2513, 0.0
  %v2578 = vmax.f32 %v2514, 0.0
  %v2579 = vmax.f32 %v2515, 0.0
  %v2580 = vmax.f32 %v2516, 0.0
  %v2581 = vmax.f32 %v2517, 0.0
  %v2582 = vmax.f32 %v2518, 0.0
  %v2583 = vmax.f32 %v2519, 0.0
  %v2584 = vmax.f32 %v2520, 0.0
  %v2585 = vmax.f32 %v2521, 0.0
  %v2586 = vmax.f32 %v2522, 0.0
  %v2587 = vmax.f32 %v2523, 0.0
  %v2588 = vmax.f32 %v2524, 0.0
  %v2589 = vmax.f32 %v2525, 0.0
  %v2590 = vmax.f32 %v2526, 0.0
  %v2591 = vmax.f32 %v2527, 0.0
  %v2592 = vmax.f32 %v2528, 0.0
  %v2593 = vmax.f32 %v2529, 0.0
  %v2594 = vmax.f32 %v2530, 0.0
  %v2595 = vmax.f32 %v2531, 0.0
  %v2596 = vmax.f32 %v2532, 0.0
  %v2597 = vmax.f32 %v2533, 0.0
  %v2598 = vmax.f32 %v2534, 0.0
  %v2599 = vmax.f32 %v2535, 0.0
  %v2600 = vmax.f32 %v2536, 0.0
  %v2601 = vmax.f32 %v2537, 0.0
  %v2602 = vmax.f32 %v2538, 0.0
  %v2603 = vmax.f32 %v2539, 0.0
  %v2604 = vmax.f32 %v2540, 0.0
  %v2605 = vmax.f32 %v1707, %v2541
  %v2606 = vmax.f32 %v1708, %v2542
  %v2607 = vmax.f32 %v1709, %v2543
  %v2608 = vmax.f32 %v1710, %v2544
  %v2609 = vmax.f32 %v1711, %v2545
  %v2610 = vmax.f32 %v1712, %v2546
  %v2611 = vmax.f32 %v1713, %v2547
  %v2612 = vmax.f32 %v1714, %v2548
  %v2613 = vmax.f32 %v1715, %v2549
  %v2614 = vmax.f32 %v1716, %v2550
  %v2615 = vmax.f32 %v1717, %v2551
  %v2616 = vmax.f32 %v1718, %v2552
  %v2617 = vmax.f32 %v1719, %v2553
  %v2618 = vmax.f32 %v1720, %v2554
  %v2619 = vmax.f32 %v1721, %v2555
  %v2620 = vmax.f32 %v1722, %v2556
  %v2621 = vmax.f32 %v1723, %v2557
  %v2622 = vmax.f32 %v1724, %v2558
  %v2623 = vmax.f32 %v1725, %v2559
  %v2624 = vmax.f32 %v1726, %v2560
  %v2625 = vmax.f32 %v1727, %v2561
  %v2626 = vmax.f32 %v1728, %v2562
  %v2627 = vmax.f32 %v1729, %v2563
  %v2628 = vmax.f32 %v1730, %v2564
  %v2629 = vmax.f32 %v1731, %v2565
  %v2630 = vmax.f32 %v1732, %v2566
  %v2631 = vmax.f32 %v1733, %v2567
  %v2632 = vmax.f32 %v1734, %v2568
  %v2633 = vmax.f32 %v1735, %v2569
  %v2634 = vmax.f32 %v1736, %v2570
  %v2635 = vmax.f32 %v1737, %v2571
  %v2636 = vmax.f32 %v1738, %v2572
  %v2637 = vmax.f32 %v1739, %v2573
  %v2638 = vmax.f32 %v1740, %v2574
  %v2639 = vmax.f32 %v1741, %v2575
  %v2640 = vmax.f32 %v1742, %v2576
  %v2641 = vmax.f32 %v1743, %v2577
  %v2642 = vmax.f32 %v1744, %v2578
  %v2643 = vmax.f32 %v1745, %v2579
  %v2644 = vmax.f32 %v1746, %v2580
  %v2645 = vmax.f32 %v1747, %v2581
  %v2646 = vmax.f32 %v1748, %v2582
  %v2647 = vmax.f32 %v1749, %v2583
  %v2648 = vmax.f32 %v1750, %v2584
  %v2649 = vmax.f32 %v1751, %v2585
  %v2650 = vmax.f32 %v1752, %v2586
  %v2651 = vmax.f32 %v1753, %v2587
  %v2652 = vmax.f32 %v1754, %v2588
  %v2653 = vmax.f32 %v1755, %v2589
  %v2654 = vmax.f32 %v1756, %v2590
  %v2655 = vmax.f32 %v1757, %v2591
  %v2656 = vmax.f32 %v1758, %v2592
  %v2657 = vmax.f32 %v1759, %v2593
  %v2658 = vmax.f32 %v1760, %v2594
  %v2659 = vmax.f32 %v1761, %v2595
  %v2660 = vmax.f32 %v1762, %v2596
  %v2661 = vmax.f32 %v1763, %v2597
  %v2662 = vmax.f32 %v1764, %v2598
  %v2663 = vmax.f32 %v1765, %v2599
  %v2664 = vmax.f32 %v1766, %v2600
  %v2665 = vmax.f32 %v1767, %v2601
  %v2666 = vmax.f32 %v1768, %v2602
  %v2667 = vmax.f32 %v1769, %v2603
  %v2668 = vmax.f32 %v1770, %v2604
  %s2669 = scalar_lea.vmem %s0, 1536
  %v2670 = vld [vmem:[%s2669] sm:$0xff]
  %v2671 = vld [vmem:[%s2669 + $0x8] sm:$0xff]
  %v2672 = vld [vmem:[%s2669 + $0x10] sm:$0xff]
  %v2673 = vld [vmem:[%s2669 + $0x18] sm:$0xff]
  %v2674 = vld [vmem:[%s2669 + $0x20] sm:$0xff]
  %v2675 = vld [vmem:[%s2669 + $0x28] sm:$0xff]
  %v2676 = vld [vmem:[%s2669 + $0x30] sm:$0xff]
  %v2677 = vld [vmem:[%s2669 + $0x38] sm:$0xff]
  %v2678 = vld [vmem:[%s2669 + $0x40] sm:$0xff]
  %v2679 = vld [vmem:[%s2669 + $0x48] sm:$0xff]
  %v2680 = vld [vmem:[%s2669 + $0x50] sm:$0xff]
  %v2681 = vld [vmem:[%s2669 + $0x58] sm:$0xff]
  %v2682 = vld [vmem:[%s2669 + $0x60] sm:$0xff]
  %v2683 = vld [vmem:[%s2669 + $0x68] sm:$0xff]
  %v2684 = vld [vmem:[%s2669 + $0x70] sm:$0xff]
  %v2685 = vld [vmem:[%s2669 + $0x78] sm:$0xff]
  %v2686 = vld [vmem:[%s2669 + $0x80] sm:$0xff]
  %v2687 = vld [vmem:[%s2669 + $0x88] sm:$0xff]
  %v2688 = vld [vmem:[%s2669 + $0x90] sm:$0xff]
  %v2689 = vld [vmem:[%s2669 + $0x98] sm:$0xff]
  %v2690 = vld [vmem:[%s2669 + $0xa0] sm:$0xff]
  %v2691 = vld [vmem:[%s2669 + $0xa8] sm:$0xff]
  %v2692 = vld [vmem:[%s2669 + $0xb0] sm:$0xff]
  %v2693 = vld [vmem:[%s2669 + $0xb8] sm:$0xff]
  %v2694 = vld [vmem:[%s2669 + $0xc0] sm:$0xff]
  %v2695 = vld [vmem:[%s2669 + $0xc8] sm:$0xff]
  %v2696 = vld [vmem:[%s2669 + $0xd0] sm:$0xff]
  %v2697 = vld [vmem:[%s2669 + $0xd8] sm:$0xff]
  %v2698 = vld [vmem:[%s2669 + $0xe0] sm:$0xff]
  %v2699 = vld [vmem:[%s2669 + $0xe8] sm:$0xff]
  %v2700 = vld [vmem:[%s2669 + $0xf0] sm:$0xff]
  %v2701 = vld [vmem:[%s2669 + $0xf8] sm:$0xff]
  %v2702 = vld [vmem:[%s2669 + $0x100] sm:$0xff]
  %v2703 = vld [vmem:[%s2669 + $0x108] sm:$0xff]
  %v2704 = vld [vmem:[%s2669 + $0x110] sm:$0xff]
  %v2705 = vld [vmem:[%s2669 + $0x118] sm:$0xff]
  %v2706 = vld [vmem:[%s2669 + $0x120] sm:$0xff]
  %v2707 = vld [vmem:[%s2669 + $0x128] sm:$0xff]
  %v2708 = vld [vmem:[%s2669 + $0x130] sm:$0xff]
  %v2709 = vld [vmem:[%s2669 + $0x138] sm:$0xff]
  %v2710 = vld [vmem:[%s2669 + $0x140] sm:$0xff]
  %v2711 = vld [vmem:[%s2669 + $0x148] sm:$0xff]
  %v2712 = vld [vmem:[%s2669 + $0x150] sm:$0xff]
  %v2713 = vld [vmem:[%s2669 + $0x158] sm:$0xff]
  %v2714 = vld [vmem:[%s2669 + $0x160] sm:$0xff]
  %v2715 = vld [vmem:[%s2669 + $0x168] sm:$0xff]
  %v2716 = vld [vmem:[%s2669 + $0x170] sm:$0xff]
  %v2717 = vld [vmem:[%s2669 + $0x178] sm:$0xff]
  %v2718 = vld [vmem:[%s2669 + $0x180] sm:$0xff]
  %v2719 = vld [vmem:[%s2669 + $0x188] sm:$0xff]
  %v2720 = vld [vmem:[%s2669 + $0x190] sm:$0xff]
  %v2721 = vld [vmem:[%s2669 + $0x198] sm:$0xff]
  %v2722 = vld [vmem:[%s2669 + $0x1a0] sm:$0xff]
  %v2723 = vld [vmem:[%s2669 + $0x1a8] sm:$0xff]
  %v2724 = vld [vmem:[%s2669 + $0x1b0] sm:$0xff]
  %v2725 = vld [vmem:[%s2669 + $0x1b8] sm:$0xff]
  %v2726 = vld [vmem:[%s2669 + $0x1c0] sm:$0xff]
  %v2727 = vld [vmem:[%s2669 + $0x1c8] sm:$0xff]
  %v2728 = vld [vmem:[%s2669 + $0x1d0] sm:$0xff]
  %v2729 = vld [vmem:[%s2669 + $0x1d8] sm:$0xff]
  %v2730 = vld [vmem:[%s2669 + $0x1e0] sm:$0xff]
  %v2731 = vld [vmem:[%s2669 + $0x1e8] sm:$0xff]
  %v2732 = vld [vmem:[%s2669 + $0x1f0] sm:$0xff]
  %v2733 = vld [vmem:[%s2669 + $0x1f8] sm:$0xff]
  %v2735 = vsel %vm87, %v2670, 0
  %v2738 = vsel %vm87, %v2671, 0
  %v2741 = vsel %vm87, %v2672, 0
  %v2744 = vsel %vm87, %v2673, 0
  %v2747 = vsel %vm87, %v2674, 0
  %v2750 = vsel %vm87, %v2675, 0
  %v2753 = vsel %vm87, %v2676, 0
  %v2756 = vsel %vm87, %v2677, 0
  %v2759 = vsel %vm87, %v2678, 0
  %v2762 = vsel %vm87, %v2679, 0
  %v2765 = vsel %vm87, %v2680, 0
  %v2768 = vsel %vm87, %v2681, 0
  %v2771 = vsel %vm87, %v2682, 0
  %v2774 = vsel %vm87, %v2683, 0
  %v2777 = vsel %vm87, %v2684, 0
  %v2780 = vsel %vm87, %v2685, 0
  %v2783 = vsel %vm87, %v2686, 0
  %v2786 = vsel %vm87, %v2687, 0
  %v2789 = vsel %vm87, %v2688, 0
  %v2792 = vsel %vm87, %v2689, 0
  %v2795 = vsel %vm87, %v2690, 0
  %v2798 = vsel %vm87, %v2691, 0
  %v2801 = vsel %vm87, %v2692, 0
  %v2804 = vsel %vm87, %v2693, 0
  %v2807 = vsel %vm87, %v2694, 0
  %v2810 = vsel %vm87, %v2695, 0
  %v2813 = vsel %vm87, %v2696, 0
  %v2816 = vsel %vm87, %v2697, 0
  %v2819 = vsel %vm87, %v2698, 0
  %v2822 = vsel %vm87, %v2699, 0
  %v2825 = vsel %vm87, %v2700, 0
  %v2828 = vsel %vm87, %v2701, 0
  %v2831 = vsel %vm87, %v2702, 0
  %v2834 = vsel %vm87, %v2703, 0
  %v2837 = vsel %vm87, %v2704, 0
  %v2840 = vsel %vm87, %v2705, 0
  %v2843 = vsel %vm87, %v2706, 0
  %v2846 = vsel %vm87, %v2707, 0
  %v2849 = vsel %vm87, %v2708, 0
  %v2852 = vsel %vm87, %v2709, 0
  %v2855 = vsel %vm87, %v2710, 0
  %v2858 = vsel %vm87, %v2711, 0
  %v2861 = vsel %vm87, %v2712, 0
  %v2864 = vsel %vm87, %v2713, 0
  %v2867 = vsel %vm87, %v2714, 0
  %v2870 = vsel %vm87, %v2715, 0
  %v2873 = vsel %vm87, %v2716, 0
  %v2876 = vsel %vm87, %v2717, 0
  %v2879 = vsel %vm87, %v2718, 0
  %v2882 = vsel %vm87, %v2719, 0
  %v2885 = vsel %vm87, %v2720, 0
  %v2888 = vsel %vm87, %v2721, 0
  %v2891 = vsel %vm87, %v2722, 0
  %v2894 = vsel %vm87, %v2723, 0
  %v2897 = vsel %vm87, %v2724, 0
  %v2900 = vsel %vm87, %v2725, 0
  %v2903 = vsel %vm87, %v2726, 0
  %v2906 = vsel %vm87, %v2727, 0
  %v2909 = vsel %vm87, %v2728, 0
  %v2912 = vsel %vm87, %v2729, 0
  %v2915 = vsel %vm87, %v2730, 0
  %v2918 = vsel %vm87, %v2731, 0
  %v2921 = vsel %vm87, %v2732, 0
  %v2924 = vsel %vm87, %v2733, 0
  %2926 = vmatprep.subr.mxu0 0.0
  %2927 = vmatpush1.msra.mxu0 %v17
  %2928 = vmatprep.subr.mxu0 0.0
  %2929 = vmatpush1.msra.mxu0 %v18
  %2930 = vmatprep.subr.mxu0 0.0
  %2931 = vmatpush1.msra.mxu0 %v19
  %2932 = vmatprep.subr.mxu0 0.0
  %2933 = vmatpush1.msra.mxu0 %v282
  %2934 = vmatprep.subr.mxu0 0.0
  %2935 = vmatpush1.msra.mxu0 0.0
  %2936 = vmatprep.subr.mxu0 0.0
  %2937 = vmatpush1.msra.mxu0 0.0
  %2938 = vmatprep.subr.mxu0 0.0
  %2939 = vmatpush1.msra.mxu0 0.0
  %2940 = vmatprep.subr.mxu0 0.0
  %2941 = vmatpush1.msra.mxu0 0.0
  %2942 = vmatprep.subr.mxu0 0.0
  %2943 = vmatpush1.msra.mxu0 0.0
  %2944 = vmatprep.subr.mxu0 0.0
  %2945 = vmatpush1.msra.mxu0 0.0
  %2946 = vmatprep.subr.mxu0 0.0
  %2947 = vmatpush1.msra.mxu0 0.0
  %2948 = vmatprep.subr.mxu0 0.0
  %2949 = vmatpush1.msra.mxu0 0.0
  %2950 = vmatprep.subr.mxu0 0.0
  %2951 = vmatpush1.msra.mxu0 0.0
  %2952 = vmatprep.subr.mxu0 0.0
  %2953 = vmatpush1.msra.mxu0 0.0
  %2954 = vmatprep.subr.mxu0 0.0
  %2955 = vmatpush1.msra.mxu0 0.0
  %2956 = vmatprep.subr.mxu0 0.0
  %2957 = vmatpush1.msra.mxu0 0.0
  %2958 = vmatprep.subr.mxu0 0.0
  %2959 = vmatpush1.msra.mxu0 0.0
  %2960 = vmatprep.subr.mxu0 0.0
  %2961 = vmatpush1.msra.mxu0 0.0
  %2962 = vmatprep.subr.mxu0 0.0
  %2963 = vmatpush1.msra.mxu0 0.0
  %2964 = vmatprep.subr.mxu0 0.0
  %2965 = vmatpush1.msra.mxu0 0.0
  %2966 = vmatprep.subr.mxu0 0.0
  %2967 = vmatpush1.msra.mxu0 0.0
  %2968 = vmatprep.subr.mxu0 0.0
  %2969 = vmatpush1.msra.mxu0 0.0
  %2970 = vmatprep.subr.mxu0 0.0
  %2971 = vmatpush1.msra.mxu0 0.0
  %2972 = vmatprep.subr.mxu0 0.0
  %2973 = vmatpush1.msra.mxu0 0.0
  %2974 = vmatprep.subr.mxu0 0.0
  %2975 = vmatpush1.msra.mxu0 0.0
  %2976 = vmatprep.subr.mxu0 0.0
  %2977 = vmatpush1.msra.mxu0 0.0
  %2978 = vmatprep.subr.mxu0 0.0
  %2979 = vmatpush1.msra.mxu0 0.0
  %2980 = vmatprep.subr.mxu0 0.0
  %2981 = vmatpush1.msra.mxu0 0.0
  %2982 = vmatprep.subr.mxu0 0.0
  %2983 = vmatpush1.msra.mxu0 0.0
  %2984 = vmatprep.subr.mxu0 0.0
  %2985 = vmatpush1.msra.mxu0 0.0
  %2986 = vmatprep.subr.mxu0 0.0
  %2987 = vmatpush1.msra.mxu0 0.0
  %2988 = vmatprep.subr.mxu0 0.0
  %2989 = vmatpush1.msra.mxu0 0.0
  %2990 = vmatprep.mubr.f32.mxu0 0.0
  %2991 = vmatmul.mubr.f32.gmra.mrb[0].mxu0 %v2735
  %v2992 = vpop.f32.mrb[0].mxu0
  %v2993 = vadd.f32 0.0, %v2992
  %v2994 = vpop.f32.mrb[0].mxu0
  %2995 = vmatprep.mubr.f32.mxu0 0.0
  %2996 = vmatmul.mubr.f32.gmra.mrb[0].mxu0 %v2738
  %v2997 = vpop.f32.mrb[0].mxu0
  %v2998 = vadd.f32 0.0, %v2997
  %v2999 = vpop.f32.mrb[0].mxu0
  %3000 = vmatprep.mubr.f32.mxu0 0.0
  %3001 = vmatmul.mubr.f32.gmra.mrb[0].mxu0 %v2741
  %v3002 = vpop.f32.mrb[0].mxu0
  %v3003 = vadd.f32 0.0, %v3002
  %v3004 = vpop.f32.mrb[0].mxu0
  %3005 = vmatprep.mubr.f32.mxu0 0.0
  %3006 = vmatmul.mubr.f32.gmra.mrb[0].mxu0 %v2744
  %v3007 = vpop.f32.mrb[0].mxu0
  %v3008 = vadd.f32 0.0, %v3007
  %v3009 = vpop.f32.mrb[0].mxu0
  %3010 = vmatprep.mubr.f32.mxu0 0.0
  %3011 = vmatmul.mubr.f32.gmra.mrb[0].mxu0 %v2747
  %v3012 = vpop.f32.mrb[0].mxu0
  %v3013 = vadd.f32 0.0, %v3012
  %v3014 = vpop.f32.mrb[0].mxu0
  %3015 = vmatprep.mubr.f32.mxu0 0.0
  %3016 = vmatmul.mubr.f32.gmra.mrb[0].mxu0 %v2750
  %v3017 = vpop.f32.mrb[0].mxu0
  %v3018 = vadd.f32 0.0, %v3017
  %v3019 = vpop.f32.mrb[0].mxu0
  %3020 = vmatprep.mubr.f32.mxu0 0.0
  %3021 = vmatmul.mubr.f32.gmra.mrb[0].mxu0 %v2753
  %v3022 = vpop.f32.mrb[0].mxu0
  %v3023 = vadd.f32 0.0, %v3022
  %v3024 = vpop.f32.mrb[0].mxu0
  %3025 = vmatprep.mubr.f32.mxu0 0.0
  %3026 = vmatmul.mubr.f32.gmra.mrb[0].mxu0 %v2756
  %v3027 = vpop.f32.mrb[0].mxu0
  %v3028 = vadd.f32 0.0, %v3027
  %v3029 = vpop.f32.mrb[0].mxu0
  %3030 = vmatprep.mubr.f32.mxu0 0.0
  %3031 = vmatmul.mubr.f32.gmra.mrb[0].mxu0 %v2759
  %v3032 = vpop.f32.mrb[0].mxu0
  %v3033 = vadd.f32 0.0, %v3032
  %v3034 = vpop.f32.mrb[0].mxu0
  %3035 = vmatprep.mubr.f32.mxu0 0.0
  %3036 = vmatmul.mubr.f32.gmra.mrb[0].mxu0 %v2762
  %v3037 = vpop.f32.mrb[0].mxu0
  %v3038 = vadd.f32 0.0, %v3037
  %v3039 = vpop.f32.mrb[0].mxu0
  %3040 = vmatprep.mubr.f32.mxu0 0.0
  %3041 = vmatmul.mubr.f32.gmra.mrb[0].mxu0 %v2765
  %v3042 = vpop.f32.mrb[0].mxu0
  %v3043 = vadd.f32 0.0, %v3042
  %v3044 = vpop.f32.mrb[0].mxu0
  %3045 = vmatprep.mubr.f32.mxu0 0.0
  %3046 = vmatmul.mubr.f32.gmra.mrb[0].mxu0 %v2768
  %v3047 = vpop.f32.mrb[0].mxu0
  %v3048 = vadd.f32 0.0, %v3047
  %v3049 = vpop.f32.mrb[0].mxu0
  %3050 = vmatprep.mubr.f32.mxu0 0.0
  %3051 = vmatmul.mubr.f32.gmra.mrb[0].mxu0 %v2771
  %v3052 = vpop.f32.mrb[0].mxu0
  %v3053 = vadd.f32 0.0, %v3052
  %v3054 = vpop.f32.mrb[0].mxu0
  %3055 = vmatprep.mubr.f32.mxu0 0.0
  %3056 = vmatmul.mubr.f32.gmra.mrb[0].mxu0 %v2774
  %v3057 = vpop.f32.mrb[0].mxu0
  %v3058 = vadd.f32 0.0, %v3057
  %v3059 = vpop.f32.mrb[0].mxu0
  %3060 = vmatprep.mubr.f32.mxu0 0.0
  %3061 = vmatmul.mubr.f32.gmra.mrb[0].mxu0 %v2777
  %v3062 = vpop.f32.mrb[0].mxu0
  %v3063 = vadd.f32 0.0, %v3062
  %v3064 = vpop.f32.mrb[0].mxu0
  %3065 = vmatprep.mubr.f32.mxu0 0.0
  %3066 = vmatmul.mubr.f32.gmra.mrb[0].mxu0 %v2780
  %v3067 = vpop.f32.mrb[0].mxu0
  %v3068 = vadd.f32 0.0, %v3067
  %v3069 = vpop.f32.mrb[0].mxu0
  %3070 = vmatprep.mubr.f32.mxu0 0.0
  %3071 = vmatmul.mubr.f32.gmra.mrb[0].mxu0 %v2783
  %v3072 = vpop.f32.mrb[0].mxu0
  %v3073 = vadd.f32 0.0, %v3072
  %v3074 = vpop.f32.mrb[0].mxu0
  %3075 = vmatprep.mubr.f32.mxu0 0.0
  %3076 = vmatmul.mubr.f32.gmra.mrb[0].mxu0 %v2786
  %v3077 = vpop.f32.mrb[0].mxu0
  %v3078 = vadd.f32 0.0, %v3077
  %v3079 = vpop.f32.mrb[0].mxu0
  %3080 = vmatprep.mubr.f32.mxu0 0.0
  %3081 = vmatmul.mubr.f32.gmra.mrb[0].mxu0 %v2789
  %v3082 = vpop.f32.mrb[0].mxu0
  %v3083 = vadd.f32 0.0, %v3082
  %v3084 = vpop.f32.mrb[0].mxu0
  %3085 = vmatprep.mubr.f32.mxu0 0.0
  %3086 = vmatmul.mubr.f32.gmra.mrb[0].mxu0 %v2792
  %v3087 = vpop.f32.mrb[0].mxu0
  %v3088 = vadd.f32 0.0, %v3087
  %v3089 = vpop.f32.mrb[0].mxu0
  %3090 = vmatprep.mubr.f32.mxu0 0.0
  %3091 = vmatmul.mubr.f32.gmra.mrb[0].mxu0 %v2795
  %v3092 = vpop.f32.mrb[0].mxu0
  %v3093 = vadd.f32 0.0, %v3092
  %v3094 = vpop.f32.mrb[0].mxu0
  %3095 = vmatprep.mubr.f32.mxu0 0.0
  %3096 = vmatmul.mubr.f32.gmra.mrb[0].mxu0 %v2798
  %v3097 = vpop.f32.mrb[0].mxu0
  %v3098 = vadd.f32 0.0, %v3097
  %v3099 = vpop.f32.mrb[0].mxu0
  %3100 = vmatprep.mubr.f32.mxu0 0.0
  %3101 = vmatmul.mubr.f32.gmra.mrb[0].mxu0 %v2801
  %v3102 = vpop.f32.mrb[0].mxu0
  %v3103 = vadd.f32 0.0, %v3102
  %v3104 = vpop.f32.mrb[0].mxu0
  %3105 = vmatprep.mubr.f32.mxu0 0.0
  %3106 = vmatmul.mubr.f32.gmra.mrb[0].mxu0 %v2804
  %v3107 = vpop.f32.mrb[0].mxu0
  %v3108 = vadd.f32 0.0, %v3107
  %v3109 = vpop.f32.mrb[0].mxu0
  %3110 = vmatprep.mubr.f32.mxu0 0.0
  %3111 = vmatmul.mubr.f32.gmra.mrb[0].mxu0 %v2807
  %v3112 = vpop.f32.mrb[0].mxu0
  %v3113 = vadd.f32 0.0, %v3112
  %v3114 = vpop.f32.mrb[0].mxu0
  %3115 = vmatprep.mubr.f32.mxu0 0.0
  %3116 = vmatmul.mubr.f32.gmra.mrb[0].mxu0 %v2810
  %v3117 = vpop.f32.mrb[0].mxu0
  %v3118 = vadd.f32 0.0, %v3117
  %v3119 = vpop.f32.mrb[0].mxu0
  %3120 = vmatprep.mubr.f32.mxu0 0.0
  %3121 = vmatmul.mubr.f32.gmra.mrb[0].mxu0 %v2813
  %v3122 = vpop.f32.mrb[0].mxu0
  %v3123 = vadd.f32 0.0, %v3122
  %v3124 = vpop.f32.mrb[0].mxu0
  %3125 = vmatprep.mubr.f32.mxu0 0.0
  %3126 = vmatmul.mubr.f32.gmra.mrb[0].mxu0 %v2816
  %v3127 = vpop.f32.mrb[0].mxu0
  %v3128 = vadd.f32 0.0, %v3127
  %v3129 = vpop.f32.mrb[0].mxu0
  %3130 = vmatprep.mubr.f32.mxu0 0.0
  %3131 = vmatmul.mubr.f32.gmra.mrb[0].mxu0 %v2819
  %v3132 = vpop.f32.mrb[0].mxu0
  %v3133 = vadd.f32 0.0, %v3132
  %v3134 = vpop.f32.mrb[0].mxu0
  %3135 = vmatprep.mubr.f32.mxu0 0.0
  %3136 = vmatmul.mubr.f32.gmra.mrb[0].mxu0 %v2822
  %v3137 = vpop.f32.mrb[0].mxu0
  %v3138 = vadd.f32 0.0, %v3137
  %v3139 = vpop.f32.mrb[0].mxu0
  %3140 = vmatprep.mubr.f32.mxu0 0.0
  %3141 = vmatmul.mubr.f32.gmra.mrb[0].mxu0 %v2825
  %v3142 = vpop.f32.mrb[0].mxu0
  %v3143 = vadd.f32 0.0, %v3142
  %v3144 = vpop.f32.mrb[0].mxu0
  %3145 = vmatprep.mubr.f32.mxu0 0.0
  %3146 = vmatmul.mubr.f32.gmra.mrb[0].mxu0 %v2828
  %v3147 = vpop.f32.mrb[0].mxu0
  %v3148 = vadd.f32 0.0, %v3147
  %v3149 = vpop.f32.mrb[0].mxu0
  %3150 = vmatprep.mubr.f32.mxu0 0.0
  %3151 = vmatmul.mubr.f32.gmra.mrb[0].mxu0 %v2831
  %v3152 = vpop.f32.mrb[0].mxu0
  %v3153 = vadd.f32 0.0, %v3152
  %v3154 = vpop.f32.mrb[0].mxu0
  %3155 = vmatprep.mubr.f32.mxu0 0.0
  %3156 = vmatmul.mubr.f32.gmra.mrb[0].mxu0 %v2834
  %v3157 = vpop.f32.mrb[0].mxu0
  %v3158 = vadd.f32 0.0, %v3157
  %v3159 = vpop.f32.mrb[0].mxu0
  %3160 = vmatprep.mubr.f32.mxu0 0.0
  %3161 = vmatmul.mubr.f32.gmra.mrb[0].mxu0 %v2837
  %v3162 = vpop.f32.mrb[0].mxu0
  %v3163 = vadd.f32 0.0, %v3162
  %v3164 = vpop.f32.mrb[0].mxu0
  %3165 = vmatprep.mubr.f32.mxu0 0.0
  %3166 = vmatmul.mubr.f32.gmra.mrb[0].mxu0 %v2840
  %v3167 = vpop.f32.mrb[0].mxu0
  %v3168 = vadd.f32 0.0, %v3167
  %v3169 = vpop.f32.mrb[0].mxu0
  %3170 = vmatprep.mubr.f32.mxu0 0.0
  %3171 = vmatmul.mubr.f32.gmra.mrb[0].mxu0 %v2843
  %v3172 = vpop.f32.mrb[0].mxu0
  %v3173 = vadd.f32 0.0, %v3172
  %v3174 = vpop.f32.mrb[0].mxu0
  %3175 = vmatprep.mubr.f32.mxu0 0.0
  %3176 = vmatmul.mubr.f32.gmra.mrb[0].mxu0 %v2846
  %v3177 = vpop.f32.mrb[0].mxu0
  %v3178 = vadd.f32 0.0, %v3177
  %v3179 = vpop.f32.mrb[0].mxu0
  %3180 = vmatprep.mubr.f32.mxu0 0.0
  %3181 = vmatmul.mubr.f32.gmra.mrb[0].mxu0 %v2849
  %v3182 = vpop.f32.mrb[0].mxu0
  %v3183 = vadd.f32 0.0, %v3182
  %v3184 = vpop.f32.mrb[0].mxu0
  %3185 = vmatprep.mubr.f32.mxu0 0.0
  %3186 = vmatmul.mubr.f32.gmra.mrb[0].mxu0 %v2852
  %v3187 = vpop.f32.mrb[0].mxu0
  %v3188 = vadd.f32 0.0, %v3187
  %v3189 = vpop.f32.mrb[0].mxu0
  %3190 = vmatprep.mubr.f32.mxu0 0.0
  %3191 = vmatmul.mubr.f32.gmra.mrb[0].mxu0 %v2855
  %v3192 = vpop.f32.mrb[0].mxu0
  %v3193 = vadd.f32 0.0, %v3192
  %v3194 = vpop.f32.mrb[0].mxu0
  %3195 = vmatprep.mubr.f32.mxu0 0.0
  %3196 = vmatmul.mubr.f32.gmra.mrb[0].mxu0 %v2858
  %v3197 = vpop.f32.mrb[0].mxu0
  %v3198 = vadd.f32 0.0, %v3197
  %v3199 = vpop.f32.mrb[0].mxu0
  %3200 = vmatprep.mubr.f32.mxu0 0.0
  %3201 = vmatmul.mubr.f32.gmra.mrb[0].mxu0 %v2861
  %v3202 = vpop.f32.mrb[0].mxu0
  %v3203 = vadd.f32 0.0, %v3202
  %v3204 = vpop.f32.mrb[0].mxu0
  %3205 = vmatprep.mubr.f32.mxu0 0.0
  %3206 = vmatmul.mubr.f32.gmra.mrb[0].mxu0 %v2864
  %v3207 = vpop.f32.mrb[0].mxu0
  %v3208 = vadd.f32 0.0, %v3207
  %v3209 = vpop.f32.mrb[0].mxu0
  %3210 = vmatprep.mubr.f32.mxu0 0.0
  %3211 = vmatmul.mubr.f32.gmra.mrb[0].mxu0 %v2867
  %v3212 = vpop.f32.mrb[0].mxu0
  %v3213 = vadd.f32 0.0, %v3212
  %v3214 = vpop.f32.mrb[0].mxu0
  %3215 = vmatprep.mubr.f32.mxu0 0.0
  %3216 = vmatmul.mubr.f32.gmra.mrb[0].mxu0 %v2870
  %v3217 = vpop.f32.mrb[0].mxu0
  %v3218 = vadd.f32 0.0, %v3217
  %v3219 = vpop.f32.mrb[0].mxu0
  %3220 = vmatprep.mubr.f32.mxu0 0.0
  %3221 = vmatmul.mubr.f32.gmra.mrb[0].mxu0 %v2873
  %v3222 = vpop.f32.mrb[0].mxu0
  %v3223 = vadd.f32 0.0, %v3222
  %v3224 = vpop.f32.mrb[0].mxu0
  %3225 = vmatprep.mubr.f32.mxu0 0.0
  %3226 = vmatmul.mubr.f32.gmra.mrb[0].mxu0 %v2876
  %v3227 = vpop.f32.mrb[0].mxu0
  %v3228 = vadd.f32 0.0, %v3227
  %v3229 = vpop.f32.mrb[0].mxu0
  %3230 = vmatprep.mubr.f32.mxu0 0.0
  %3231 = vmatmul.mubr.f32.gmra.mrb[0].mxu0 %v2879
  %v3232 = vpop.f32.mrb[0].mxu0
  %v3233 = vadd.f32 0.0, %v3232
  %v3234 = vpop.f32.mrb[0].mxu0
  %3235 = vmatprep.mubr.f32.mxu0 0.0
  %3236 = vmatmul.mubr.f32.gmra.mrb[0].mxu0 %v2882
  %v3237 = vpop.f32.mrb[0].mxu0
  %v3238 = vadd.f32 0.0, %v3237
  %v3239 = vpop.f32.mrb[0].mxu0
  %3240 = vmatprep.mubr.f32.mxu0 0.0
  %3241 = vmatmul.mubr.f32.gmra.mrb[0].mxu0 %v2885
  %v3242 = vpop.f32.mrb[0].mxu0
  %v3243 = vadd.f32 0.0, %v3242
  %v3244 = vpop.f32.mrb[0].mxu0
  %3245 = vmatprep.mubr.f32.mxu0 0.0
  %3246 = vmatmul.mubr.f32.gmra.mrb[0].mxu0 %v2888
  %v3247 = vpop.f32.mrb[0].mxu0
  %v3248 = vadd.f32 0.0, %v3247
  %v3249 = vpop.f32.mrb[0].mxu0
  %3250 = vmatprep.mubr.f32.mxu0 0.0
  %3251 = vmatmul.mubr.f32.gmra.mrb[0].mxu0 %v2891
  %v3252 = vpop.f32.mrb[0].mxu0
  %v3253 = vadd.f32 0.0, %v3252
  %v3254 = vpop.f32.mrb[0].mxu0
  %3255 = vmatprep.mubr.f32.mxu0 0.0
  %3256 = vmatmul.mubr.f32.gmra.mrb[0].mxu0 %v2894
  %v3257 = vpop.f32.mrb[0].mxu0
  %v3258 = vadd.f32 0.0, %v3257
  %v3259 = vpop.f32.mrb[0].mxu0
  %3260 = vmatprep.mubr.f32.mxu0 0.0
  %3261 = vmatmul.mubr.f32.gmra.mrb[0].mxu0 %v2897
  %v3262 = vpop.f32.mrb[0].mxu0
  %v3263 = vadd.f32 0.0, %v3262
  %v3264 = vpop.f32.mrb[0].mxu0
  %3265 = vmatprep.mubr.f32.mxu0 0.0
  %3266 = vmatmul.mubr.f32.gmra.mrb[0].mxu0 %v2900
  %v3267 = vpop.f32.mrb[0].mxu0
  %v3268 = vadd.f32 0.0, %v3267
  %v3269 = vpop.f32.mrb[0].mxu0
  %3270 = vmatprep.mubr.f32.mxu0 0.0
  %3271 = vmatmul.mubr.f32.gmra.mrb[0].mxu0 %v2903
  %v3272 = vpop.f32.mrb[0].mxu0
  %v3273 = vadd.f32 0.0, %v3272
  %v3274 = vpop.f32.mrb[0].mxu0
  %3275 = vmatprep.mubr.f32.mxu0 0.0
  %3276 = vmatmul.mubr.f32.gmra.mrb[0].mxu0 %v2906
  %v3277 = vpop.f32.mrb[0].mxu0
  %v3278 = vadd.f32 0.0, %v3277
  %v3279 = vpop.f32.mrb[0].mxu0
  %3280 = vmatprep.mubr.f32.mxu0 0.0
  %3281 = vmatmul.mubr.f32.gmra.mrb[0].mxu0 %v2909
  %v3282 = vpop.f32.mrb[0].mxu0
  %v3283 = vadd.f32 0.0, %v3282
  %v3284 = vpop.f32.mrb[0].mxu0
  %3285 = vmatprep.mubr.f32.mxu0 0.0
  %3286 = vmatmul.mubr.f32.gmra.mrb[0].mxu0 %v2912
  %v3287 = vpop.f32.mrb[0].mxu0
  %v3288 = vadd.f32 0.0, %v3287
  %v3289 = vpop.f32.mrb[0].mxu0
  %3290 = vmatprep.mubr.f32.mxu0 0.0
  %3291 = vmatmul.mubr.f32.gmra.mrb[0].mxu0 %v2915
  %v3292 = vpop.f32.mrb[0].mxu0
  %v3293 = vadd.f32 0.0, %v3292
  %v3294 = vpop.f32.mrb[0].mxu0
  %3295 = vmatprep.mubr.f32.mxu0 0.0
  %3296 = vmatmul.mubr.f32.gmra.mrb[0].mxu0 %v2918
  %v3297 = vpop.f32.mrb[0].mxu0
  %v3298 = vadd.f32 0.0, %v3297
  %v3299 = vpop.f32.mrb[0].mxu0
  %3300 = vmatprep.mubr.f32.mxu0 0.0
  %3301 = vmatmul.mubr.f32.gmra.mrb[0].mxu0 %v2921
  %v3302 = vpop.f32.mrb[0].mxu0
  %v3303 = vadd.f32 0.0, %v3302
  %v3304 = vpop.f32.mrb[0].mxu0
  %3305 = vmatprep.mubr.f32.mxu0 0.0
  %3306 = vmatmul.mubr.f32.gmra.mrb[0].mxu0 %v2924
  %v3307 = vpop.f32.mrb[0].mxu0
  %v3308 = vadd.f32 0.0, %v3307
  %v3309 = vpop.f32.mrb[0].mxu0
  %3310 = vdwg.mxu0
  %v3311 = vmul.f32 %v2993, %v673
  %v3312 = vmul.f32 %v2998, %v673
  %v3313 = vmul.f32 %v3003, %v673
  %v3314 = vmul.f32 %v3008, %v673
  %v3315 = vmul.f32 %v3013, %v673
  %v3316 = vmul.f32 %v3018, %v673
  %v3317 = vmul.f32 %v3023, %v673
  %v3318 = vmul.f32 %v3028, %v673
  %v3319 = vmul.f32 %v3033, %v673
  %v3320 = vmul.f32 %v3038, %v673
  %v3321 = vmul.f32 %v3043, %v673
  %v3322 = vmul.f32 %v3048, %v673
  %v3323 = vmul.f32 %v3053, %v673
  %v3324 = vmul.f32 %v3058, %v673
  %v3325 = vmul.f32 %v3063, %v673
  %v3326 = vmul.f32 %v3068, %v673
  %v3327 = vmul.f32 %v3073, %v673
  %v3328 = vmul.f32 %v3078, %v673
  %v3329 = vmul.f32 %v3083, %v673
  %v3330 = vmul.f32 %v3088, %v673
  %v3331 = vmul.f32 %v3093, %v673
  %v3332 = vmul.f32 %v3098, %v673
  %v3333 = vmul.f32 %v3103, %v673
  %v3334 = vmul.f32 %v3108, %v673
  %v3335 = vmul.f32 %v3113, %v673
  %v3336 = vmul.f32 %v3118, %v673
  %v3337 = vmul.f32 %v3123, %v673
  %v3338 = vmul.f32 %v3128, %v673
  %v3339 = vmul.f32 %v3133, %v673
  %v3340 = vmul.f32 %v3138, %v673
  %v3341 = vmul.f32 %v3143, %v673
  %v3342 = vmul.f32 %v3148, %v673
  %v3343 = vmul.f32 %v3153, %v673
  %v3344 = vmul.f32 %v3158, %v673
  %v3345 = vmul.f32 %v3163, %v673
  %v3346 = vmul.f32 %v3168, %v673
  %v3347 = vmul.f32 %v3173, %v673
  %v3348 = vmul.f32 %v3178, %v673
  %v3349 = vmul.f32 %v3183, %v673
  %v3350 = vmul.f32 %v3188, %v673
  %v3351 = vmul.f32 %v3193, %v673
  %v3352 = vmul.f32 %v3198, %v673
  %v3353 = vmul.f32 %v3203, %v673
  %v3354 = vmul.f32 %v3208, %v673
  %v3355 = vmul.f32 %v3213, %v673
  %v3356 = vmul.f32 %v3218, %v673
  %v3357 = vmul.f32 %v3223, %v673
  %v3358 = vmul.f32 %v3228, %v673
  %v3359 = vmul.f32 %v3233, %v673
  %v3360 = vmul.f32 %v3238, %v673
  %v3361 = vmul.f32 %v3243, %v673
  %v3362 = vmul.f32 %v3248, %v673
  %v3363 = vmul.f32 %v3253, %v673
  %v3364 = vmul.f32 %v3258, %v673
  %v3365 = vmul.f32 %v3263, %v673
  %v3366 = vmul.f32 %v3268, %v673
  %v3367 = vmul.f32 %v3273, %v673
  %v3368 = vmul.f32 %v3278, %v673
  %v3369 = vmul.f32 %v3283, %v673
  %v3370 = vmul.f32 %v3288, %v673
  %v3371 = vmul.f32 %v3293, %v673
  %v3372 = vmul.f32 %v3298, %v673
  %v3373 = vmul.f32 %v3303, %v673
  %v3374 = vmul.f32 %v3308, %v673
  %v3375 = vadd.f32 %v3311, %v743
  %v3376 = vadd.f32 %v3312, %v743
  %v3377 = vadd.f32 %v3313, %v743
  %v3378 = vadd.f32 %v3314, %v743
  %v3379 = vadd.f32 %v3315, %v743
  %v3380 = vadd.f32 %v3316, %v743
  %v3381 = vadd.f32 %v3317, %v743
  %v3382 = vadd.f32 %v3318, %v743
  %v3383 = vadd.f32 %v3319, %v743
  %v3384 = vadd.f32 %v3320, %v743
  %v3385 = vadd.f32 %v3321, %v743
  %v3386 = vadd.f32 %v3322, %v743
  %v3387 = vadd.f32 %v3323, %v743
  %v3388 = vadd.f32 %v3324, %v743
  %v3389 = vadd.f32 %v3325, %v743
  %v3390 = vadd.f32 %v3326, %v743
  %v3391 = vadd.f32 %v3327, %v743
  %v3392 = vadd.f32 %v3328, %v743
  %v3393 = vadd.f32 %v3329, %v743
  %v3394 = vadd.f32 %v3330, %v743
  %v3395 = vadd.f32 %v3331, %v743
  %v3396 = vadd.f32 %v3332, %v743
  %v3397 = vadd.f32 %v3333, %v743
  %v3398 = vadd.f32 %v3334, %v743
  %v3399 = vadd.f32 %v3335, %v743
  %v3400 = vadd.f32 %v3336, %v743
  %v3401 = vadd.f32 %v3337, %v743
  %v3402 = vadd.f32 %v3338, %v743
  %v3403 = vadd.f32 %v3339, %v743
  %v3404 = vadd.f32 %v3340, %v743
  %v3405 = vadd.f32 %v3341, %v743
  %v3406 = vadd.f32 %v3342, %v743
  %v3407 = vadd.f32 %v3343, %v743
  %v3408 = vadd.f32 %v3344, %v743
  %v3409 = vadd.f32 %v3345, %v743
  %v3410 = vadd.f32 %v3346, %v743
  %v3411 = vadd.f32 %v3347, %v743
  %v3412 = vadd.f32 %v3348, %v743
  %v3413 = vadd.f32 %v3349, %v743
  %v3414 = vadd.f32 %v3350, %v743
  %v3415 = vadd.f32 %v3351, %v743
  %v3416 = vadd.f32 %v3352, %v743
  %v3417 = vadd.f32 %v3353, %v743
  %v3418 = vadd.f32 %v3354, %v743
  %v3419 = vadd.f32 %v3355, %v743
  %v3420 = vadd.f32 %v3356, %v743
  %v3421 = vadd.f32 %v3357, %v743
  %v3422 = vadd.f32 %v3358, %v743
  %v3423 = vadd.f32 %v3359, %v743
  %v3424 = vadd.f32 %v3360, %v743
  %v3425 = vadd.f32 %v3361, %v743
  %v3426 = vadd.f32 %v3362, %v743
  %v3427 = vadd.f32 %v3363, %v743
  %v3428 = vadd.f32 %v3364, %v743
  %v3429 = vadd.f32 %v3365, %v743
  %v3430 = vadd.f32 %v3366, %v743
  %v3431 = vadd.f32 %v3367, %v743
  %v3432 = vadd.f32 %v3368, %v743
  %v3433 = vadd.f32 %v3369, %v743
  %v3434 = vadd.f32 %v3370, %v743
  %v3435 = vadd.f32 %v3371, %v743
  %v3436 = vadd.f32 %v3372, %v743
  %v3437 = vadd.f32 %v3373, %v743
  %v3438 = vadd.f32 %v3374, %v743
  %v3439 = vmax.f32 %v3375, 0.0
  %v3440 = vmax.f32 %v3376, 0.0
  %v3441 = vmax.f32 %v3377, 0.0
  %v3442 = vmax.f32 %v3378, 0.0
  %v3443 = vmax.f32 %v3379, 0.0
  %v3444 = vmax.f32 %v3380, 0.0
  %v3445 = vmax.f32 %v3381, 0.0
  %v3446 = vmax.f32 %v3382, 0.0
  %v3447 = vmax.f32 %v3383, 0.0
  %v3448 = vmax.f32 %v3384, 0.0
  %v3449 = vmax.f32 %v3385, 0.0
  %v3450 = vmax.f32 %v3386, 0.0
  %v3451 = vmax.f32 %v3387, 0.0
  %v3452 = vmax.f32 %v3388, 0.0
  %v3453 = vmax.f32 %v3389, 0.0
  %v3454 = vmax.f32 %v3390, 0.0
  %v3455 = vmax.f32 %v3391, 0.0
  %v3456 = vmax.f32 %v3392, 0.0
  %v3457 = vmax.f32 %v3393, 0.0
  %v3458 = vmax.f32 %v3394, 0.0
  %v3459 = vmax.f32 %v3395, 0.0
  %v3460 = vmax.f32 %v3396, 0.0
  %v3461 = vmax.f32 %v3397, 0.0
  %v3462 = vmax.f32 %v3398, 0.0
  %v3463 = vmax.f32 %v3399, 0.0
  %v3464 = vmax.f32 %v3400, 0.0
  %v3465 = vmax.f32 %v3401, 0.0
  %v3466 = vmax.f32 %v3402, 0.0
  %v3467 = vmax.f32 %v3403, 0.0
  %v3468 = vmax.f32 %v3404, 0.0
  %v3469 = vmax.f32 %v3405, 0.0
  %v3470 = vmax.f32 %v3406, 0.0
  %v3471 = vmax.f32 %v3407, 0.0
  %v3472 = vmax.f32 %v3408, 0.0
  %v3473 = vmax.f32 %v3409, 0.0
  %v3474 = vmax.f32 %v3410, 0.0
  %v3475 = vmax.f32 %v3411, 0.0
  %v3476 = vmax.f32 %v3412, 0.0
  %v3477 = vmax.f32 %v3413, 0.0
  %v3478 = vmax.f32 %v3414, 0.0
  %v3479 = vmax.f32 %v3415, 0.0
  %v3480 = vmax.f32 %v3416, 0.0
  %v3481 = vmax.f32 %v3417, 0.0
  %v3482 = vmax.f32 %v3418, 0.0
  %v3483 = vmax.f32 %v3419, 0.0
  %v3484 = vmax.f32 %v3420, 0.0
  %v3485 = vmax.f32 %v3421, 0.0
  %v3486 = vmax.f32 %v3422, 0.0
  %v3487 = vmax.f32 %v3423, 0.0
  %v3488 = vmax.f32 %v3424, 0.0
  %v3489 = vmax.f32 %v3425, 0.0
  %v3490 = vmax.f32 %v3426, 0.0
  %v3491 = vmax.f32 %v3427, 0.0
  %v3492 = vmax.f32 %v3428, 0.0
  %v3493 = vmax.f32 %v3429, 0.0
  %v3494 = vmax.f32 %v3430, 0.0
  %v3495 = vmax.f32 %v3431, 0.0
  %v3496 = vmax.f32 %v3432, 0.0
  %v3497 = vmax.f32 %v3433, 0.0
  %v3498 = vmax.f32 %v3434, 0.0
  %v3499 = vmax.f32 %v3435, 0.0
  %v3500 = vmax.f32 %v3436, 0.0
  %v3501 = vmax.f32 %v3437, 0.0
  %v3502 = vmax.f32 %v3438, 0.0
  %v3503 = vmax.f32 %v2605, %v3439
  %v3504 = vmax.f32 %v2606, %v3440
  %v3505 = vmax.f32 %v2607, %v3441
  %v3506 = vmax.f32 %v2608, %v3442
  %v3507 = vmax.f32 %v2609, %v3443
  %v3508 = vmax.f32 %v2610, %v3444
  %v3509 = vmax.f32 %v2611, %v3445
  %v3510 = vmax.f32 %v2612, %v3446
  %v3511 = vmax.f32 %v2613, %v3447
  %v3512 = vmax.f32 %v2614, %v3448
  %v3513 = vmax.f32 %v2615, %v3449
  %v3514 = vmax.f32 %v2616, %v3450
  %v3515 = vmax.f32 %v2617, %v3451
  %v3516 = vmax.f32 %v2618, %v3452
  %v3517 = vmax.f32 %v2619, %v3453
  %v3518 = vmax.f32 %v2620, %v3454
  %v3519 = vmax.f32 %v2621, %v3455
  %v3520 = vmax.f32 %v2622, %v3456
  %v3521 = vmax.f32 %v2623, %v3457
  %v3522 = vmax.f32 %v2624, %v3458
  %v3523 = vmax.f32 %v2625, %v3459
  %v3524 = vmax.f32 %v2626, %v3460
  %v3525 = vmax.f32 %v2627, %v3461
  %v3526 = vmax.f32 %v2628, %v3462
  %v3527 = vmax.f32 %v2629, %v3463
  %v3528 = vmax.f32 %v2630, %v3464
  %v3529 = vmax.f32 %v2631, %v3465
  %v3530 = vmax.f32 %v2632, %v3466
  %v3531 = vmax.f32 %v2633, %v3467
  %v3532 = vmax.f32 %v2634, %v3468
  %v3533 = vmax.f32 %v2635, %v3469
  %v3534 = vmax.f32 %v2636, %v3470
  %v3535 = vmax.f32 %v2637, %v3471
  %v3536 = vmax.f32 %v2638, %v3472
  %v3537 = vmax.f32 %v2639, %v3473
  %v3538 = vmax.f32 %v2640, %v3474
  %v3539 = vmax.f32 %v2641, %v3475
  %v3540 = vmax.f32 %v2642, %v3476
  %v3541 = vmax.f32 %v2643, %v3477
  %v3542 = vmax.f32 %v2644, %v3478
  %v3543 = vmax.f32 %v2645, %v3479
  %v3544 = vmax.f32 %v2646, %v3480
  %v3545 = vmax.f32 %v2647, %v3481
  %v3546 = vmax.f32 %v2648, %v3482
  %v3547 = vmax.f32 %v2649, %v3483
  %v3548 = vmax.f32 %v2650, %v3484
  %v3549 = vmax.f32 %v2651, %v3485
  %v3550 = vmax.f32 %v2652, %v3486
  %v3551 = vmax.f32 %v2653, %v3487
  %v3552 = vmax.f32 %v2654, %v3488
  %v3553 = vmax.f32 %v2655, %v3489
  %v3554 = vmax.f32 %v2656, %v3490
  %v3555 = vmax.f32 %v2657, %v3491
  %v3556 = vmax.f32 %v2658, %v3492
  %v3557 = vmax.f32 %v2659, %v3493
  %v3558 = vmax.f32 %v2660, %v3494
  %v3559 = vmax.f32 %v2661, %v3495
  %v3560 = vmax.f32 %v2662, %v3496
  %v3561 = vmax.f32 %v2663, %v3497
  %v3562 = vmax.f32 %v2664, %v3498
  %v3563 = vmax.f32 %v2665, %v3499
  %v3564 = vmax.f32 %v2666, %v3500
  %v3565 = vmax.f32 %v2667, %v3501
  %v3566 = vmax.f32 %v2668, %v3502
  %vm3567 = vcmask 523264
  %3568 = vst.msk [vmem:[%s4] sm:$0xff] %vm3567, %v3503
  %3569 = vst.msk [vmem:[%s4 + $0x8] sm:$0xff] %vm3567, %v3504
  %3570 = vst.msk [vmem:[%s4 + $0x10] sm:$0xff] %vm3567, %v3505
  %3571 = vst.msk [vmem:[%s4 + $0x18] sm:$0xff] %vm3567, %v3506
  %3572 = vst.msk [vmem:[%s4 + $0x20] sm:$0xff] %vm3567, %v3507
  %3573 = vst.msk [vmem:[%s4 + $0x28] sm:$0xff] %vm3567, %v3508
  %3574 = vst.msk [vmem:[%s4 + $0x30] sm:$0xff] %vm3567, %v3509
  %3575 = vst.msk [vmem:[%s4 + $0x38] sm:$0xff] %vm3567, %v3510
  %3576 = vst.msk [vmem:[%s4 + $0x40] sm:$0xff] %vm3567, %v3511
  %3577 = vst.msk [vmem:[%s4 + $0x48] sm:$0xff] %vm3567, %v3512
  %3578 = vst.msk [vmem:[%s4 + $0x50] sm:$0xff] %vm3567, %v3513
  %3579 = vst.msk [vmem:[%s4 + $0x58] sm:$0xff] %vm3567, %v3514
  %3580 = vst.msk [vmem:[%s4 + $0x60] sm:$0xff] %vm3567, %v3515
  %3581 = vst.msk [vmem:[%s4 + $0x68] sm:$0xff] %vm3567, %v3516
  %3582 = vst.msk [vmem:[%s4 + $0x70] sm:$0xff] %vm3567, %v3517
  %3583 = vst.msk [vmem:[%s4 + $0x78] sm:$0xff] %vm3567, %v3518
  %3584 = vst.msk [vmem:[%s4 + $0x80] sm:$0xff] %vm3567, %v3519
  %3585 = vst.msk [vmem:[%s4 + $0x88] sm:$0xff] %vm3567, %v3520
  %3586 = vst.msk [vmem:[%s4 + $0x90] sm:$0xff] %vm3567, %v3521
  %3587 = vst.msk [vmem:[%s4 + $0x98] sm:$0xff] %vm3567, %v3522
  %3588 = vst.msk [vmem:[%s4 + $0xa0] sm:$0xff] %vm3567, %v3523
  %3589 = vst.msk [vmem:[%s4 + $0xa8] sm:$0xff] %vm3567, %v3524
  %3590 = vst.msk [vmem:[%s4 + $0xb0] sm:$0xff] %vm3567, %v3525
  %3591 = vst.msk [vmem:[%s4 + $0xb8] sm:$0xff] %vm3567, %v3526
  %3592 = vst.msk [vmem:[%s4 + $0xc0] sm:$0xff] %vm3567, %v3527
  %3593 = vst.msk [vmem:[%s4 + $0xc8] sm:$0xff] %vm3567, %v3528
  %3594 = vst.msk [vmem:[%s4 + $0xd0] sm:$0xff] %vm3567, %v3529
  %3595 = vst.msk [vmem:[%s4 + $0xd8] sm:$0xff] %vm3567, %v3530
  %3596 = vst.msk [vmem:[%s4 + $0xe0] sm:$0xff] %vm3567, %v3531
  %3597 = vst.msk [vmem:[%s4 + $0xe8] sm:$0xff] %vm3567, %v3532
  %3598 = vst.msk [vmem:[%s4 + $0xf0] sm:$0xff] %vm3567, %v3533
  %3599 = vst.msk [vmem:[%s4 + $0xf8] sm:$0xff] %vm3567, %v3534
  %3600 = vst.msk [vmem:[%s4 + $0x100] sm:$0xff] %vm3567, %v3535
  %3601 = vst.msk [vmem:[%s4 + $0x108] sm:$0xff] %vm3567, %v3536
  %3602 = vst.msk [vmem:[%s4 + $0x110] sm:$0xff] %vm3567, %v3537
  %3603 = vst.msk [vmem:[%s4 + $0x118] sm:$0xff] %vm3567, %v3538
  %3604 = vst.msk [vmem:[%s4 + $0x120] sm:$0xff] %vm3567, %v3539
  %3605 = vst.msk [vmem:[%s4 + $0x128] sm:$0xff] %vm3567, %v3540
  %3606 = vst.msk [vmem:[%s4 + $0x130] sm:$0xff] %vm3567, %v3541
  %3607 = vst.msk [vmem:[%s4 + $0x138] sm:$0xff] %vm3567, %v3542
  %3608 = vst.msk [vmem:[%s4 + $0x140] sm:$0xff] %vm3567, %v3543
  %3609 = vst.msk [vmem:[%s4 + $0x148] sm:$0xff] %vm3567, %v3544
  %3610 = vst.msk [vmem:[%s4 + $0x150] sm:$0xff] %vm3567, %v3545
  %3611 = vst.msk [vmem:[%s4 + $0x158] sm:$0xff] %vm3567, %v3546
  %3612 = vst.msk [vmem:[%s4 + $0x160] sm:$0xff] %vm3567, %v3547
  %3613 = vst.msk [vmem:[%s4 + $0x168] sm:$0xff] %vm3567, %v3548
  %3614 = vst.msk [vmem:[%s4 + $0x170] sm:$0xff] %vm3567, %v3549
  %3615 = vst.msk [vmem:[%s4 + $0x178] sm:$0xff] %vm3567, %v3550
  %3616 = vst.msk [vmem:[%s4 + $0x180] sm:$0xff] %vm3567, %v3551
  %3617 = vst.msk [vmem:[%s4 + $0x188] sm:$0xff] %vm3567, %v3552
  %3618 = vst.msk [vmem:[%s4 + $0x190] sm:$0xff] %vm3567, %v3553
  %3619 = vst.msk [vmem:[%s4 + $0x198] sm:$0xff] %vm3567, %v3554
  %3620 = vst.msk [vmem:[%s4 + $0x1a0] sm:$0xff] %vm3567, %v3555
  %3621 = vst.msk [vmem:[%s4 + $0x1a8] sm:$0xff] %vm3567, %v3556
  %3622 = vst.msk [vmem:[%s4 + $0x1b0] sm:$0xff] %vm3567, %v3557
  %3623 = vst.msk [vmem:[%s4 + $0x1b8] sm:$0xff] %vm3567, %v3558
  %3624 = vst.msk [vmem:[%s4 + $0x1c0] sm:$0xff] %vm3567, %v3559
  %3625 = vst.msk [vmem:[%s4 + $0x1c8] sm:$0xff] %vm3567, %v3560
  %3626 = vst.msk [vmem:[%s4 + $0x1d0] sm:$0xff] %vm3567, %v3561
  %3627 = vst.msk [vmem:[%s4 + $0x1d8] sm:$0xff] %vm3567, %v3562
  %3628 = vst.msk [vmem:[%s4 + $0x1e0] sm:$0xff] %vm3567, %v3563
  %3629 = vst.msk [vmem:[%s4 + $0x1e8] sm:$0xff] %vm3567, %v3564
  %3630 = vst.msk [vmem:[%s4 + $0x1f0] sm:$0xff] %vm3567, %v3565
  %3631 = vst.msk [vmem:[%s4 + $0x1f8] sm:$0xff] %vm3567, %v3566
  // Predicated region
  $region18: #{tpu_custom_call.1} parent=0 // pred_check
    _
  $region19: #{tpu_custom_call.1} parent=0 // pred_check_branch
    %3633 = sbr.rel (0) target = $region21
  $region20: #{tpu_custom_call.1} parent=0 // pred_region
    _
  $region21: #{tpu_custom_call.1} parent=0 // pred_fallthru
    _
  // Predicated region
  $region22: #{tpu_custom_call.1} parent=0 // pred_check
    _
  $region23: #{tpu_custom_call.1} parent=0 // pred_check_branch
    %3635 = sbr.rel (0) target = $region25
  $region24: #{tpu_custom_call.1} parent=0 // pred_region
    _
  $region25: #{tpu_custom_call.1} parent=0 // pred_fallthru
    _

</llo_original>
